<compile_context>
chip_gen: v7x
topology: tpu7x:2x2x1
jax: 0.10.0
libtpu: 0.0.40
codegen_flags: <defaults>
</compile_context>

<pallas_src>
import functools

import jax
import jax.numpy as jnp
import numpy as np
from jax import lax
from jax.experimental import pallas as pl
from jax.experimental.pallas import tpu as pltpu

MXU_DTYPE = jnp.bfloat16          # matmul operand dtype (accumulation is always f32)


def _round_up(x, m):
    return (x + m - 1) // m * m


# ------------------------------ fused BlockA kernel -------------------------- #

def _block_kernel(x_ref, dw1_ref, db1_ref, pw1_ref, b1_ref,
                  dw2_ref, db2_ref, pw2_ref, b2_ref,
                  dw3_ref, db3_ref, w3_ref, b3_ref,
                  *rest, H, W, stride, has_skip):
    """One whole BlockA (3 SepConvs + BNs + ReLUs + skip + residual) per grid step."""
    if has_skip:
        xs_ref, o_ref, pad_ref = rest
    else:
        o_ref, pad_ref = rest

    Cp = x_ref.shape[-1]
    mdt = pw1_ref.dtype                        # MXU operand dtype (bf16)

    # Zero only the 1-pixel halo border of the scratch, once per grid step.  The interior is
    # fully overwritten before every read, and the border is never written again below.
    zrow = jnp.zeros((1, W + 2, Cp), jnp.float32)
    zcol = jnp.zeros((H + 2, 1, Cp), jnp.float32)
    pad_ref[0:1, :, :] = zrow
    pad_ref[H + 1:H + 2, :, :] = zrow
    pad_ref[:, 0:1, :] = zcol
    pad_ref[:, W + 1:W + 2, :] = zcol

    def dw3x3(inp_hwc, dw_ref, db_ref, s):
        """Depthwise 3x3, pad=1, stride=s, fused BN.

        Writes `inp_hwc` into the interior of the zero-halo scratch and reads the nine taps
        as shifted (and, for s>1, strided) slices -- no border masks, no subsample matmul.
        """
        pad_ref[1:H + 1, 1:W + 1, :] = inp_hwc
        ho = (H - 1) // s + 1
        wo = (W - 1) // s + 1
        taps = dw_ref[...]                     # (9, Cp), BN scale pre-folded
        acc = None
        for kh in range(3):
            for kw in range(3):
                if s == 1:
                    patch = pad_ref[kh:kh + H, kw:kw + W, :]
                else:
                    patch = pad_ref[pl.ds(kh, ho, s), pl.ds(kw, wo, s), :]
                term = patch * taps[kh * 3 + kw:kh * 3 + kw + 1, :]
                acc = term if acc is None else acc + term
        return acc + db_ref[...]               # (ho, wo, Cp) f32

    xf = x_ref[0]                              # (H, W, Cp) f32 raw input

    # --- SepConv 1: ReLU -> dw3x3(+BN) -> 1x1(+BN) -> ReLU ---------------------------------
    d1 = dw3x3(jnp.maximum(xf, 0.0), dw1_ref, db1_ref, 1)
    a1 = jnp.dot(d1.reshape(H * W, Cp).astype(mdt), pw1_ref[...],
                 preferred_element_type=jnp.float32)
    a1 = jnp.maximum(a1 + b1_ref[...], 0.0)    # (H*W, Cp)

    # --- SepConv 2 --------------------------------------------------------------------------
    d2 = dw3x3(a1.reshape(H, W, Cp), dw2_ref, db2_ref, 1)
    a2 = jnp.dot(d2.reshape(H * W, Cp).astype(mdt), pw2_ref[...],
                 preferred_element_type=jnp.float32)
    a2 = jnp.maximum(a2 + b2_ref[...], 0.0)    # (H*W, Cp)

    # --- SepConv 3: depthwise evaluated only at the stride-s output grid --------------------
    Ho = (H - 1) // stride + 1
    Wo = (W - 1) // stride + 1
    d3 = dw3x3(a2.reshape(H, W, Cp), dw3_ref, db3_ref, stride)     # (Ho, Wo, Cp)
    d3f = d3.reshape(Ho * Wo, Cp).astype(mdt)

    if has_skip:
        # pw3 and the 1x1 skip conv are fused into a single matmul: K-concat [d3, x_strided]
        # against the stacked weight [pw3; skw].  x_strided arrives pre-subsampled from HBM.
        xsf = xs_ref[0].reshape(Ho * Wo, Cp).astype(mdt)
        lhs = jnp.concatenate([d3f, xsf], axis=-1)                 # (Ho*Wo, 2*Cp)
        y = jnp.dot(lhs, w3_ref[...], preferred_element_type=jnp.float32) + b3_ref[...]
    else:
        # identity skip (Cin == Cout, stride == 1): add the raw (pre-ReLU) input.
        y = (jnp.dot(d3f, w3_ref[...], preferred_element_type=jnp.float32)
             + b3_ref[...] + xf.reshape(H * W, Cp))

    o_ref[0] = y                               # lane-dense (Ho*Wo, Cp) store


# -------------------------------- wrappers ------------------------------------ #

def block_a_forward(x, p):
    """x: (N, H, W, Cp) NHWC f32, channel-padded to Cp (multiple of 128).

    Returns (N, Ho, Wo, Cp).  One fused Pallas call per BlockA.
    """
    N, H, W, Cp = x.shape
    stride = p["stride"]
    cin = p["pw1_w"].shape[0]
    inter = p["pw1_w"].shape[1]
    cout = p["pw3_w"].shape[1]
    assert max(cin, inter, cout) <= Cp
    Ho = (H - 1) // stride + 1
    Wo = (W - 1) // stride + 1
    has_skip = "skip_w" in p                   # absent => cin == cout and stride == 1

    def pad2(a, rows):                         # zero-pad a 2-D array to (rows, Cp)
        return jnp.pad(a, ((0, rows - a.shape[0]), (0, Cp - a.shape[1])))

    # Fold BN scales into conv weights (eval-mode BN); pad channel dims; cast matmuls to bf16.
    dw1 = pad2((p["dw1_w"] * p["dw1_s"]).reshape(9, cin), 9)
    db1 = pad2(p["dw1_b"].reshape(1, cin), 1)
    pw1 = pad2(p["pw1_w"] * p["bn1_s"][None, :], Cp).astype(MXU_DTYPE)
    b1 = pad2(p["bn1_b"].reshape(1, inter), 1)
    dw2 = pad2((p["dw2_w"] * p["dw2_s"]).reshape(9, inter), 9)
    db2 = pad2(p["dw2_b"].reshape(1, inter), 1)
    pw2 = pad2(p["pw2_w"] * p["bn2_s"][None, :], Cp).astype(MXU_DTYPE)
    b2 = pad2(p["bn2_b"].reshape(1, inter), 1)
    dw3 = pad2((p["dw3_w"] * p["dw3_s"]).reshape(9, inter), 9)
    db3 = pad2(p["dw3_b"].reshape(1, inter), 1)
    pw3 = pad2(p["pw3_w"] * p["bn3_s"][None, :], Cp)
    if has_skip:
        skw = pad2(p["skip_w"] * p["skip_s"][None, :], Cp)
        w3 = jnp.concatenate([pw3, skw], axis=0).astype(MXU_DTYPE)   # (2*Cp, Cp)
        b3 = pad2((p["bn3_b"] + p["skip_b"]).reshape(1, cout), 1)
    else:
        w3 = pw3.astype(MXU_DTYPE)
        b3 = pad2(p["bn3_b"].reshape(1, cout), 1)

    inputs = [x, dw1, db1, pw1, b1, dw2, db2, pw2, b2, dw3, db3, w3, b3]
    in_specs = [pl.BlockSpec((1, H, W, Cp), lambda n: (n, 0, 0, 0))]
    in_specs += [pl.BlockSpec(a.shape, lambda n: (0, 0)) for a in inputs[1:]]
    if has_skip:
        # Pre-strided input for the 1x1 skip conv (replaces the old one-hot sel matmul).
        xs = x[:, ::stride, ::stride, :]
        inputs.append(xs)
        in_specs.append(pl.BlockSpec((1, Ho, Wo, Cp), lambda n: (n, 0, 0, 0)))

    kern = functools.partial(_block_kernel, H=H, W=W, stride=stride, has_skip=has_skip)
    out = pl.pallas_call(
        kern,
        out_shape=jax.ShapeDtypeStruct((N, Ho * Wo, Cp), jnp.float32),
        grid=(N,),
        in_specs=in_specs,
        out_specs=pl.BlockSpec((1, Ho * Wo, Cp), lambda n: (n, 0, 0)),
        # Single zero-halo scratch, shared by all three depthwise stages (all Cp-wide).
        scratch_shapes=[pltpu.VMEM((H + 2, W + 2, Cp), jnp.float32)],
        compiler_params=pltpu.CompilerParams(
            dimension_semantics=("parallel",),
            # <1 MiB actually used per step at these shapes; 32 MiB stays inside every
            # generation's physical VMEM (v5e scoped default is 16 MiB, physical 128 MiB).
            vmem_limit_bytes=32 * 1024 * 1024),
    )(*inputs)
    return out.reshape(N, Ho, Wo, Cp)


def enc_forward(x_nchw, params):
    x = jnp.transpose(x_nchw, (0, 2, 3, 1))          # NCHW -> NHWC
    cmax = 1
    for p in params:
        cmax = max(cmax, p["pw1_w"].shape[0], p["pw1_w"].shape[1], p["pw3_w"].shape[1])
    Cp = _round_up(cmax, 128)
    x = jnp.pad(x, ((0, 0), (0, 0), (0, 0), (0, Cp - x.shape[-1])))   # pad channels once
    for p in params:
        x = block_a_forward(x, p)
    cout = params[-1]["pw3_w"].shape[1]
    x = x[..., :cout]
    return jnp.transpose(x, (0, 3, 1, 2))            # NHWC -> NCHW


# ------------------------------- parameter init -------------------------------- #

def _bn_fold(gamma, beta, mean, var, eps=1e-5):
    scale = gamma / jnp.sqrt(var + eps)
    bias = beta - mean * scale
    return scale, bias


def _bn_params(key, c):
    k1, k2, k3, k4 = jax.random.split(key, 4)
    gamma = 1.0 + 0.1 * jax.random.normal(k1, (c,))
    beta = 0.1 * jax.random.normal(k2, (c,))
    mean = 0.1 * jax.random.normal(k3, (c,))
    var = jax.random.uniform(k4, (c,), minval=0.5, maxval=1.5)
    return _bn_fold(gamma, beta, mean, var)


def init_block_a(key, cin, cout, stride):
    inter = cout // 4
    ks = jax.random.split(key, 15)
    p = {"stride": stride}
    p["dw1_w"] = 0.2 * jax.random.normal(ks[0], (3, 3, cin))
    p["dw1_s"], p["dw1_b"] = _bn_params(ks[1], cin)
    p["pw1_w"] = 0.2 * jax.random.normal(ks[2], (cin, inter))
    p["bn1_s"], p["bn1_b"] = _bn_params(ks[3], inter)
    p["dw2_w"] = 0.2 * jax.random.normal(ks[4], (3, 3, inter))
    p["dw2_s"], p["dw2_b"] = _bn_params(ks[5], inter)
    p["pw2_w"] = 0.2 * jax.random.normal(ks[6], (inter, inter))
    p["bn2_s"], p["bn2_b"] = _bn_params(ks[7], inter)
    p["dw3_w"] = 0.2 * jax.random.normal(ks[8], (3, 3, inter))
    p["dw3_s"], p["dw3_b"] = _bn_params(ks[9], inter)
    p["pw3_w"] = 0.2 * jax.random.normal(ks[10], (inter, cout))
    p["bn3_s"], p["bn3_b"] = _bn_params(ks[11], cout)
    if cout != cin or stride != 1:
        p["skip_w"] = 0.2 * jax.random.normal(ks[12], (cin, cout))
        p["skip_s"], p["skip_b"] = _bn_params(ks[13], cout)
    return p


def init_enc(key, in_channels, out_channels, blocks):
    keys = jax.random.split(key, blocks)
    params = [init_block_a(keys[0], in_channels, out_channels, 2)]
    for i in range(blocks - 1):
        params.append(init_block_a(keys[i + 1], out_channels, out_channels, 1))
    return params


# ----------------------------- pure-JAX reference ------------------------------ #

def _ref_sepconv(x, dw_w, dw_s, dw_b, pw_w, stride, dilation):
    C = x.shape[-1]
    y = lax.conv_general_dilated(
        x, dw_w.reshape(3, 3, 1, C),
        window_strides=(stride, stride),
        padding=[(dilation, dilation), (dilation, dilation)],
        rhs_dilation=(dilation, dilation),
        dimension_numbers=("NHWC", "HWIO", "NHWC"),
        feature_group_count=C)
    y = y * dw_s + dw_b
    return jnp.einsum("nhwc,co->nhwo", y, pw_w)


def _ref_block_a(x, p):
    stride = p["stride"]
    h = jnp.maximum(x, 0.0)
    h = _ref_sepconv(h, p["dw1_w"], p["dw1_s"], p["dw1_b"], p["pw1_w"], 1, 1)
    h = jnp.maximum(h * p["bn1_s"] + p["bn1_b"], 0.0)
    h = _ref_sepconv(h, p["dw2_w"], p["dw2_s"], p["dw2_b"], p["pw2_w"], 1, 1)
    h = jnp.maximum(h * p["bn2_s"] + p["bn2_b"], 0.0)
    h = _ref_sepconv(h, p["dw3_w"], p["dw3_s"], p["dw3_b"], p["pw3_w"], stride, 1)
    h = h * p["bn3_s"] + p["bn3_b"]
    if "skip_w" in p:
        xs = x[:, ::stride, ::stride, :] if stride != 1 else x
        skip = jnp.einsum("nhwc,co->nhwo", xs, p["skip_w"]) * p["skip_s"] + p["skip_b"]
    else:
        skip = x
    return h + skip


def _ref_enc(x_nchw, params):
    x = jnp.transpose(x_nchw, (0, 2, 3, 1))
    for p in params:
        x = _ref_block_a(x, p)
    return jnp.transpose(x, (0, 3, 1, 2))


# ----------------------------------- main --------------------------------------- #

if __name__ == "__main__":
    key = jax.random.PRNGKey(0)
    kx, kp = jax.random.split(key)

    in_channels, out_channels, blocks = 8, 16, 2
    x = jax.random.normal(kx, (2, in_channels, 16, 16), dtype=jnp.float32)  # NCHW

    params = init_enc(kp, in_channels, out_channels, blocks)

    out = jax.block_until_ready(enc_forward(x, params))
    assert out.shape == (2, out_channels, 8, 8), out.shape

    ref = jax.block_until_ready(_ref_enc(x, params))
    # Tolerance accounts for the bf16 MXU operands in the kernel vs. the pure-f32 reference.
    np.testing.assert_allclose(np.asarray(out), np.asarray(ref), rtol=5e-2, atol=5e-2)

    print("KERNEL_OK")
</pallas_src>

<mosaic_0001>
module attributes {stable_mosaic.version = 11 : i64} {
  func.func @_block_kernel(%arg0: i32, %arg1: memref<1x16x16x128xf32, #tpu.memory_space<vmem>>, %arg2: memref<9x128xf32, #tpu.memory_space<vmem>>, %arg3: memref<1x128xf32, #tpu.memory_space<vmem>>, %arg4: memref<128x128xbf16, #tpu.memory_space<vmem>>, %arg5: memref<1x128xf32, #tpu.memory_space<vmem>>, %arg6: memref<9x128xf32, #tpu.memory_space<vmem>>, %arg7: memref<1x128xf32, #tpu.memory_space<vmem>>, %arg8: memref<128x128xbf16, #tpu.memory_space<vmem>>, %arg9: memref<1x128xf32, #tpu.memory_space<vmem>>, %arg10: memref<9x128xf32, #tpu.memory_space<vmem>>, %arg11: memref<1x128xf32, #tpu.memory_space<vmem>>, %arg12: memref<256x128xbf16, #tpu.memory_space<vmem>>, %arg13: memref<1x128xf32, #tpu.memory_space<vmem>>, %arg14: memref<1x8x8x128xf32, #tpu.memory_space<vmem>>, %arg15: memref<1x64x128xf32, #tpu.memory_space<vmem>>, %arg16: memref<18x18x128xf32, #tpu.memory_space<vmem>>) attributes {dimension_semantics = [#tpu.dimension_semantics<parallel>], iteration_bounds = array<i64: 2>, scalar_prefetch = 0 : i64, scratch_operands = 1 : i64, tpu.core_type = #tpu.core_type<tc>, window_params = [{transform_indices = @transform_0, window_bounds = array<i64: 1, 16, 16, 128>}, {pipeline_mode = #tpu.pipeline_mode<synchronous>, transform_indices = @transform_1, window_bounds = array<i64: 9, 128>}, {pipeline_mode = #tpu.pipeline_mode<synchronous>, transform_indices = @transform_2, window_bounds = array<i64: 1, 128>}, {pipeline_mode = #tpu.pipeline_mode<synchronous>, transform_indices = @transform_3, window_bounds = array<i64: 128, 128>}, {pipeline_mode = #tpu.pipeline_mode<synchronous>, transform_indices = @transform_4, window_bounds = array<i64: 1, 128>}, {pipeline_mode = #tpu.pipeline_mode<synchronous>, transform_indices = @transform_5, window_bounds = array<i64: 9, 128>}, {pipeline_mode = #tpu.pipeline_mode<synchronous>, transform_indices = @transform_6, window_bounds = array<i64: 1, 128>}, {pipeline_mode = #tpu.pipeline_mode<synchronous>, transform_indices = @transform_7, window_bounds = array<i64: 128, 128>}, {pipeline_mode = #tpu.pipeline_mode<synchronous>, transform_indices = @transform_8, window_bounds = array<i64: 1, 128>}, {pipeline_mode = #tpu.pipeline_mode<synchronous>, transform_indices = @transform_9, window_bounds = array<i64: 9, 128>}, {pipeline_mode = #tpu.pipeline_mode<synchronous>, transform_indices = @transform_10, window_bounds = array<i64: 1, 128>}, {pipeline_mode = #tpu.pipeline_mode<synchronous>, transform_indices = @transform_11, window_bounds = array<i64: 256, 128>}, {pipeline_mode = #tpu.pipeline_mode<synchronous>, transform_indices = @transform_12, window_bounds = array<i64: 1, 128>}, {transform_indices = @transform_13, window_bounds = array<i64: 1, 8, 8, 128>}, {transform_indices = @transform_14, window_bounds = array<i64: 1, 64, 128>}]} {
    %cst = arith.constant 0.000000e+00 : f32
    %0 = vector.broadcast %cst : f32 to vector<1x18x128xf32>
    %cst_0 = arith.constant 0.000000e+00 : f32
    %1 = vector.broadcast %cst_0 : f32 to vector<18x1x128xf32>
    %c0 = arith.constant 0 : index
    %c0_1 = arith.constant 0 : index
    %c0_2 = arith.constant 0 : index
    %2 = vector.load %arg16[%c0, %c0_1, %c0_2] : memref<18x18x128xf32, #tpu.memory_space<vmem>>, vector<1x18x128xf32>
    tpu.vector_store %arg16[%c0, %c0_1, %c0_2], %0 {strides = array<i32>} : memref<18x18x128xf32, #tpu.memory_space<vmem>>, vector<1x18x128xf32>,
    %c17 = arith.constant 17 : index
    %c0_3 = arith.constant 0 : index
    %c0_4 = arith.constant 0 : index
    %3 = vector.load %arg16[%c17, %c0_3, %c0_4] : memref<18x18x128xf32, #tpu.memory_space<vmem>>, vector<1x18x128xf32>
    tpu.vector_store %arg16[%c17, %c0_3, %c0_4], %0 {strides = array<i32>} : memref<18x18x128xf32, #tpu.memory_space<vmem>>, vector<1x18x128xf32>,
    %c0_5 = arith.constant 0 : index
    %c0_6 = arith.constant 0 : index
    %c0_7 = arith.constant 0 : index
    %4 = vector.load %arg16[%c0_5, %c0_6, %c0_7] : memref<18x18x128xf32, #tpu.memory_space<vmem>>, vector<18x1x128xf32>
    tpu.vector_store %arg16[%c0_5, %c0_6, %c0_7], %1 {strides = array<i32>} : memref<18x18x128xf32, #tpu.memory_space<vmem>>, vector<18x1x128xf32>,
    %c0_8 = arith.constant 0 : index
    %c17_9 = arith.constant 17 : index
    %c0_10 = arith.constant 0 : index
    %5 = vector.load %arg16[%c0_8, %c17_9, %c0_10] : memref<18x18x128xf32, #tpu.memory_space<vmem>>, vector<18x1x128xf32>
    tpu.vector_store %arg16[%c0_8, %c17_9, %c0_10], %1 {strides = array<i32>} : memref<18x18x128xf32, #tpu.memory_space<vmem>>, vector<18x1x128xf32>,
    %c0_11 = arith.constant 0 : index
    %c0_12 = arith.constant 0 : index
    %c0_13 = arith.constant 0 : index
    %c0_14 = arith.constant 0 : index
    %6 = vector.load %arg1[%c0_11, %c0_12, %c0_13, %c0_14] : memref<1x16x16x128xf32, #tpu.memory_space<vmem>>, vector<1x16x16x128xf32>
    %7 = vector.shape_cast %6 : vector<1x16x16x128xf32> to vector<16x16x128xf32>
    %cst_15 = arith.constant 0.000000e+00 : f32
    %8 = vector.broadcast %cst_15 : f32 to vector<16x16x128xf32>
    %9 = arith.maximumf %7, %8 : vector<16x16x128xf32>
    %c1 = arith.constant 1 : index
    %c1_16 = arith.constant 1 : index
    %c0_17 = arith.constant 0 : index
    %10 = vector.load %arg16[%c1, %c1_16, %c0_17] : memref<18x18x128xf32, #tpu.memory_space<vmem>>, vector<16x16x128xf32>
    tpu.vector_store %arg16[%c1, %c1_16, %c0_17], %9 {strides = array<i32>} : memref<18x18x128xf32, #tpu.memory_space<vmem>>, vector<16x16x128xf32>,
    %c0_18 = arith.constant 0 : index
    %c0_19 = arith.constant 0 : index
    %11 = vector.load %arg2[%c0_18, %c0_19] : memref<9x128xf32, #tpu.memory_space<vmem>>, vector<9x128xf32>
    %c0_20 = arith.constant 0 : index
    %c0_21 = arith.constant 0 : index
    %c0_22 = arith.constant 0 : index
    %12 = vector.load %arg16[%c0_20, %c0_21, %c0_22] : memref<18x18x128xf32, #tpu.memory_space<vmem>>, vector<16x16x128xf32>
    %13 = vector.extract_strided_slice %11 {offsets = [0, 0], sizes = [1, 128], strides = [1, 1]} : vector<9x128xf32> to vector<1x128xf32>
    %14 = vector.shape_cast %13 : vector<1x128xf32> to vector<1x1x128xf32>
    %15 = vector.broadcast %14 : vector<1x1x128xf32> to vector<16x16x128xf32>
    %16 = arith.mulf %12, %15 : vector<16x16x128xf32>
    %c0_23 = arith.constant 0 : index
    %c1_24 = arith.constant 1 : index
    %c0_25 = arith.constant 0 : index
    %17 = vector.load %arg16[%c0_23, %c1_24, %c0_25] : memref<18x18x128xf32, #tpu.memory_space<vmem>>, vector<16x16x128xf32>
    %18 = vector.extract_strided_slice %11 {offsets = [1, 0], sizes = [1, 128], strides = [1, 1]} : vector<9x128xf32> to vector<1x128xf32>
    %19 = vector.shape_cast %18 : vector<1x128xf32> to vector<1x1x128xf32>
    %20 = vector.broadcast %19 : vector<1x1x128xf32> to vector<16x16x128xf32>
    %21 = arith.mulf %17, %20 : vector<16x16x128xf32>
    %22 = arith.addf %16, %21 : vector<16x16x128xf32>
    %c0_26 = arith.constant 0 : index
    %c2 = arith.constant 2 : index
    %c0_27 = arith.constant 0 : index
    %23 = vector.load %arg16[%c0_26, %c2, %c0_27] : memref<18x18x128xf32, #tpu.memory_space<vmem>>, vector<16x16x128xf32>
    %24 = vector.extract_strided_slice %11 {offsets = [2, 0], sizes = [1, 128], strides = [1, 1]} : vector<9x128xf32> to vector<1x128xf32>
    %25 = vector.shape_cast %24 : vector<1x128xf32> to vector<1x1x128xf32>
    %26 = vector.broadcast %25 : vector<1x1x128xf32> to vector<16x16x128xf32>
    %27 = arith.mulf %23, %26 : vector<16x16x128xf32>
    %28 = arith.addf %22, %27 : vector<16x16x128xf32>
    %c1_28 = arith.constant 1 : index
    %c0_29 = arith.constant 0 : index
    %c0_30 = arith.constant 0 : index
    %29 = vector.load %arg16[%c1_28, %c0_29, %c0_30] : memref<18x18x128xf32, #tpu.memory_space<vmem>>, vector<16x16x128xf32>
    %30 = vector.extract_strided_slice %11 {offsets = [3, 0], sizes = [1, 128], strides = [1, 1]} : vector<9x128xf32> to vector<1x128xf32>
    %31 = vector.shape_cast %30 : vector<1x128xf32> to vector<1x1x128xf32>
    %32 = vector.broadcast %31 : vector<1x1x128xf32> to vector<16x16x128xf32>
    %33 = arith.mulf %29, %32 : vector<16x16x128xf32>
    %34 = arith.addf %28, %33 : vector<16x16x128xf32>
    %c1_31 = arith.constant 1 : index
    %c1_32 = arith.constant 1 : index
    %c0_33 = arith.constant 0 : index
    %35 = vector.load %arg16[%c1_31, %c1_32, %c0_33] : memref<18x18x128xf32, #tpu.memory_space<vmem>>, vector<16x16x128xf32>
    %36 = vector.extract_strided_slice %11 {offsets = [4, 0], sizes = [1, 128], strides = [1, 1]} : vector<9x128xf32> to vector<1x128xf32>
    %37 = vector.shape_cast %36 : vector<1x128xf32> to vector<1x1x128xf32>
    %38 = vector.broadcast %37 : vector<1x1x128xf32> to vector<16x16x128xf32>
    %39 = arith.mulf %35, %38 : vector<16x16x128xf32>
    %40 = arith.addf %34, %39 : vector<16x16x128xf32>
    %c1_34 = arith.constant 1 : index
    %c2_35 = arith.constant 2 : index
    %c0_36 = arith.constant 0 : index
    %41 = vector.load %arg16[%c1_34, %c2_35, %c0_36] : memref<18x18x128xf32, #tpu.memory_space<vmem>>, vector<16x16x128xf32>
    %42 = vector.extract_strided_slice %11 {offsets = [5, 0], sizes = [1, 128], strides = [1, 1]} : vector<9x128xf32> to vector<1x128xf32>
    %43 = vector.shape_cast %42 : vector<1x128xf32> to vector<1x1x128xf32>
    %44 = vector.broadcast %43 : vector<1x1x128xf32> to vector<16x16x128xf32>
    %45 = arith.mulf %41, %44 : vector<16x16x128xf32>
    %46 = arith.addf %40, %45 : vector<16x16x128xf32>
    %c2_37 = arith.constant 2 : index
    %c0_38 = arith.constant 0 : index
    %c0_39 = arith.constant 0 : index
    %47 = vector.load %arg16[%c2_37, %c0_38, %c0_39] : memref<18x18x128xf32, #tpu.memory_space<vmem>>, vector<16x16x128xf32>
    %48 = vector.extract_strided_slice %11 {offsets = [6, 0], sizes = [1, 128], strides = [1, 1]} : vector<9x128xf32> to vector<1x128xf32>
    %49 = vector.shape_cast %48 : vector<1x128xf32> to vector<1x1x128xf32>
    %50 = vector.broadcast %49 : vector<1x1x128xf32> to vector<16x16x128xf32>
    %51 = arith.mulf %47, %50 : vector<16x16x128xf32>
    %52 = arith.addf %46, %51 : vector<16x16x128xf32>
    %c2_40 = arith.constant 2 : index
    %c1_41 = arith.constant 1 : index
    %c0_42 = arith.constant 0 : index
    %53 = vector.load %arg16[%c2_40, %c1_41, %c0_42] : memref<18x18x128xf32, #tpu.memory_space<vmem>>, vector<16x16x128xf32>
    %54 = vector.extract_strided_slice %11 {offsets = [7, 0], sizes = [1, 128], strides = [1, 1]} : vector<9x128xf32> to vector<1x128xf32>
    %55 = vector.shape_cast %54 : vector<1x128xf32> to vector<1x1x128xf32>
    %56 = vector.broadcast %55 : vector<1x1x128xf32> to vector<16x16x128xf32>
    %57 = arith.mulf %53, %56 : vector<16x16x128xf32>
    %58 = arith.addf %52, %57 : vector<16x16x128xf32>
    %c2_43 = arith.constant 2 : index
    %c2_44 = arith.constant 2 : index
    %c0_45 = arith.constant 0 : index
    %59 = vector.load %arg16[%c2_43, %c2_44, %c0_45] : memref<18x18x128xf32, #tpu.memory_space<vmem>>, vector<16x16x128xf32>
    %60 = vector.extract_strided_slice %11 {offsets = [8, 0], sizes = [1, 128], strides = [1, 1]} : vector<9x128xf32> to vector<1x128xf32>
    %61 = vector.shape_cast %60 : vector<1x128xf32> to vector<1x1x128xf32>
    %62 = vector.broadcast %61 : vector<1x1x128xf32> to vector<16x16x128xf32>
    %63 = arith.mulf %59, %62 : vector<16x16x128xf32>
    %64 = arith.addf %58, %63 : vector<16x16x128xf32>
    %c0_46 = arith.constant 0 : index
    %c0_47 = arith.constant 0 : index
    %65 = vector.load %arg3[%c0_46, %c0_47] : memref<1x128xf32, #tpu.memory_space<vmem>>, vector<1x128xf32>
    %66 = vector.shape_cast %65 : vector<1x128xf32> to vector<1x1x128xf32>
    %67 = vector.broadcast %66 : vector<1x1x128xf32> to vector<16x16x128xf32>
    %68 = arith.addf %64, %67 : vector<16x16x128xf32>
    %69 = vector.shape_cast %68 : vector<16x16x128xf32> to vector<256x128xf32>
    %70 = arith.truncf %69 : vector<256x128xf32> to vector<256x128xbf16>
    %c0_48 = arith.constant 0 : index
    %c0_49 = arith.constant 0 : index
    %71 = vector.load %arg4[%c0_48, %c0_49] : memref<128x128xbf16, #tpu.memory_space<vmem>>, vector<128x128xbf16>
    %cst_50 = arith.constant dense<0.000000e+00> : vector<256x128xf32>
    %72 = tpu.matmul %70, %71, %cst_50 {dimension_numbers = #tpu.dot_dimension_numbers<[1], [0], [0], [1], [0, 0, 1, 1], [], []>} : vector<256x128xbf16>, vector<128x128xbf16>, vector<256x128xf32> -> vector<256x128xf32>
    %c0_51 = arith.constant 0 : index
    %c0_52 = arith.constant 0 : index
    %73 = vector.load %arg5[%c0_51, %c0_52] : memref<1x128xf32, #tpu.memory_space<vmem>>, vector<1x128xf32>
    %74 = vector.broadcast %73 : vector<1x128xf32> to vector<256x128xf32>
    %75 = arith.addf %72, %74 : vector<256x128xf32>
    %cst_53 = arith.constant 0.000000e+00 : f32
    %76 = vector.broadcast %cst_53 : f32 to vector<256x128xf32>
    %77 = arith.maximumf %75, %76 : vector<256x128xf32>
    %78 = vector.shape_cast %77 : vector<256x128xf32> to vector<16x16x128xf32>
    %c1_54 = arith.constant 1 : index
    %c1_55 = arith.constant 1 : index
    %c0_56 = arith.constant 0 : index
    %79 = vector.load %arg16[%c1_54, %c1_55, %c0_56] : memref<18x18x128xf32, #tpu.memory_space<vmem>>, vector<16x16x128xf32>
    tpu.vector_store %arg16[%c1_54, %c1_55, %c0_56], %78 {strides = array<i32>} : memref<18x18x128xf32, #tpu.memory_space<vmem>>, vector<16x16x128xf32>,
    %c0_57 = arith.constant 0 : index
    %c0_58 = arith.constant 0 : index
    %80 = vector.load %arg6[%c0_57, %c0_58] : memref<9x128xf32, #tpu.memory_space<vmem>>, vector<9x128xf32>
    %c0_59 = arith.constant 0 : index
    %c0_60 = arith.constant 0 : index
    %c0_61 = arith.constant 0 : index
    %81 = vector.load %arg16[%c0_59, %c0_60, %c0_61] : memref<18x18x128xf32, #tpu.memory_space<vmem>>, vector<16x16x128xf32>
    %82 = vector.extract_strided_slice %80 {offsets = [0, 0], sizes = [1, 128], strides = [1, 1]} : vector<9x128xf32> to vector<1x128xf32>
    %83 = vector.shape_cast %82 : vector<1x128xf32> to vector<1x1x128xf32>
    %84 = vector.broadcast %83 : vector<1x1x128xf32> to vector<16x16x128xf32>
    %85 = arith.mulf %81, %84 : vector<16x16x128xf32>
    %c0_62 = arith.constant 0 : index
    %c1_63 = arith.constant 1 : index
    %c0_64 = arith.constant 0 : index
    %86 = vector.load %arg16[%c0_62, %c1_63, %c0_64] : memref<18x18x128xf32, #tpu.memory_space<vmem>>, vector<16x16x128xf32>
    %87 = vector.extract_strided_slice %80 {offsets = [1, 0], sizes = [1, 128], strides = [1, 1]} : vector<9x128xf32> to vector<1x128xf32>
    %88 = vector.shape_cast %87 : vector<1x128xf32> to vector<1x1x128xf32>
    %89 = vector.broadcast %88 : vector<1x1x128xf32> to vector<16x16x128xf32>
    %90 = arith.mulf %86, %89 : vector<16x16x128xf32>
    %91 = arith.addf %85, %90 : vector<16x16x128xf32>
    %c0_65 = arith.constant 0 : index
    %c2_66 = arith.constant 2 : index
    %c0_67 = arith.constant 0 : index
    %92 = vector.load %arg16[%c0_65, %c2_66, %c0_67] : memref<18x18x128xf32, #tpu.memory_space<vmem>>, vector<16x16x128xf32>
    %93 = vector.extract_strided_slice %80 {offsets = [2, 0], sizes = [1, 128], strides = [1, 1]} : vector<9x128xf32> to vector<1x128xf32>
    %94 = vector.shape_cast %93 : vector<1x128xf32> to vector<1x1x128xf32>
    %95 = vector.broadcast %94 : vector<1x1x128xf32> to vector<16x16x128xf32>
    %96 = arith.mulf %92, %95 : vector<16x16x128xf32>
    %97 = arith.addf %91, %96 : vector<16x16x128xf32>
    %c1_68 = arith.constant 1 : index
    %c0_69 = arith.constant 0 : index
    %c0_70 = arith.constant 0 : index
    %98 = vector.load %arg16[%c1_68, %c0_69, %c0_70] : memref<18x18x128xf32, #tpu.memory_space<vmem>>, vector<16x16x128xf32>
    %99 = vector.extract_strided_slice %80 {offsets = [3, 0], sizes = [1, 128], strides = [1, 1]} : vector<9x128xf32> to vector<1x128xf32>
    %100 = vector.shape_cast %99 : vector<1x128xf32> to vector<1x1x128xf32>
    %101 = vector.broadcast %100 : vector<1x1x128xf32> to vector<16x16x128xf32>
    %102 = arith.mulf %98, %101 : vector<16x16x128xf32>
    %103 = arith.addf %97, %102 : vector<16x16x128xf32>
    %c1_71 = arith.constant 1 : index
    %c1_72 = arith.constant 1 : index
    %c0_73 = arith.constant 0 : index
    %104 = vector.load %arg16[%c1_71, %c1_72, %c0_73] : memref<18x18x128xf32, #tpu.memory_space<vmem>>, vector<16x16x128xf32>
    %105 = vector.extract_strided_slice %80 {offsets = [4, 0], sizes = [1, 128], strides = [1, 1]} : vector<9x128xf32> to vector<1x128xf32>
    %106 = vector.shape_cast %105 : vector<1x128xf32> to vector<1x1x128xf32>
    %107 = vector.broadcast %106 : vector<1x1x128xf32> to vector<16x16x128xf32>
    %108 = arith.mulf %104, %107 : vector<16x16x128xf32>
    %109 = arith.addf %103, %108 : vector<16x16x128xf32>
    %c1_74 = arith.constant 1 : index
    %c2_75 = arith.constant 2 : index
    %c0_76 = arith.constant 0 : index
    %110 = vector.load %arg16[%c1_74, %c2_75, %c0_76] : memref<18x18x128xf32, #tpu.memory_space<vmem>>, vector<16x16x128xf32>
    %111 = vector.extract_strided_slice %80 {offsets = [5, 0], sizes = [1, 128], strides = [1, 1]} : vector<9x128xf32> to vector<1x128xf32>
    %112 = vector.shape_cast %111 : vector<1x128xf32> to vector<1x1x128xf32>
    %113 = vector.broadcast %112 : vector<1x1x128xf32> to vector<16x16x128xf32>
    %114 = arith.mulf %110, %113 : vector<16x16x128xf32>
    %115 = arith.addf %109, %114 : vector<16x16x128xf32>
    %c2_77 = arith.constant 2 : index
    %c0_78 = arith.constant 0 : index
    %c0_79 = arith.constant 0 : index
    %116 = vector.load %arg16[%c2_77, %c0_78, %c0_79] : memref<18x18x128xf32, #tpu.memory_space<vmem>>, vector<16x16x128xf32>
    %117 = vector.extract_strided_slice %80 {offsets = [6, 0], sizes = [1, 128], strides = [1, 1]} : vector<9x128xf32> to vector<1x128xf32>
    %118 = vector.shape_cast %117 : vector<1x128xf32> to vector<1x1x128xf32>
    %119 = vector.broadcast %118 : vector<1x1x128xf32> to vector<16x16x128xf32>
    %120 = arith.mulf %116, %119 : vector<16x16x128xf32>
    %121 = arith.addf %115, %120 : vector<16x16x128xf32>
    %c2_80 = arith.constant 2 : index
    %c1_81 = arith.constant 1 : index
    %c0_82 = arith.constant 0 : index
    %122 = vector.load %arg16[%c2_80, %c1_81, %c0_82] : memref<18x18x128xf32, #tpu.memory_space<vmem>>, vector<16x16x128xf32>
    %123 = vector.extract_strided_slice %80 {offsets = [7, 0], sizes = [1, 128], strides = [1, 1]} : vector<9x128xf32> to vector<1x128xf32>
    %124 = vector.shape_cast %123 : vector<1x128xf32> to vector<1x1x128xf32>
    %125 = vector.broadcast %124 : vector<1x1x128xf32> to vector<16x16x128xf32>
    %126 = arith.mulf %122, %125 : vector<16x16x128xf32>
    %127 = arith.addf %121, %126 : vector<16x16x128xf32>
    %c2_83 = arith.constant 2 : index
    %c2_84 = arith.constant 2 : index
    %c0_85 = arith.constant 0 : index
    %128 = vector.load %arg16[%c2_83, %c2_84, %c0_85] : memref<18x18x128xf32, #tpu.memory_space<vmem>>, vector<16x16x128xf32>
    %129 = vector.extract_strided_slice %80 {offsets = [8, 0], sizes = [1, 128], strides = [1, 1]} : vector<9x128xf32> to vector<1x128xf32>
    %130 = vector.shape_cast %129 : vector<1x128xf32> to vector<1x1x128xf32>
    %131 = vector.broadcast %130 : vector<1x1x128xf32> to vector<16x16x128xf32>
    %132 = arith.mulf %128, %131 : vector<16x16x128xf32>
    %133 = arith.addf %127, %132 : vector<16x16x128xf32>
    %c0_86 = arith.constant 0 : index
    %c0_87 = arith.constant 0 : index
    %134 = vector.load %arg7[%c0_86, %c0_87] : memref<1x128xf32, #tpu.memory_space<vmem>>, vector<1x128xf32>
    %135 = vector.shape_cast %134 : vector<1x128xf32> to vector<1x1x128xf32>
    %136 = vector.broadcast %135 : vector<1x1x128xf32> to vector<16x16x128xf32>
    %137 = arith.addf %133, %136 : vector<16x16x128xf32>
    %138 = vector.shape_cast %137 : vector<16x16x128xf32> to vector<256x128xf32>
    %139 = arith.truncf %138 : vector<256x128xf32> to vector<256x128xbf16>
    %c0_88 = arith.constant 0 : index
    %c0_89 = arith.constant 0 : index
    %140 = vector.load %arg8[%c0_88, %c0_89] : memref<128x128xbf16, #tpu.memory_space<vmem>>, vector<128x128xbf16>
    %cst_90 = arith.constant dense<0.000000e+00> : vector<256x128xf32>
    %141 = tpu.matmul %139, %140, %cst_90 {dimension_numbers = #tpu.dot_dimension_numbers<[1], [0], [0], [1], [0, 0, 1, 1], [], []>} : vector<256x128xbf16>, vector<128x128xbf16>, vector<256x128xf32> -> vector<256x128xf32>
    %c0_91 = arith.constant 0 : index
    %c0_92 = arith.constant 0 : index
    %142 = vector.load %arg9[%c0_91, %c0_92] : memref<1x128xf32, #tpu.memory_space<vmem>>, vector<1x128xf32>
    %143 = vector.broadcast %142 : vector<1x128xf32> to vector<256x128xf32>
    %144 = arith.addf %141, %143 : vector<256x128xf32>
    %cst_93 = arith.constant 0.000000e+00 : f32
    %145 = vector.broadcast %cst_93 : f32 to vector<256x128xf32>
    %146 = arith.maximumf %144, %145 : vector<256x128xf32>
    %147 = vector.shape_cast %146 : vector<256x128xf32> to vector<16x16x128xf32>
    %c1_94 = arith.constant 1 : index
    %c1_95 = arith.constant 1 : index
    %c0_96 = arith.constant 0 : index
    %148 = vector.load %arg16[%c1_94, %c1_95, %c0_96] : memref<18x18x128xf32, #tpu.memory_space<vmem>>, vector<16x16x128xf32>
    tpu.vector_store %arg16[%c1_94, %c1_95, %c0_96], %147 {strides = array<i32>} : memref<18x18x128xf32, #tpu.memory_space<vmem>>, vector<16x16x128xf32>,
    %c0_97 = arith.constant 0 : index
    %c0_98 = arith.constant 0 : index
    %149 = vector.load %arg10[%c0_97, %c0_98] : memref<9x128xf32, #tpu.memory_space<vmem>>, vector<9x128xf32>
    %c0_99 = arith.constant 0 : index
    %c0_100 = arith.constant 0 : index
    %c0_101 = arith.constant 0 : index
    %150 = tpu.strided_load %arg16[%c0_99, %c0_100, %c0_101] {strides = array<i32: 2, 2, 1>} : memref<18x18x128xf32, #tpu.memory_space<vmem>>, vector<8x8x128xf32>
    %151 = vector.extract_strided_slice %149 {offsets = [0, 0], sizes = [1, 128], strides = [1, 1]} : vector<9x128xf32> to vector<1x128xf32>
    %152 = vector.shape_cast %151 : vector<1x128xf32> to vector<1x1x128xf32>
    %153 = vector.broadcast %152 : vector<1x1x128xf32> to vector<8x8x128xf32>
    %154 = arith.mulf %150, %153 : vector<8x8x128xf32>
    %c0_102 = arith.constant 0 : index
    %c1_103 = arith.constant 1 : index
    %c0_104 = arith.constant 0 : index
    %155 = tpu.strided_load %arg16[%c0_102, %c1_103, %c0_104] {strides = array<i32: 2, 2, 1>} : memref<18x18x128xf32, #tpu.memory_space<vmem>>, vector<8x8x128xf32>
    %156 = vector.extract_strided_slice %149 {offsets = [1, 0], sizes = [1, 128], strides = [1, 1]} : vector<9x128xf32> to vector<1x128xf32>
    %157 = vector.shape_cast %156 : vector<1x128xf32> to vector<1x1x128xf32>
    %158 = vector.broadcast %157 : vector<1x1x128xf32> to vector<8x8x128xf32>
    %159 = arith.mulf %155, %158 : vector<8x8x128xf32>
    %160 = arith.addf %154, %159 : vector<8x8x128xf32>
    %c0_105 = arith.constant 0 : index
    %c2_106 = arith.constant 2 : index
    %c0_107 = arith.constant 0 : index
    %161 = tpu.strided_load %arg16[%c0_105, %c2_106, %c0_107] {strides = array<i32: 2, 2, 1>} : memref<18x18x128xf32, #tpu.memory_space<vmem>>, vector<8x8x128xf32>
    %162 = vector.extract_strided_slice %149 {offsets = [2, 0], sizes = [1, 128], strides = [1, 1]} : vector<9x128xf32> to vector<1x128xf32>
    %163 = vector.shape_cast %162 : vector<1x128xf32> to vector<1x1x128xf32>
    %164 = vector.broadcast %163 : vector<1x1x128xf32> to vector<8x8x128xf32>
    %165 = arith.mulf %161, %164 : vector<8x8x128xf32>
    %166 = arith.addf %160, %165 : vector<8x8x128xf32>
    %c1_108 = arith.constant 1 : index
    %c0_109 = arith.constant 0 : index
    %c0_110 = arith.constant 0 : index
    %167 = tpu.strided_load %arg16[%c1_108, %c0_109, %c0_110] {strides = array<i32: 2, 2, 1>} : memref<18x18x128xf32, #tpu.memory_space<vmem>>, vector<8x8x128xf32>
    %168 = vector.extract_strided_slice %149 {offsets = [3, 0], sizes = [1, 128], strides = [1, 1]} : vector<9x128xf32> to vector<1x128xf32>
    %169 = vector.shape_cast %168 : vector<1x128xf32> to vector<1x1x128xf32>
    %170 = vector.broadcast %169 : vector<1x1x128xf32> to vector<8x8x128xf32>
    %171 = arith.mulf %167, %170 : vector<8x8x128xf32>
    %172 = arith.addf %166, %171 : vector<8x8x128xf32>
    %c1_111 = arith.constant 1 : index
    %c1_112 = arith.constant 1 : index
    %c0_113 = arith.constant 0 : index
    %173 = tpu.strided_load %arg16[%c1_111, %c1_112, %c0_113] {strides = array<i32: 2, 2, 1>} : memref<18x18x128xf32, #tpu.memory_space<vmem>>, vector<8x8x128xf32>
    %174 = vector.extract_strided_slice %149 {offsets = [4, 0], sizes = [1, 128], strides = [1, 1]} : vector<9x128xf32> to vector<1x128xf32>
    %175 = vector.shape_cast %174 : vector<1x128xf32> to vector<1x1x128xf32>
    %176 = vector.broadcast %175 : vector<1x1x128xf32> to vector<8x8x128xf32>
    %177 = arith.mulf %173, %176 : vector<8x8x128xf32>
    %178 = arith.addf %172, %177 : vector<8x8x128xf32>
    %c1_114 = arith.constant 1 : index
    %c2_115 = arith.constant 2 : index
    %c0_116 = arith.constant 0 : index
    %179 = tpu.strided_load %arg16[%c1_114, %c2_115, %c0_116] {strides = array<i32: 2, 2, 1>} : memref<18x18x128xf32, #tpu.memory_space<vmem>>, vector<8x8x128xf32>
    %180 = vector.extract_strided_slice %149 {offsets = [5, 0], sizes = [1, 128], strides = [1, 1]} : vector<9x128xf32> to vector<1x128xf32>
    %181 = vector.shape_cast %180 : vector<1x128xf32> to vector<1x1x128xf32>
    %182 = vector.broadcast %181 : vector<1x1x128xf32> to vector<8x8x128xf32>
    %183 = arith.mulf %179, %182 : vector<8x8x128xf32>
    %184 = arith.addf %178, %183 : vector<8x8x128xf32>
    %c2_117 = arith.constant 2 : index
    %c0_118 = arith.constant 0 : index
    %c0_119 = arith.constant 0 : index
    %185 = tpu.strided_load %arg16[%c2_117, %c0_118, %c0_119] {strides = array<i32: 2, 2, 1>} : memref<18x18x128xf32, #tpu.memory_space<vmem>>, vector<8x8x128xf32>
    %186 = vector.extract_strided_slice %149 {offsets = [6, 0], sizes = [1, 128], strides = [1, 1]} : vector<9x128xf32> to vector<1x128xf32>
    %187 = vector.shape_cast %186 : vector<1x128xf32> to vector<1x1x128xf32>
    %188 = vector.broadcast %187 : vector<1x1x128xf32> to vector<8x8x128xf32>
    %189 = arith.mulf %185, %188 : vector<8x8x128xf32>
    %190 = arith.addf %184, %189 : vector<8x8x128xf32>
    %c2_120 = arith.constant 2 : index
    %c1_121 = arith.constant 1 : index
    %c0_122 = arith.constant 0 : index
    %191 = tpu.strided_load %arg16[%c2_120, %c1_121, %c0_122] {strides = array<i32: 2, 2, 1>} : memref<18x18x128xf32, #tpu.memory_space<vmem>>, vector<8x8x128xf32>
    %192 = vector.extract_strided_slice %149 {offsets = [7, 0], sizes = [1, 128], strides = [1, 1]} : vector<9x128xf32> to vector<1x128xf32>
    %193 = vector.shape_cast %192 : vector<1x128xf32> to vector<1x1x128xf32>
    %194 = vector.broadcast %193 : vector<1x1x128xf32> to vector<8x8x128xf32>
    %195 = arith.mulf %191, %194 : vector<8x8x128xf32>
    %196 = arith.addf %190, %195 : vector<8x8x128xf32>
    %c2_123 = arith.constant 2 : index
    %c2_124 = arith.constant 2 : index
    %c0_125 = arith.constant 0 : index
    %197 = tpu.strided_load %arg16[%c2_123, %c2_124, %c0_125] {strides = array<i32: 2, 2, 1>} : memref<18x18x128xf32, #tpu.memory_space<vmem>>, vector<8x8x128xf32>
    %198 = vector.extract_strided_slice %149 {offsets = [8, 0], sizes = [1, 128], strides = [1, 1]} : vector<9x128xf32> to vector<1x128xf32>
    %199 = vector.shape_cast %198 : vector<1x128xf32> to vector<1x1x128xf32>
    %200 = vector.broadcast %199 : vector<1x1x128xf32> to vector<8x8x128xf32>
    %201 = arith.mulf %197, %200 : vector<8x8x128xf32>
    %202 = arith.addf %196, %201 : vector<8x8x128xf32>
    %c0_126 = arith.constant 0 : index
    %c0_127 = arith.constant 0 : index
    %203 = vector.load %arg11[%c0_126, %c0_127] : memref<1x128xf32, #tpu.memory_space<vmem>>, vector<1x128xf32>
    %204 = vector.shape_cast %203 : vector<1x128xf32> to vector<1x1x128xf32>
    %205 = vector.broadcast %204 : vector<1x1x128xf32> to vector<8x8x128xf32>
    %206 = arith.addf %202, %205 : vector<8x8x128xf32>
    %207 = vector.shape_cast %206 : vector<8x8x128xf32> to vector<64x128xf32>
    %208 = arith.truncf %207 : vector<64x128xf32> to vector<64x128xbf16>
    %c0_128 = arith.constant 0 : index
    %c0_129 = arith.constant 0 : index
    %c0_130 = arith.constant 0 : index
    %c0_131 = arith.constant 0 : index
    %209 = vector.load %arg14[%c0_128, %c0_129, %c0_130, %c0_131] : memref<1x8x8x128xf32, #tpu.memory_space<vmem>>, vector<1x8x8x128xf32>
    %210 = vector.shape_cast %209 : vector<1x8x8x128xf32> to vector<8x8x128xf32>
    %211 = vector.shape_cast %210 : vector<8x8x128xf32> to vector<64x128xf32>
    %212 = arith.truncf %211 : vector<64x128xf32> to vector<64x128xbf16>
    %213 = tpu.concatenate %208, %212 in 1 : vector<64x128xbf16>, vector<64x128xbf16> -> vector<64x256xbf16>
    %c0_132 = arith.constant 0 : index
    %c0_133 = arith.constant 0 : index
    %214 = vector.load %arg12[%c0_132, %c0_133] : memref<256x128xbf16, #tpu.memory_space<vmem>>, vector<256x128xbf16>
    %cst_134 = arith.constant dense<0.000000e+00> : vector<64x128xf32>
    %215 = tpu.matmul %213, %214, %cst_134 {dimension_numbers = #tpu.dot_dimension_numbers<[1], [0], [0], [1], [0, 0, 1, 1], [], []>} : vector<64x256xbf16>, vector<256x128xbf16>, vector<64x128xf32> -> vector<64x128xf32>
    %c0_135 = arith.constant 0 : index
    %c0_136 = arith.constant 0 : index
    %216 = vector.load %arg13[%c0_135, %c0_136] : memref<1x128xf32, #tpu.memory_space<vmem>>, vector<1x128xf32>
    %217 = vector.broadcast %216 : vector<1x128xf32> to vector<64x128xf32>
    %218 = arith.addf %215, %217 : vector<64x128xf32>
    %c0_137 = arith.constant 0 : index
    %c0_138 = arith.constant 0 : index
    %c0_139 = arith.constant 0 : index
    %219 = vector.load %arg15[%c0_137, %c0_138, %c0_139] : memref<1x64x128xf32, #tpu.memory_space<vmem>>, vector<1x64x128xf32>
    %220 = vector.shape_cast %219 : vector<1x64x128xf32> to vector<64x128xf32>
    %221 = vector.shape_cast %218 : vector<64x128xf32> to vector<1x64x128xf32>
    tpu.vector_store %arg15[%c0_137, %c0_138, %c0_139], %221 {strides = array<i32>} : memref<1x64x128xf32, #tpu.memory_space<vmem>>, vector<1x64x128xf32>,
    return
  }
  func.func @transform_0(%arg0: i32) -> (i32, i32, i32, i32) {
    %c0_i32 = arith.constant 0 : i32
    %c0_i32_0 = arith.constant 0 : i32
    %c0_i32_1 = arith.constant 0 : i32
    %c0_i32_2 = arith.constant 0 : i32
    return %arg0, %c0_i32, %c0_i32_0, %c0_i32_1 : i32, i32, i32, i32
  }
  func.func @transform_1(%arg0: i32) -> (i32, i32) {
    %c0_i32 = arith.constant 0 : i32
    %c0_i32_0 = arith.constant 0 : i32
    %c0_i32_1 = arith.constant 0 : i32
    return %c0_i32, %c0_i32_0 : i32, i32
  }
  func.func @transform_2(%arg0: i32) -> (i32, i32) {
    %c0_i32 = arith.constant 0 : i32
    %c0_i32_0 = arith.constant 0 : i32
    %c0_i32_1 = arith.constant 0 : i32
    return %c0_i32, %c0_i32_0 : i32, i32
  }
  func.func @transform_3(%arg0: i32) -> (i32, i32) {
    %c0_i32 = arith.constant 0 : i32
    %c0_i32_0 = arith.constant 0 : i32
    %c0_i32_1 = arith.constant 0 : i32
    return %c0_i32, %c0_i32_0 : i32, i32
  }
  func.func @transform_4(%arg0: i32) -> (i32, i32) {
    %c0_i32 = arith.constant 0 : i32
    %c0_i32_0 = arith.constant 0 : i32
    %c0_i32_1 = arith.constant 0 : i32
    return %c0_i32, %c0_i32_0 : i32, i32
  }
  func.func @transform_5(%arg0: i32) -> (i32, i32) {
    %c0_i32 = arith.constant 0 : i32
    %c0_i32_0 = arith.constant 0 : i32
    %c0_i32_1 = arith.constant 0 : i32
    return %c0_i32, %c0_i32_0 : i32, i32
  }
  func.func @transform_6(%arg0: i32) -> (i32, i32) {
    %c0_i32 = arith.constant 0 : i32
    %c0_i32_0 = arith.constant 0 : i32
    %c0_i32_1 = arith.constant 0 : i32
    return %c0_i32, %c0_i32_0 : i32, i32
  }
  func.func @transform_7(%arg0: i32) -> (i32, i32) {
    %c0_i32 = arith.constant 0 : i32
    %c0_i32_0 = arith.constant 0 : i32
    %c0_i32_1 = arith.constant 0 : i32
    return %c0_i32, %c0_i32_0 : i32, i32
  }
  func.func @transform_8(%arg0: i32) -> (i32, i32) {
    %c0_i32 = arith.constant 0 : i32
    %c0_i32_0 = arith.constant 0 : i32
    %c0_i32_1 = arith.constant 0 : i32
    return %c0_i32, %c0_i32_0 : i32, i32
  }
  func.func @transform_9(%arg0: i32) -> (i32, i32) {
    %c0_i32 = arith.constant 0 : i32
    %c0_i32_0 = arith.constant 0 : i32
    %c0_i32_1 = arith.constant 0 : i32
    return %c0_i32, %c0_i32_0 : i32, i32
  }
  func.func @transform_10(%arg0: i32) -> (i32, i32) {
    %c0_i32 = arith.constant 0 : i32
    %c0_i32_0 = arith.constant 0 : i32
    %c0_i32_1 = arith.constant 0 : i32
    return %c0_i32, %c0_i32_0 : i32, i32
  }
  func.func @transform_11(%arg0: i32) -> (i32, i32) {
    %c0_i32 = arith.constant 0 : i32
    %c0_i32_0 = arith.constant 0 : i32
    %c0_i32_1 = arith.constant 0 : i32
    return %c0_i32, %c0_i32_0 : i32, i32
  }
  func.func @transform_12(%arg0: i32) -> (i32, i32) {
    %c0_i32 = arith.constant 0 : i32
    %c0_i32_0 = arith.constant 0 : i32
    %c0_i32_1 = arith.constant 0 : i32
    return %c0_i32, %c0_i32_0 : i32, i32
  }
  func.func @transform_13(%arg0: i32) -> (i32, i32, i32, i32) {
    %c0_i32 = arith.constant 0 : i32
    %c0_i32_0 = arith.constant 0 : i32
    %c0_i32_1 = arith.constant 0 : i32
    %c0_i32_2 = arith.constant 0 : i32
    return %arg0, %c0_i32, %c0_i32_0, %c0_i32_1 : i32, i32, i32, i32
  }
  func.func @transform_14(%arg0: i32) -> (i32, i32, i32) {
    %c0_i32 = arith.constant 0 : i32
    %c0_i32_0 = arith.constant 0 : i32
    %c0_i32_1 = arith.constant 0 : i32
    return %arg0, %c0_i32, %c0_i32_0 : i32, i32, i32
  }
}

</mosaic_0001>

<llo_original>
// kernel: tpu_custom_call.1
$region0: #{tpu_custom_call.1}
  #allocation0 [shape = 'u32[]', space=smem, size = 0x4, offset = 0x4, fixed_abs, tag = 'smem constant byte address 0x4 - core index']
  #allocation1 [shape = 'u32[144,128]{1,0:T(1,128)}', space=vmem, size = 0x12000, scoped, tag = 'internal scratch']
  #allocation2 [shape = 'f32[18,18,128]{2,1,0:T(8,128)}', space=vmem, size = 0x36000, scoped, tag = 'scratch operand']
  %s0 = inlined_call_operand.hbm [shape: f32[2,16,16,128], index: 0, kind: input, shape index: {}]
  %s1 = inlined_call_operand.hbm [shape: f32[9,128], index: 1, kind: input, shape index: {}]
  %s2 = inlined_call_operand.vmem [shape: f32[1,128], index: 2, kind: input, shape index: {}]
  %s3 = inlined_call_operand.hbm [shape: bf16[128,128], index: 3, kind: input, shape index: {}]
  %s4 = inlined_call_operand.vmem [shape: f32[1,128], index: 4, kind: input, shape index: {}]
  %s5 = inlined_call_operand.vmem [shape: f32[9,128], index: 5, kind: input, shape index: {}]
  %s6 = inlined_call_operand.hbm [shape: f32[1,128], index: 6, kind: input, shape index: {}]
  %s7 = inlined_call_operand.hbm [shape: bf16[128,128], index: 7, kind: input, shape index: {}]
  %s8 = inlined_call_operand.hbm [shape: f32[1,128], index: 8, kind: input, shape index: {}]
  %s9 = inlined_call_operand.vmem [shape: f32[9,128], index: 9, kind: input, shape index: {}]
  %s10 = inlined_call_operand.vmem [shape: f32[1,128], index: 10, kind: input, shape index: {}]
  %s11 = inlined_call_operand.hbm [shape: bf16[256,128], index: 11, kind: input, shape index: {}]
  %s12 = inlined_call_operand.vmem [shape: f32[1,128], index: 12, kind: input, shape index: {}]
  %s13 = inlined_call_operand.hbm [shape: f32[2,8,8,128], index: 13, kind: input, shape index: {}]
  %s14 = inlined_call_operand.hbm [shape: f32[2,64,128], index: 14, kind: output, shape index: {}]
  %s15 = sld [smem:[#allocation0]]
  $region121: #{tpu_custom_call.1} parent=0
    _
  %s17 = ssub.s32 1, %s15
  %s18 = scalar_select 0, %s17, %s15
  $region1: #{tpu_custom_call.1} parent=0
    #allocation3 [shape = 'u8[262144]{0}', space=vmem, size = 0x40000, scoped, tag = 'input window, operand 0']
    #allocation4 [shape = 's32[2]{0}', space=sflag, size = 0x8, scoped, tag = 'scoped memory for tpu_custom_call.1']
    #allocation5 [shape = 's32[2]{0}', space=sflag, size = 0x8, scoped, tag = 'scoped memory for tpu_custom_call.1']
    #allocation6 [shape = 'u8[8192]{0}', space=vmem, size = 0x2000, scoped, tag = 'input window, operand 1, single buffered']
    #allocation7 [shape = 's32[1]{0}', space=sflag, size = 0x4, scoped, tag = 'scoped memory for tpu_custom_call.1']
    #allocation8 [shape = 'u8[32768]{0}', space=vmem, size = 0x8000, scoped, tag = 'input window, operand 3, single buffered']
    #allocation9 [shape = 'u8[512]{0}', space=vmem, size = 0x400, scoped, tag = 'input window, operand 6, single buffered']
    #allocation10 [shape = 's32[1]{0}', space=sflag, size = 0x4, scoped, tag = 'scoped memory for tpu_custom_call.1']
    #allocation11 [shape = 'u8[32768]{0}', space=vmem, size = 0x8000, scoped, tag = 'input window, operand 7, single buffered']
    #allocation12 [shape = 'u8[512]{0}', space=vmem, size = 0x400, scoped, tag = 'input window, operand 8, single buffered']
    #allocation13 [shape = 's32[1]{0}', space=sflag, size = 0x4, scoped, tag = 'scoped memory for tpu_custom_call.1']
    #allocation14 [shape = 'u8[65536]{0}', space=vmem, size = 0x10000, scoped, tag = 'input window, operand 11, single buffered']
    #allocation15 [shape = 'u8[65536]{0}', space=vmem, size = 0x10000, scoped, tag = 'input window, operand 13']
    #allocation16 [shape = 's32[2]{0}', space=sflag, size = 0x8, scoped, tag = 'scoped memory for tpu_custom_call.1']
    #allocation17 [shape = 'u8[65536]{0}', space=vmem, size = 0x10000, scoped, tag = 'output window, operand 0']
    %19 = vsyncpa [#allocation4], 0
    %s20 = scalar_lea.sflag [#allocation4], 1
    %21 = vsyncpa %s20, 0
    %22 = vsyncpa [#allocation7], 0
    %23 = vsyncpa [#allocation10], 0
    %24 = vsyncpa [#allocation13], 0
    %25 = vsyncpa [#allocation16], 0
    %s26 = scalar_lea.sflag [#allocation16], 1
    %27 = vsyncpa %s26, 0
    %28 = vsyncpa [#allocation5], 0
    %s29 = scalar_lea.sflag [#allocation5], 1
    %30 = vsyncpa %s29, 0
    loop: start=0, step=1, limit=4
    $region2: #{tpu_custom_call.1} parent=1 // loop_pre_header
      _
    $region3: #{tpu_custom_call.1} parent=1 // loop_header
      %s32 = sphi 0, %s36
      %p33 = scmp.ge.s32.totalorder %s32, 4
      %s42 = sphi 0, %s44
      %s45 = sphi 0, %s42
      %s46 = sphi 0, %s45
      %s62 = sphi 0, %s46
      %s66 = sphi 0, %s66
      %s68 = sphi 0, %s66
      %s69 = sphi 0, %s68
      %s83 = sphi 0, %s69
      %s87 = sphi 0, %s87
      %s89 = sphi 0, %s87
      %s90 = sphi 0, %s89
      %s104 = sphi 0, %s90
      %s108 = sphi 0, %s108
      %s110 = sphi 0, %s108
      %s111 = sphi 0, %s110
      %s125 = sphi 0, %s111
      %s129 = sphi 0, %s129
      %s131 = sphi 0, %s129
      %s132 = sphi 0, %s131
      %s146 = sphi 0, %s132
      %s150 = sphi 0, %s150
      %s152 = sphi 0, %s150
      %s153 = sphi 0, %s152
      %s167 = sphi 0, %s153
      %s171 = sphi 0, %s171
      %s173 = sphi 0, %s171
      %s174 = sphi 0, %s173
      %s188 = sphi 0, %s174
      %s192 = sphi 0, %s192
      %s194 = sphi 0, %s192
      %s195 = sphi 0, %s194
      %s209 = sphi 0, %s195
      %s213 = sphi 0, %s213
      %s215 = sphi 0, %s213
      %s216 = sphi 0, %s215
      %s230 = sphi 0, %s216
      %s234 = sphi 0, %s234
      %s236 = sphi 0, %s234
      %s237 = sphi 0, %s236
      %s251 = sphi 0, %s237
      %s255 = sphi 0, %s255
      %s257 = sphi 0, %s255
      %s258 = sphi 0, %s257
      %s272 = sphi 0, %s258
      %s276 = sphi 0, %s276
      %s278 = sphi 0, %s276
      %s279 = sphi 0, %s278
      %s293 = sphi 0, %s279
      %s297 = sphi 0, %s297
      %s299 = sphi 0, %s297
      %s300 = sphi 0, %s299
      %s314 = sphi 0, %s300
      %s320 = sphi 0, %s322
      %s323 = sphi 0, %s320
      %s324 = sphi 0, %s323
      %s340 = sphi 0, %s324
      %s346 = sphi 0, %s348
      %s349 = sphi 0, %s346
      %s350 = sphi 0, %s349
      %s366 = sphi 0, %s350
    $region4: #{tpu_custom_call.1} parent=1 // loop_header_branch
      %35 = sbr.rel (%p33) target = $region8
    $region5: #{tpu_custom_call.1} parent=1 // loop_body
      %s37 = ssub.s32 %s32, 1
      %s38 = ssub.s32 %s32, 2
      %s39 = sadd.s32 %s32, 1
      %s40 = ssub.s32 %s32, %s39
      %p41 = scmp.eq.s32.totalorder %s40, 0
      %s43 = sadd.s32 %s42, 1
      %s44 = scalar_select %p41, %s42, %s43
      %p47 = pneg %p41
      %p48 = scmp.eq.s32.totalorder %s32, 1
      %p49 = por %p47, %p48
      %p50 = scmp.ne.s32.totalorder %s42, %s45
      %p51 = scmp.eq.s32.totalorder %s32, 0
      %p52 = por %p50, %p51
      %p53 = scmp.ne.s32.totalorder %s42, %s45
      %p54 = scmp.eq.s32.totalorder %s37, 1
      %p55 = por %p53, %p54
      %p56 = scmp.ne.s32.totalorder %s45, %s46
      %p57 = scmp.eq.s32.totalorder %s37, 0
      %p58 = por %p56, %p57
      %p59 = scmp.ne.s32.totalorder %s45, %s46
      %p60 = scmp.eq.s32.totalorder %s38, 1
      %p61 = por %p59, %p60
      %p63 = scmp.ne.s32.totalorder %s46, %s62
      %p64 = scmp.eq.s32.totalorder %s38, 0
      %p65 = por %p63, %p64
      %s67 = sadd.s32 %s66, 1
      %p70 = scmp.eq.s32.totalorder %s32, 1
      %p71 = scmp.ne.s32.totalorder %s66, %s68
      %p72 = scmp.eq.s32.totalorder %s32, 0
      %p73 = por %p71, %p72
      %p74 = scmp.ne.s32.totalorder %s66, %s68
      %p75 = scmp.eq.s32.totalorder %s37, 1
      %p76 = por %p74, %p75
      %p77 = scmp.ne.s32.totalorder %s68, %s69
      %p78 = scmp.eq.s32.totalorder %s37, 0
      %p79 = por %p77, %p78
      %p80 = scmp.ne.s32.totalorder %s68, %s69
      %p81 = scmp.eq.s32.totalorder %s38, 1
      %p82 = por %p80, %p81
      %p84 = scmp.ne.s32.totalorder %s69, %s83
      %p85 = scmp.eq.s32.totalorder %s38, 0
      %p86 = por %p84, %p85
      %s88 = sadd.s32 %s87, 1
      %p91 = scmp.eq.s32.totalorder %s32, 1
      %p92 = scmp.ne.s32.totalorder %s87, %s89
      %p93 = scmp.eq.s32.totalorder %s32, 0
      %p94 = por %p92, %p93
      %p95 = scmp.ne.s32.totalorder %s87, %s89
      %p96 = scmp.eq.s32.totalorder %s37, 1
      %p97 = por %p95, %p96
      %p98 = scmp.ne.s32.totalorder %s89, %s90
      %p99 = scmp.eq.s32.totalorder %s37, 0
      %p100 = por %p98, %p99
      %p101 = scmp.ne.s32.totalorder %s89, %s90
      %p102 = scmp.eq.s32.totalorder %s38, 1
      %p103 = por %p101, %p102
      %p105 = scmp.ne.s32.totalorder %s90, %s104
      %p106 = scmp.eq.s32.totalorder %s38, 0
      %p107 = por %p105, %p106
      %s109 = sadd.s32 %s108, 1
      %p112 = scmp.eq.s32.totalorder %s32, 1
      %p113 = scmp.ne.s32.totalorder %s108, %s110
      %p114 = scmp.eq.s32.totalorder %s32, 0
      %p115 = por %p113, %p114
      %p116 = scmp.ne.s32.totalorder %s108, %s110
      %p117 = scmp.eq.s32.totalorder %s37, 1
      %p118 = por %p116, %p117
      %p119 = scmp.ne.s32.totalorder %s110, %s111
      %p120 = scmp.eq.s32.totalorder %s37, 0
      %p121 = por %p119, %p120
      %p122 = scmp.ne.s32.totalorder %s110, %s111
      %p123 = scmp.eq.s32.totalorder %s38, 1
      %p124 = por %p122, %p123
      %p126 = scmp.ne.s32.totalorder %s111, %s125
      %p127 = scmp.eq.s32.totalorder %s38, 0
      %p128 = por %p126, %p127
      %s130 = sadd.s32 %s129, 1
      %p133 = scmp.eq.s32.totalorder %s32, 1
      %p134 = scmp.ne.s32.totalorder %s129, %s131
      %p135 = scmp.eq.s32.totalorder %s32, 0
      %p136 = por %p134, %p135
      %p137 = scmp.ne.s32.totalorder %s129, %s131
      %p138 = scmp.eq.s32.totalorder %s37, 1
      %p139 = por %p137, %p138
      %p140 = scmp.ne.s32.totalorder %s131, %s132
      %p141 = scmp.eq.s32.totalorder %s37, 0
      %p142 = por %p140, %p141
      %p143 = scmp.ne.s32.totalorder %s131, %s132
      %p144 = scmp.eq.s32.totalorder %s38, 1
      %p145 = por %p143, %p144
      %p147 = scmp.ne.s32.totalorder %s132, %s146
      %p148 = scmp.eq.s32.totalorder %s38, 0
      %p149 = por %p147, %p148
      %s151 = sadd.s32 %s150, 1
      %p154 = scmp.eq.s32.totalorder %s32, 1
      %p155 = scmp.ne.s32.totalorder %s150, %s152
      %p156 = scmp.eq.s32.totalorder %s32, 0
      %p157 = por %p155, %p156
      %p158 = scmp.ne.s32.totalorder %s150, %s152
      %p159 = scmp.eq.s32.totalorder %s37, 1
      %p160 = por %p158, %p159
      %p161 = scmp.ne.s32.totalorder %s152, %s153
      %p162 = scmp.eq.s32.totalorder %s37, 0
      %p163 = por %p161, %p162
      %p164 = scmp.ne.s32.totalorder %s152, %s153
      %p165 = scmp.eq.s32.totalorder %s38, 1
      %p166 = por %p164, %p165
      %p168 = scmp.ne.s32.totalorder %s153, %s167
      %p169 = scmp.eq.s32.totalorder %s38, 0
      %p170 = por %p168, %p169
      %s172 = sadd.s32 %s171, 1
      %p175 = scmp.eq.s32.totalorder %s32, 1
      %p176 = scmp.ne.s32.totalorder %s171, %s173
      %p177 = scmp.eq.s32.totalorder %s32, 0
      %p178 = por %p176, %p177
      %p179 = scmp.ne.s32.totalorder %s171, %s173
      %p180 = scmp.eq.s32.totalorder %s37, 1
      %p181 = por %p179, %p180
      %p182 = scmp.ne.s32.totalorder %s173, %s174
      %p183 = scmp.eq.s32.totalorder %s37, 0
      %p184 = por %p182, %p183
      %p185 = scmp.ne.s32.totalorder %s173, %s174
      %p186 = scmp.eq.s32.totalorder %s38, 1
      %p187 = por %p185, %p186
      %p189 = scmp.ne.s32.totalorder %s174, %s188
      %p190 = scmp.eq.s32.totalorder %s38, 0
      %p191 = por %p189, %p190
      %s193 = sadd.s32 %s192, 1
      %p196 = scmp.eq.s32.totalorder %s32, 1
      %p197 = scmp.ne.s32.totalorder %s192, %s194
      %p198 = scmp.eq.s32.totalorder %s32, 0
      %p199 = por %p197, %p198
      %p200 = scmp.ne.s32.totalorder %s192, %s194
      %p201 = scmp.eq.s32.totalorder %s37, 1
      %p202 = por %p200, %p201
      %p203 = scmp.ne.s32.totalorder %s194, %s195
      %p204 = scmp.eq.s32.totalorder %s37, 0
      %p205 = por %p203, %p204
      %p206 = scmp.ne.s32.totalorder %s194, %s195
      %p207 = scmp.eq.s32.totalorder %s38, 1
      %p208 = por %p206, %p207
      %p210 = scmp.ne.s32.totalorder %s195, %s209
      %p211 = scmp.eq.s32.totalorder %s38, 0
      %p212 = por %p210, %p211
      %s214 = sadd.s32 %s213, 1
      %p217 = scmp.eq.s32.totalorder %s32, 1
      %p218 = scmp.ne.s32.totalorder %s213, %s215
      %p219 = scmp.eq.s32.totalorder %s32, 0
      %p220 = por %p218, %p219
      %p221 = scmp.ne.s32.totalorder %s213, %s215
      %p222 = scmp.eq.s32.totalorder %s37, 1
      %p223 = por %p221, %p222
      %p224 = scmp.ne.s32.totalorder %s215, %s216
      %p225 = scmp.eq.s32.totalorder %s37, 0
      %p226 = por %p224, %p225
      %p227 = scmp.ne.s32.totalorder %s215, %s216
      %p228 = scmp.eq.s32.totalorder %s38, 1
      %p229 = por %p227, %p228
      %p231 = scmp.ne.s32.totalorder %s216, %s230
      %p232 = scmp.eq.s32.totalorder %s38, 0
      %p233 = por %p231, %p232
      %s235 = sadd.s32 %s234, 1
      %p238 = scmp.eq.s32.totalorder %s32, 1
      %p239 = scmp.ne.s32.totalorder %s234, %s236
      %p240 = scmp.eq.s32.totalorder %s32, 0
      %p241 = por %p239, %p240
      %p242 = scmp.ne.s32.totalorder %s234, %s236
      %p243 = scmp.eq.s32.totalorder %s37, 1
      %p244 = por %p242, %p243
      %p245 = scmp.ne.s32.totalorder %s236, %s237
      %p246 = scmp.eq.s32.totalorder %s37, 0
      %p247 = por %p245, %p246
      %p248 = scmp.ne.s32.totalorder %s236, %s237
      %p249 = scmp.eq.s32.totalorder %s38, 1
      %p250 = por %p248, %p249
      %p252 = scmp.ne.s32.totalorder %s237, %s251
      %p253 = scmp.eq.s32.totalorder %s38, 0
      %p254 = por %p252, %p253
      %s256 = sadd.s32 %s255, 1
      %p259 = scmp.eq.s32.totalorder %s32, 1
      %p260 = scmp.ne.s32.totalorder %s255, %s257
      %p261 = scmp.eq.s32.totalorder %s32, 0
      %p262 = por %p260, %p261
      %p263 = scmp.ne.s32.totalorder %s255, %s257
      %p264 = scmp.eq.s32.totalorder %s37, 1
      %p265 = por %p263, %p264
      %p266 = scmp.ne.s32.totalorder %s257, %s258
      %p267 = scmp.eq.s32.totalorder %s37, 0
      %p268 = por %p266, %p267
      %p269 = scmp.ne.s32.totalorder %s257, %s258
      %p270 = scmp.eq.s32.totalorder %s38, 1
      %p271 = por %p269, %p270
      %p273 = scmp.ne.s32.totalorder %s258, %s272
      %p274 = scmp.eq.s32.totalorder %s38, 0
      %p275 = por %p273, %p274
      %s277 = sadd.s32 %s276, 1
      %p280 = scmp.eq.s32.totalorder %s32, 1
      %p281 = scmp.ne.s32.totalorder %s276, %s278
      %p282 = scmp.eq.s32.totalorder %s32, 0
      %p283 = por %p281, %p282
      %p284 = scmp.ne.s32.totalorder %s276, %s278
      %p285 = scmp.eq.s32.totalorder %s37, 1
      %p286 = por %p284, %p285
      %p287 = scmp.ne.s32.totalorder %s278, %s279
      %p288 = scmp.eq.s32.totalorder %s37, 0
      %p289 = por %p287, %p288
      %p290 = scmp.ne.s32.totalorder %s278, %s279
      %p291 = scmp.eq.s32.totalorder %s38, 1
      %p292 = por %p290, %p291
      %p294 = scmp.ne.s32.totalorder %s279, %s293
      %p295 = scmp.eq.s32.totalorder %s38, 0
      %p296 = por %p294, %p295
      %s298 = sadd.s32 %s297, 1
      %p301 = scmp.eq.s32.totalorder %s32, 1
      %p302 = scmp.ne.s32.totalorder %s297, %s299
      %p303 = scmp.eq.s32.totalorder %s32, 0
      %p304 = por %p302, %p303
      %p305 = scmp.ne.s32.totalorder %s297, %s299
      %p306 = scmp.eq.s32.totalorder %s37, 1
      %p307 = por %p305, %p306
      %p308 = scmp.ne.s32.totalorder %s299, %s300
      %p309 = scmp.eq.s32.totalorder %s37, 0
      %p310 = por %p308, %p309
      %p311 = scmp.ne.s32.totalorder %s299, %s300
      %p312 = scmp.eq.s32.totalorder %s38, 1
      %p313 = por %p311, %p312
      %p315 = scmp.ne.s32.totalorder %s300, %s314
      %p316 = scmp.eq.s32.totalorder %s38, 0
      %p317 = por %p315, %p316
      %s318 = ssub.s32 %s32, %s39
      %p319 = scmp.eq.s32.totalorder %s318, 0
      %s321 = sadd.s32 %s320, 1
      %s322 = scalar_select %p319, %s320, %s321
      %p325 = pneg %p319
      %p326 = scmp.eq.s32.totalorder %s32, 1
      %p327 = por %p325, %p326
      %p328 = scmp.ne.s32.totalorder %s320, %s323
      %p329 = scmp.eq.s32.totalorder %s32, 0
      %p330 = por %p328, %p329
      %p331 = scmp.ne.s32.totalorder %s320, %s323
      %p332 = scmp.eq.s32.totalorder %s37, 1
      %p333 = por %p331, %p332
      %p334 = scmp.ne.s32.totalorder %s323, %s324
      %p335 = scmp.eq.s32.totalorder %s37, 0
      %p336 = por %p334, %p335
      %p337 = scmp.ne.s32.totalorder %s323, %s324
      %p338 = scmp.eq.s32.totalorder %s38, 1
      %p339 = por %p337, %p338
      %p341 = scmp.ne.s32.totalorder %s324, %s340
      %p342 = scmp.eq.s32.totalorder %s38, 0
      %p343 = por %p341, %p342
      %s344 = ssub.s32 %s32, %s39
      %p345 = scmp.eq.s32.totalorder %s344, 0
      %s347 = sadd.s32 %s346, 1
      %s348 = scalar_select %p345, %s346, %s347
      %p351 = pneg %p345
      %p352 = scmp.eq.s32.totalorder %s32, 1
      %p353 = por %p351, %p352
      %p354 = scmp.ne.s32.totalorder %s346, %s349
      %p355 = scmp.eq.s32.totalorder %s32, 0
      %p356 = por %p354, %p355
      %p357 = scmp.ne.s32.totalorder %s346, %s349
      %p358 = scmp.eq.s32.totalorder %s37, 1
      %p359 = por %p357, %p358
      %p360 = scmp.ne.s32.totalorder %s349, %s350
      %p361 = scmp.eq.s32.totalorder %s37, 0
      %p362 = por %p360, %p361
      %p363 = scmp.ne.s32.totalorder %s349, %s350
      %p364 = scmp.eq.s32.totalorder %s38, 1
      %p365 = por %p363, %p364
      %p367 = scmp.ne.s32.totalorder %s350, %s366
      %p368 = scmp.eq.s32.totalorder %s38, 0
      %p369 = por %p367, %p368
      %p370 = scmp.le.s32.totalorder 1, %s32
      %p371 = scmp.lt.s32.totalorder %s32, 3
      %p372 = pnand %p370, %p371
      %p373 = pneg %p372
      // Predicated region
      $region9: #{tpu_custom_call.1} parent=5 // pred_check
        _
      $region10: #{tpu_custom_call.1} parent=5 // pred_check_branch
        %375 = sbr.rel (%p372) target = $region12
      $region11: #{tpu_custom_call.1} parent=5 // pred_region
        %s376 = ssub.s32 %s32, 1
        // Predicated region
        $region13: #{tpu_custom_call.1} parent=11 // pred_check
          %p377 = pneg %p79
        $region14: #{tpu_custom_call.1} parent=11 // pred_check_branch
          %379 = sbr.rel (%p377) target = $region16
        $region15: #{tpu_custom_call.1} parent=11 // pred_region
          %s381 = ssub.s32 256, 256
          %382 = vsyncadd [#allocation7], %s381
          %s383 = sshll.u32 [#allocation6], 4
          %s384 = int_to_ptr.vmem [resolvable:$true] %s383
          %389 = dma.hbm_to_vmem [thread:$0]  %s1, 256, %s384, [#allocation7], 128, 128, 8
        $region16: #{tpu_custom_call.1} parent=11 // pred_fallthru
          _
        // Predicated region
        $region17: #{tpu_custom_call.1} parent=11 // pred_check
          %p390 = pneg %p100
        $region18: #{tpu_custom_call.1} parent=11 // pred_check_branch
          %392 = sbr.rel (%p390) target = $region20
        $region19: #{tpu_custom_call.1} parent=11 // pred_region
          _
        $region20: #{tpu_custom_call.1} parent=11 // pred_fallthru
          _
        // Predicated region
        $region21: #{tpu_custom_call.1} parent=11 // pred_check
          %p393 = pneg %p121
        $region22: #{tpu_custom_call.1} parent=11 // pred_check_branch
          %395 = sbr.rel (%p393) target = $region24
        $region23: #{tpu_custom_call.1} parent=11 // pred_region
          %s397 = ssub.s32 1024, 1024
          %398 = vsyncadd [#allocation7], %s397
          %s399 = sshll.u32 [#allocation8], 4
          %s400 = int_to_ptr.vmem [resolvable:$true] %s399
          %405 = dma.hbm_to_vmem [thread:$0]  %s3, 1024, %s400, [#allocation7], 64, 64, 4
        $region24: #{tpu_custom_call.1} parent=11 // pred_fallthru
          _
        // Predicated region
        $region25: #{tpu_custom_call.1} parent=11 // pred_check
          %p406 = pneg %p142
        $region26: #{tpu_custom_call.1} parent=11 // pred_check_branch
          %408 = sbr.rel (%p406) target = $region28
        $region27: #{tpu_custom_call.1} parent=11 // pred_region
          _
        $region28: #{tpu_custom_call.1} parent=11 // pred_fallthru
          _
        // Predicated region
        $region29: #{tpu_custom_call.1} parent=11 // pred_check
          %p409 = pneg %p163
        $region30: #{tpu_custom_call.1} parent=11 // pred_check_branch
          %411 = sbr.rel (%p409) target = $region32
        $region31: #{tpu_custom_call.1} parent=11 // pred_region
          _
        $region32: #{tpu_custom_call.1} parent=11 // pred_fallthru
          _
        // Predicated region
        $region33: #{tpu_custom_call.1} parent=11 // pred_check
          %p412 = pneg %p184
        $region34: #{tpu_custom_call.1} parent=11 // pred_check_branch
          %414 = sbr.rel (%p412) target = $region36
        $region35: #{tpu_custom_call.1} parent=11 // pred_region
          %s416 = ssub.s32 16, 16
          %417 = vsyncadd [#allocation10], %s416
          %s419 = sshll.u32 [#allocation9], 4
          %s420 = int_to_ptr.vmem [resolvable:$true] %s419
          %422 = dma.hbm_to_vmem [thread:$0]  %s6, 16, %s420, [#allocation10]
        $region36: #{tpu_custom_call.1} parent=11 // pred_fallthru
          _
        // Predicated region
        $region37: #{tpu_custom_call.1} parent=11 // pred_check
          %p423 = pneg %p205
        $region38: #{tpu_custom_call.1} parent=11 // pred_check_branch
          %425 = sbr.rel (%p423) target = $region40
        $region39: #{tpu_custom_call.1} parent=11 // pred_region
          %s427 = ssub.s32 1024, 1024
          %428 = vsyncadd [#allocation10], %s427
          %s429 = sshll.u32 [#allocation11], 4
          %s430 = int_to_ptr.vmem [resolvable:$true] %s429
          %435 = dma.hbm_to_vmem [thread:$0]  %s7, 1024, %s430, [#allocation10], 64, 64, 4
        $region40: #{tpu_custom_call.1} parent=11 // pred_fallthru
          _
        // Predicated region
        $region41: #{tpu_custom_call.1} parent=11 // pred_check
          %p436 = pneg %p226
        $region42: #{tpu_custom_call.1} parent=11 // pred_check_branch
          %438 = sbr.rel (%p436) target = $region44
        $region43: #{tpu_custom_call.1} parent=11 // pred_region
          %s440 = ssub.s32 16, 16
          %441 = vsyncadd [#allocation13], %s440
          %s443 = sshll.u32 [#allocation12], 4
          %s444 = int_to_ptr.vmem [resolvable:$true] %s443
          %446 = dma.hbm_to_vmem [thread:$0]  %s8, 16, %s444, [#allocation13]
        $region44: #{tpu_custom_call.1} parent=11 // pred_fallthru
          _
        // Predicated region
        $region45: #{tpu_custom_call.1} parent=11 // pred_check
          %p447 = pneg %p247
        $region46: #{tpu_custom_call.1} parent=11 // pred_check_branch
          %449 = sbr.rel (%p447) target = $region48
        $region47: #{tpu_custom_call.1} parent=11 // pred_region
          _
        $region48: #{tpu_custom_call.1} parent=11 // pred_fallthru
          _
        // Predicated region
        $region49: #{tpu_custom_call.1} parent=11 // pred_check
          %p450 = pneg %p268
        $region50: #{tpu_custom_call.1} parent=11 // pred_check_branch
          %452 = sbr.rel (%p450) target = $region52
        $region51: #{tpu_custom_call.1} parent=11 // pred_region
          _
        $region52: #{tpu_custom_call.1} parent=11 // pred_fallthru
          _
        // Predicated region
        $region53: #{tpu_custom_call.1} parent=11 // pred_check
          %p453 = pneg %p289
        $region54: #{tpu_custom_call.1} parent=11 // pred_check_branch
          %455 = sbr.rel (%p453) target = $region56
        $region55: #{tpu_custom_call.1} parent=11 // pred_region
          %s457 = ssub.s32 2048, 2048
          %458 = vsyncadd [#allocation13], %s457
          %s459 = sshll.u32 [#allocation14], 4
          %s460 = int_to_ptr.vmem [resolvable:$true] %s459
          %465 = dma.hbm_to_vmem [thread:$0]  %s11, 2048, %s460, [#allocation13], 64, 64, 4
        $region56: #{tpu_custom_call.1} parent=11 // pred_fallthru
          _
        // Predicated region
        $region57: #{tpu_custom_call.1} parent=11 // pred_check
          %p466 = pneg %p310
        $region58: #{tpu_custom_call.1} parent=11 // pred_check_branch
          %468 = sbr.rel (%p466) target = $region60
        $region59: #{tpu_custom_call.1} parent=11 // pred_region
          _
        $region60: #{tpu_custom_call.1} parent=11 // pred_fallthru
          _
      $region12: #{tpu_custom_call.1} parent=5 // pred_fallthru
        _
      %p469 = scmp.lt.s32.totalorder %s32, 2
      // Predicated region
      $region61: #{tpu_custom_call.1} parent=5 // pred_check
        %p470 = pneg %p469
      $region62: #{tpu_custom_call.1} parent=5 // pred_check_branch
        %472 = sbr.rel (%p470) target = $region64
      $region63: #{tpu_custom_call.1} parent=5 // pred_region
        // Predicated region
        $region65: #{tpu_custom_call.1} parent=63 // pred_check
          %p473 = pneg %p52
        $region66: #{tpu_custom_call.1} parent=63 // pred_check_branch
          %475 = sbr.rel (%p473) target = $region68
        $region67: #{tpu_custom_call.1} parent=63 // pred_region
          %s476 = sand.u32 %s42, 1
          %s477 = scalar_lea.sflag [#allocation4], %s476
          %s478 = sand.u32 %s42, 1
          %s479 = smul.addr %s478, 256
          %s480 = scalar_lea.vmem [#allocation3], %s479
          %s482 = ssub.s32 4096, 4096
          %483 = vsyncadd %s477, %s482
          %s484 = smul.addr %s32, 32
          %s485 = smul.addr %s484, 128
          %s486 = scalar_lea.hbm %s0, %s485
          %s487 = sshll.u32 %s480, 4
          %s488 = int_to_ptr.vmem [resolvable:$true] %s487
          %493 = dma.hbm_to_vmem [thread:$0]  %s486, 4096, %s488, %s477, 128, 128, 8
        $region68: #{tpu_custom_call.1} parent=63 // pred_fallthru
          _
        // Predicated region
        $region69: #{tpu_custom_call.1} parent=63 // pred_check
          %p494 = pneg %p330
        $region70: #{tpu_custom_call.1} parent=63 // pred_check_branch
          %496 = sbr.rel (%p494) target = $region72
        $region71: #{tpu_custom_call.1} parent=63 // pred_region
          %s497 = sand.u32 %s320, 1
          %s498 = scalar_lea.sflag [#allocation16], %s497
          %s499 = sand.u32 %s320, 1
          %s500 = smul.addr %s499, 64
          %s501 = scalar_lea.vmem [#allocation15], %s500
          %s503 = ssub.s32 1024, 1024
          %504 = vsyncadd %s498, %s503
          %s505 = smul.addr %s32, 8
          %s506 = smul.addr %s505, 128
          %s507 = scalar_lea.hbm %s13, %s506
          %s508 = sshll.u32 %s501, 4
          %s509 = int_to_ptr.vmem [resolvable:$true] %s508
          %514 = dma.hbm_to_vmem [thread:$0]  %s507, 1024, %s509, %s498, 128, 128, 8
        $region72: #{tpu_custom_call.1} parent=63 // pred_fallthru
          _
      $region64: #{tpu_custom_call.1} parent=5 // pred_fallthru
        _
      %p515 = scmp.le.s32.totalorder 1, %s32
      %p516 = scmp.lt.s32.totalorder %s32, 3
      %p517 = pnand %p515, %p516
      %p518 = pneg %p517
      // Predicated region
      $region73: #{tpu_custom_call.1} parent=5 // pred_check
        _
      $region74: #{tpu_custom_call.1} parent=5 // pred_check_branch
        %520 = sbr.rel (%p517) target = $region76
      $region75: #{tpu_custom_call.1} parent=5 // pred_region
        %s521 = ssub.s32 %s32, 1
        %s522 = sand.u32 %s45, 1
        %s523 = scalar_lea.sflag [#allocation4], %s522
        %s524 = sand.u32 %s45, 1
        %s525 = smul.addr %s524, 256
        %s526 = scalar_lea.vmem [#allocation3], %s525
        // Predicated region
        $region77: #{tpu_custom_call.1} parent=75 // pred_check
          %p527 = pneg %p58
        $region78: #{tpu_custom_call.1} parent=75 // pred_check_branch
          %529 = sbr.rel (%p527) target = $region80
        $region79: #{tpu_custom_call.1} parent=75 // pred_region
          %530 = dma.done %s523, 4096
        $region80: #{tpu_custom_call.1} parent=75 // pred_fallthru
          _
        // Predicated region
        $region81: #{tpu_custom_call.1} parent=75 // pred_check
          %p531 = pneg %p79
        $region82: #{tpu_custom_call.1} parent=75 // pred_check_branch
          %533 = sbr.rel (%p531) target = $region84
        $region83: #{tpu_custom_call.1} parent=75 // pred_region
          %534 = dma.done [#allocation7], 256
        $region84: #{tpu_custom_call.1} parent=75 // pred_fallthru
          _
        // Predicated region
        $region85: #{tpu_custom_call.1} parent=75 // pred_check
          %p535 = pneg %p121
        $region86: #{tpu_custom_call.1} parent=75 // pred_check_branch
          %537 = sbr.rel (%p535) target = $region88
        $region87: #{tpu_custom_call.1} parent=75 // pred_region
          %538 = dma.done [#allocation7], 1024
        $region88: #{tpu_custom_call.1} parent=75 // pred_fallthru
          _
        // Predicated region
        $region89: #{tpu_custom_call.1} parent=75 // pred_check
          %p539 = pneg %p184
        $region90: #{tpu_custom_call.1} parent=75 // pred_check_branch
          %541 = sbr.rel (%p539) target = $region92
        $region91: #{tpu_custom_call.1} parent=75 // pred_region
          %542 = dma.done [#allocation10], 16
        $region92: #{tpu_custom_call.1} parent=75 // pred_fallthru
          _
        // Predicated region
        $region93: #{tpu_custom_call.1} parent=75 // pred_check
          %p543 = pneg %p205
        $region94: #{tpu_custom_call.1} parent=75 // pred_check_branch
          %545 = sbr.rel (%p543) target = $region96
        $region95: #{tpu_custom_call.1} parent=75 // pred_region
          %546 = dma.done [#allocation10], 1024
        $region96: #{tpu_custom_call.1} parent=75 // pred_fallthru
          _
        // Predicated region
        $region97: #{tpu_custom_call.1} parent=75 // pred_check
          %p547 = pneg %p226
        $region98: #{tpu_custom_call.1} parent=75 // pred_check_branch
          %549 = sbr.rel (%p547) target = $region100
        $region99: #{tpu_custom_call.1} parent=75 // pred_region
          %550 = dma.done [#allocation13], 16
        $region100: #{tpu_custom_call.1} parent=75 // pred_fallthru
          _
        // Predicated region
        $region101: #{tpu_custom_call.1} parent=75 // pred_check
          %p551 = pneg %p289
        $region102: #{tpu_custom_call.1} parent=75 // pred_check_branch
          %553 = sbr.rel (%p551) target = $region104
        $region103: #{tpu_custom_call.1} parent=75 // pred_region
          %554 = dma.done [#allocation13], 2048
        $region104: #{tpu_custom_call.1} parent=75 // pred_fallthru
          _
        %s555 = sand.u32 %s323, 1
        %s556 = scalar_lea.sflag [#allocation16], %s555
        %s557 = sand.u32 %s323, 1
        %s558 = smul.addr %s557, 64
        %s559 = scalar_lea.vmem [#allocation15], %s558
        // Predicated region
        $region105: #{tpu_custom_call.1} parent=75 // pred_check
          %p560 = pneg %p336
        $region106: #{tpu_custom_call.1} parent=75 // pred_check_branch
          %562 = sbr.rel (%p560) target = $region108
        $region107: #{tpu_custom_call.1} parent=75 // pred_region
          %563 = dma.done %s556, 1024
        $region108: #{tpu_custom_call.1} parent=75 // pred_fallthru
          _
        %s564 = sand.u32 %s45, 1
        %s565 = scalar_lea.sflag [#allocation4], %s564
        %s566 = sand.u32 %s45, 1
        %s567 = smul.addr %s566, 256
        %s568 = scalar_lea.vmem [#allocation3], %s567
        %p569 = pneg %p58
        %p570 = pneg %p55
        %p571 = pneg %p79
        %p572 = pneg %p76
        %p573 = pneg %p100
        %p574 = pneg %p97
        %p575 = pneg %p121
        %p576 = pneg %p118
        %p577 = pneg %p142
        %p578 = pneg %p139
        %p579 = pneg %p163
        %p580 = pneg %p160
        %p581 = pneg %p184
        %p582 = pneg %p181
        %p583 = pneg %p205
        %p584 = pneg %p202
        %p585 = pneg %p226
        %p586 = pneg %p223
        %p587 = pneg %p247
        %p588 = pneg %p244
        %p589 = pneg %p268
        %p590 = pneg %p265
        %p591 = pneg %p289
        %p592 = pneg %p286
        %p593 = pneg %p310
        %p594 = pneg %p307
        %s595 = sand.u32 %s323, 1
        %s596 = scalar_lea.sflag [#allocation16], %s595
        %s597 = sand.u32 %s323, 1
        %s598 = smul.addr %s597, 64
        %s599 = scalar_lea.vmem [#allocation15], %s598
        %p600 = pneg %p336
        %p601 = pneg %p333
        %p602 = pneg %p362
        %p603 = pneg %p359
        %s604 = sand.u32 %s349, 1
        %s605 = scalar_lea.sflag [#allocation5], %s604
        %s606 = sand.u32 %s349, 1
        %s607 = smul.addr %s606, 64
        %s608 = scalar_lea.vmem [#allocation17], %s607
        %610 = vst [vmem:[#allocation2] sm:$0xff] 0.0
        %611 = vst [vmem:[#allocation2 + $0x8] sm:$0xff] 0.0
        %612 = vst [vmem:[#allocation2 + $0x10] sm:$0x3] 0.0
        %s613 = scalar_lea.vmem [#allocation2], 408
        %614 = vst [vmem:[%s613] sm:$0xff] 0.0
        %615 = vst [vmem:[%s613 + $0x8] sm:$0xff] 0.0
        %616 = vst [vmem:[%s613 + $0x10] sm:$0x3] 0.0
        %617 = vst [vmem:[#allocation2] sm:$0x1] 0.0
        %618 = vst [vmem:[#allocation2 + $0x18] sm:$0x1] 0.0
        %619 = vst [vmem:[#allocation2 + $0x30] sm:$0x1] 0.0
        %620 = vst [vmem:[#allocation2 + $0x48] sm:$0x1] 0.0
        %621 = vst [vmem:[#allocation2 + $0x60] sm:$0x1] 0.0
        %622 = vst [vmem:[#allocation2 + $0x78] sm:$0x1] 0.0
        %623 = vst [vmem:[#allocation2 + $0x90] sm:$0x1] 0.0
        %624 = vst [vmem:[#allocation2 + $0xa8] sm:$0x1] 0.0
        %625 = vst [vmem:[#allocation2 + $0xc0] sm:$0x1] 0.0
        %626 = vst [vmem:[#allocation2 + $0xd8] sm:$0x1] 0.0
        %627 = vst [vmem:[#allocation2 + $0xf0] sm:$0x1] 0.0
        %628 = vst [vmem:[#allocation2 + $0x108] sm:$0x1] 0.0
        %629 = vst [vmem:[#allocation2 + $0x120] sm:$0x1] 0.0
        %630 = vst [vmem:[#allocation2 + $0x138] sm:$0x1] 0.0
        %631 = vst [vmem:[#allocation2 + $0x150] sm:$0x1] 0.0
        %632 = vst [vmem:[#allocation2 + $0x168] sm:$0x1] 0.0
        %633 = vst [vmem:[#allocation2 + $0x180] sm:$0x1] 0.0
        %634 = vst [vmem:[#allocation2 + $0x198] sm:$0x1] 0.0
        %635 = vst [vmem:[#allocation2 + $0x11] sm:$0x1] 0.0
        %636 = vst [vmem:[#allocation2 + $0x29] sm:$0x1] 0.0
        %637 = vst [vmem:[#allocation2 + $0x41] sm:$0x1] 0.0
        %638 = vst [vmem:[#allocation2 + $0x59] sm:$0x1] 0.0
        %639 = vst [vmem:[#allocation2 + $0x71] sm:$0x1] 0.0
        %640 = vst [vmem:[#allocation2 + $0x89] sm:$0x1] 0.0
        %641 = vst [vmem:[#allocation2 + $0xa1] sm:$0x1] 0.0
        %642 = vst [vmem:[#allocation2 + $0xb9] sm:$0x1] 0.0
        %643 = vst [vmem:[#allocation2 + $0xd1] sm:$0x1] 0.0
        %644 = vst [vmem:[#allocation2 + $0xe9] sm:$0x1] 0.0
        %645 = vst [vmem:[#allocation2 + $0x101] sm:$0x1] 0.0
        %646 = vst [vmem:[#allocation2 + $0x119] sm:$0x1] 0.0
        %647 = vst [vmem:[#allocation2 + $0x131] sm:$0x1] 0.0
        %648 = vst [vmem:[#allocation2 + $0x149] sm:$0x1] 0.0
        %649 = vst [vmem:[#allocation2 + $0x161] sm:$0x1] 0.0
        %650 = vst [vmem:[#allocation2 + $0x179] sm:$0x1] 0.0
        %651 = vst [vmem:[#allocation2 + $0x191] sm:$0x1] 0.0
        %652 = vst [vmem:[#allocation2 + $0x1a9] sm:$0x1] 0.0
        %v653 = vld [vmem:[%s526] sm:$0xff]
        %v654 = vld [vmem:[%s526 + $0x8] sm:$0xff]
        %v655 = vld [vmem:[%s526 + $0x10] sm:$0xff]
        %v656 = vld [vmem:[%s526 + $0x18] sm:$0xff]
        %v657 = vld [vmem:[%s526 + $0x20] sm:$0xff]
        %v658 = vld [vmem:[%s526 + $0x28] sm:$0xff]
        %v659 = vld [vmem:[%s526 + $0x30] sm:$0xff]
        %v660 = vld [vmem:[%s526 + $0x38] sm:$0xff]
        %v661 = vld [vmem:[%s526 + $0x40] sm:$0xff]
        %v662 = vld [vmem:[%s526 + $0x48] sm:$0xff]
        %v663 = vld [vmem:[%s526 + $0x50] sm:$0xff]
        %v664 = vld [vmem:[%s526 + $0x58] sm:$0xff]
        %v665 = vld [vmem:[%s526 + $0x60] sm:$0xff]
        %v666 = vld [vmem:[%s526 + $0x68] sm:$0xff]
        %v667 = vld [vmem:[%s526 + $0x70] sm:$0xff]
        %v668 = vld [vmem:[%s526 + $0x78] sm:$0xff]
        %v669 = vld [vmem:[%s526 + $0x80] sm:$0xff]
        %v670 = vld [vmem:[%s526 + $0x88] sm:$0xff]
        %v671 = vld [vmem:[%s526 + $0x90] sm:$0xff]
        %v672 = vld [vmem:[%s526 + $0x98] sm:$0xff]
        %v673 = vld [vmem:[%s526 + $0xa0] sm:$0xff]
        %v674 = vld [vmem:[%s526 + $0xa8] sm:$0xff]
        %v675 = vld [vmem:[%s526 + $0xb0] sm:$0xff]
        %v676 = vld [vmem:[%s526 + $0xb8] sm:$0xff]
        %v677 = vld [vmem:[%s526 + $0xc0] sm:$0xff]
        %v678 = vld [vmem:[%s526 + $0xc8] sm:$0xff]
        %v679 = vld [vmem:[%s526 + $0xd0] sm:$0xff]
        %v680 = vld [vmem:[%s526 + $0xd8] sm:$0xff]
        %v681 = vld [vmem:[%s526 + $0xe0] sm:$0xff]
        %v682 = vld [vmem:[%s526 + $0xe8] sm:$0xff]
        %v683 = vld [vmem:[%s526 + $0xf0] sm:$0xff]
        %v684 = vld [vmem:[%s526 + $0xf8] sm:$0xff]
        %v685 = vmax.f32 %v653, 0.0
        %v686 = vmax.f32 %v654, 0.0
        %v687 = vmax.f32 %v655, 0.0
        %v688 = vmax.f32 %v656, 0.0
        %v689 = vmax.f32 %v657, 0.0
        %v690 = vmax.f32 %v658, 0.0
        %v691 = vmax.f32 %v659, 0.0
        %v692 = vmax.f32 %v660, 0.0
        %v693 = vmax.f32 %v661, 0.0
        %v694 = vmax.f32 %v662, 0.0
        %v695 = vmax.f32 %v663, 0.0
        %v696 = vmax.f32 %v664, 0.0
        %v697 = vmax.f32 %v665, 0.0
        %v698 = vmax.f32 %v666, 0.0
        %v699 = vmax.f32 %v667, 0.0
        %v700 = vmax.f32 %v668, 0.0
        %v701 = vmax.f32 %v669, 0.0
        %v702 = vmax.f32 %v670, 0.0
        %v703 = vmax.f32 %v671, 0.0
        %v704 = vmax.f32 %v672, 0.0
        %v705 = vmax.f32 %v673, 0.0
        %v706 = vmax.f32 %v674, 0.0
        %v707 = vmax.f32 %v675, 0.0
        %v708 = vmax.f32 %v676, 0.0
        %v709 = vmax.f32 %v677, 0.0
        %v710 = vmax.f32 %v678, 0.0
        %v711 = vmax.f32 %v679, 0.0
        %v712 = vmax.f32 %v680, 0.0
        %v713 = vmax.f32 %v681, 0.0
        %v714 = vmax.f32 %v682, 0.0
        %v715 = vmax.f32 %v683, 0.0
        %v716 = vmax.f32 %v684, 0.0
        %s717 = scalar_lea.vmem [#allocation2], 24
        %718 = vst [vmem:[%s717 + $0x1] sm:$0xff] %v685
        %719 = vst [vmem:[%s717 + $0x9] sm:$0xff] %v686
        %720 = vst [vmem:[%s717 + $0x19] sm:$0xff] %v687
        %721 = vst [vmem:[%s717 + $0x21] sm:$0xff] %v688
        %722 = vst [vmem:[%s717 + $0x31] sm:$0xff] %v689
        %723 = vst [vmem:[%s717 + $0x39] sm:$0xff] %v690
        %724 = vst [vmem:[%s717 + $0x49] sm:$0xff] %v691
        %725 = vst [vmem:[%s717 + $0x51] sm:$0xff] %v692
        %726 = vst [vmem:[%s717 + $0x61] sm:$0xff] %v693
        %727 = vst [vmem:[%s717 + $0x69] sm:$0xff] %v694
        %728 = vst [vmem:[%s717 + $0x79] sm:$0xff] %v695
        %729 = vst [vmem:[%s717 + $0x81] sm:$0xff] %v696
        %730 = vst [vmem:[%s717 + $0x91] sm:$0xff] %v697
        %731 = vst [vmem:[%s717 + $0x99] sm:$0xff] %v698
        %732 = vst [vmem:[%s717 + $0xa9] sm:$0xff] %v699
        %733 = vst [vmem:[%s717 + $0xb1] sm:$0xff] %v700
        %734 = vst [vmem:[%s717 + $0xc1] sm:$0xff] %v701
        %735 = vst [vmem:[%s717 + $0xc9] sm:$0xff] %v702
        %736 = vst [vmem:[%s717 + $0xd9] sm:$0xff] %v703
        %737 = vst [vmem:[%s717 + $0xe1] sm:$0xff] %v704
        %738 = vst [vmem:[%s717 + $0xf1] sm:$0xff] %v705
        %739 = vst [vmem:[%s717 + $0xf9] sm:$0xff] %v706
        %740 = vst [vmem:[%s717 + $0x109] sm:$0xff] %v707
        %741 = vst [vmem:[%s717 + $0x111] sm:$0xff] %v708
        %742 = vst [vmem:[%s717 + $0x121] sm:$0xff] %v709
        %743 = vst [vmem:[%s717 + $0x129] sm:$0xff] %v710
        %744 = vst [vmem:[%s717 + $0x139] sm:$0xff] %v711
        %745 = vst [vmem:[%s717 + $0x141] sm:$0xff] %v712
        %746 = vst [vmem:[%s717 + $0x151] sm:$0xff] %v713
        %747 = vst [vmem:[%s717 + $0x159] sm:$0xff] %v714
        %748 = vst [vmem:[%s717 + $0x169] sm:$0xff] %v715
        %749 = vst [vmem:[%s717 + $0x171] sm:$0xff] %v716
        %v750 = vld [vmem:[#allocation6] sm:$0xff]
        %v751 = vld [vmem:[#allocation6 + $0x8] sm:$0x1]
        %v752 = vld [vmem:[#allocation2] sm:$0xff]
        %v753 = vld [vmem:[#allocation2 + $0x8] sm:$0xff]
        %v754 = vld [vmem:[#allocation2 + $0x18] sm:$0xff]
        %v755 = vld [vmem:[#allocation2 + $0x20] sm:$0xff]
        %v756 = vld [vmem:[#allocation2 + $0x30] sm:$0xff]
        %v757 = vld [vmem:[#allocation2 + $0x38] sm:$0xff]
        %v758 = vld [vmem:[#allocation2 + $0x48] sm:$0xff]
        %v759 = vld [vmem:[#allocation2 + $0x50] sm:$0xff]
        %v760 = vld [vmem:[#allocation2 + $0x60] sm:$0xff]
        %v761 = vld [vmem:[#allocation2 + $0x68] sm:$0xff]
        %v762 = vld [vmem:[#allocation2 + $0x78] sm:$0xff]
        %v763 = vld [vmem:[#allocation2 + $0x80] sm:$0xff]
        %v764 = vld [vmem:[#allocation2 + $0x90] sm:$0xff]
        %v765 = vld [vmem:[#allocation2 + $0x98] sm:$0xff]
        %v766 = vld [vmem:[#allocation2 + $0xa8] sm:$0xff]
        %v767 = vld [vmem:[#allocation2 + $0xb0] sm:$0xff]
        %v768 = vld [vmem:[#allocation2 + $0xc0] sm:$0xff]
        %v769 = vld [vmem:[#allocation2 + $0xc8] sm:$0xff]
        %v770 = vld [vmem:[#allocation2 + $0xd8] sm:$0xff]
        %v771 = vld [vmem:[#allocation2 + $0xe0] sm:$0xff]
        %v772 = vld [vmem:[#allocation2 + $0xf0] sm:$0xff]
        %v773 = vld [vmem:[#allocation2 + $0xf8] sm:$0xff]
        %v774 = vld [vmem:[#allocation2 + $0x108] sm:$0xff]
        %v775 = vld [vmem:[#allocation2 + $0x110] sm:$0xff]
        %v776 = vld [vmem:[#allocation2 + $0x120] sm:$0xff]
        %v777 = vld [vmem:[#allocation2 + $0x128] sm:$0xff]
        %v778 = vld [vmem:[#allocation2 + $0x138] sm:$0xff]
        %v779 = vld [vmem:[#allocation2 + $0x140] sm:$0xff]
        %v780 = vld [vmem:[#allocation2 + $0x150] sm:$0xff]
        %v781 = vld [vmem:[#allocation2 + $0x158] sm:$0xff]
        %v782 = vld [vmem:[#allocation2 + $0x168] sm:$0xff]
        %v783 = vld [vmem:[#allocation2 + $0x170] sm:$0xff]
        %v784 = vlaneseq
        %v785 = vshrl.u32 %v784, 7
        %v786 = vsub.s32 0, %v785
        %v787 = vrot.slane %v750, %v786
        %v788 = vmul.f32 %v752, %v787
        %v789 = vmul.f32 %v753, %v787
        %v790 = vmul.f32 %v754, %v787
        %v791 = vmul.f32 %v755, %v787
        %v792 = vmul.f32 %v756, %v787
        %v793 = vmul.f32 %v757, %v787
        %v794 = vmul.f32 %v758, %v787
        %v795 = vmul.f32 %v759, %v787
        %v796 = vmul.f32 %v760, %v787
        %v797 = vmul.f32 %v761, %v787
        %v798 = vmul.f32 %v762, %v787
        %v799 = vmul.f32 %v763, %v787
        %v800 = vmul.f32 %v764, %v787
        %v801 = vmul.f32 %v765, %v787
        %v802 = vmul.f32 %v766, %v787
        %v803 = vmul.f32 %v767, %v787
        %v804 = vmul.f32 %v768, %v787
        %v805 = vmul.f32 %v769, %v787
        %v806 = vmul.f32 %v770, %v787
        %v807 = vmul.f32 %v771, %v787
        %v808 = vmul.f32 %v772, %v787
        %v809 = vmul.f32 %v773, %v787
        %v810 = vmul.f32 %v774, %v787
        %v811 = vmul.f32 %v775, %v787
        %v812 = vmul.f32 %v776, %v787
        %v813 = vmul.f32 %v777, %v787
        %v814 = vmul.f32 %v778, %v787
        %v815 = vmul.f32 %v779, %v787
        %v816 = vmul.f32 %v780, %v787
        %v817 = vmul.f32 %v781, %v787
        %v818 = vmul.f32 %v782, %v787
        %v819 = vmul.f32 %v783, %v787
        %v820 = vld [vmem:[#allocation2 + $0x1] sm:$0xff]
        %v821 = vld [vmem:[#allocation2 + $0x9] sm:$0xff]
        %v822 = vld [vmem:[#allocation2 + $0x19] sm:$0xff]
        %v823 = vld [vmem:[#allocation2 + $0x21] sm:$0xff]
        %v824 = vld [vmem:[#allocation2 + $0x31] sm:$0xff]
        %v825 = vld [vmem:[#allocation2 + $0x39] sm:$0xff]
        %v826 = vld [vmem:[#allocation2 + $0x49] sm:$0xff]
        %v827 = vld [vmem:[#allocation2 + $0x51] sm:$0xff]
        %v828 = vld [vmem:[#allocation2 + $0x61] sm:$0xff]
        %v829 = vld [vmem:[#allocation2 + $0x69] sm:$0xff]
        %v830 = vld [vmem:[#allocation2 + $0x79] sm:$0xff]
        %v831 = vld [vmem:[#allocation2 + $0x81] sm:$0xff]
        %v832 = vld [vmem:[#allocation2 + $0x91] sm:$0xff]
        %v833 = vld [vmem:[#allocation2 + $0x99] sm:$0xff]
        %v834 = vld [vmem:[#allocation2 + $0xa9] sm:$0xff]
        %v835 = vld [vmem:[#allocation2 + $0xb1] sm:$0xff]
        %v836 = vld [vmem:[#allocation2 + $0xc1] sm:$0xff]
        %v837 = vld [vmem:[#allocation2 + $0xc9] sm:$0xff]
        %v838 = vld [vmem:[#allocation2 + $0xd9] sm:$0xff]
        %v839 = vld [vmem:[#allocation2 + $0xe1] sm:$0xff]
        %v840 = vld [vmem:[#allocation2 + $0xf1] sm:$0xff]
        %v841 = vld [vmem:[#allocation2 + $0xf9] sm:$0xff]
        %v842 = vld [vmem:[#allocation2 + $0x109] sm:$0xff]
        %v843 = vld [vmem:[#allocation2 + $0x111] sm:$0xff]
        %v844 = vld [vmem:[#allocation2 + $0x121] sm:$0xff]
        %v845 = vld [vmem:[#allocation2 + $0x129] sm:$0xff]
        %v846 = vld [vmem:[#allocation2 + $0x139] sm:$0xff]
        %v847 = vld [vmem:[#allocation2 + $0x141] sm:$0xff]
        %v848 = vld [vmem:[#allocation2 + $0x151] sm:$0xff]
        %v849 = vld [vmem:[#allocation2 + $0x159] sm:$0xff]
        %v850 = vld [vmem:[#allocation2 + $0x169] sm:$0xff]
        %v851 = vld [vmem:[#allocation2 + $0x171] sm:$0xff]
        %v852 = vlaneseq
        %v853 = vshrl.u32 %v852, 7
        %v854 = vsub.s32 1, %v853
        %v855 = vrot.slane %v750, %v854
        %v856 = vmul.f32 %v820, %v855
        %v857 = vmul.f32 %v821, %v855
        %v858 = vmul.f32 %v822, %v855
        %v859 = vmul.f32 %v823, %v855
        %v860 = vmul.f32 %v824, %v855
        %v861 = vmul.f32 %v825, %v855
        %v862 = vmul.f32 %v826, %v855
        %v863 = vmul.f32 %v827, %v855
        %v864 = vmul.f32 %v828, %v855
        %v865 = vmul.f32 %v829, %v855
        %v866 = vmul.f32 %v830, %v855
        %v867 = vmul.f32 %v831, %v855
        %v868 = vmul.f32 %v832, %v855
        %v869 = vmul.f32 %v833, %v855
        %v870 = vmul.f32 %v834, %v855
        %v871 = vmul.f32 %v835, %v855
        %v872 = vmul.f32 %v836, %v855
        %v873 = vmul.f32 %v837, %v855
        %v874 = vmul.f32 %v838, %v855
        %v875 = vmul.f32 %v839, %v855
        %v876 = vmul.f32 %v840, %v855
        %v877 = vmul.f32 %v841, %v855
        %v878 = vmul.f32 %v842, %v855
        %v879 = vmul.f32 %v843, %v855
        %v880 = vmul.f32 %v844, %v855
        %v881 = vmul.f32 %v845, %v855
        %v882 = vmul.f32 %v846, %v855
        %v883 = vmul.f32 %v847, %v855
        %v884 = vmul.f32 %v848, %v855
        %v885 = vmul.f32 %v849, %v855
        %v886 = vmul.f32 %v850, %v855
        %v887 = vmul.f32 %v851, %v855
        %v888 = vadd.f32 %v788, %v856
        %v889 = vadd.f32 %v789, %v857
        %v890 = vadd.f32 %v790, %v858
        %v891 = vadd.f32 %v791, %v859
        %v892 = vadd.f32 %v792, %v860
        %v893 = vadd.f32 %v793, %v861
        %v894 = vadd.f32 %v794, %v862
        %v895 = vadd.f32 %v795, %v863
        %v896 = vadd.f32 %v796, %v864
        %v897 = vadd.f32 %v797, %v865
        %v898 = vadd.f32 %v798, %v866
        %v899 = vadd.f32 %v799, %v867
        %v900 = vadd.f32 %v800, %v868
        %v901 = vadd.f32 %v801, %v869
        %v902 = vadd.f32 %v802, %v870
        %v903 = vadd.f32 %v803, %v871
        %v904 = vadd.f32 %v804, %v872
        %v905 = vadd.f32 %v805, %v873
        %v906 = vadd.f32 %v806, %v874
        %v907 = vadd.f32 %v807, %v875
        %v908 = vadd.f32 %v808, %v876
        %v909 = vadd.f32 %v809, %v877
        %v910 = vadd.f32 %v810, %v878
        %v911 = vadd.f32 %v811, %v879
        %v912 = vadd.f32 %v812, %v880
        %v913 = vadd.f32 %v813, %v881
        %v914 = vadd.f32 %v814, %v882
        %v915 = vadd.f32 %v815, %v883
        %v916 = vadd.f32 %v816, %v884
        %v917 = vadd.f32 %v817, %v885
        %v918 = vadd.f32 %v818, %v886
        %v919 = vadd.f32 %v819, %v887
        %v920 = vld [vmem:[#allocation2 + $0x2] sm:$0xff]
        %v921 = vld [vmem:[#allocation2 + $0xa] sm:$0xff]
        %v922 = vld [vmem:[#allocation2 + $0x1a] sm:$0xff]
        %v923 = vld [vmem:[#allocation2 + $0x22] sm:$0xff]
        %v924 = vld [vmem:[#allocation2 + $0x32] sm:$0xff]
        %v925 = vld [vmem:[#allocation2 + $0x3a] sm:$0xff]
        %v926 = vld [vmem:[#allocation2 + $0x4a] sm:$0xff]
        %v927 = vld [vmem:[#allocation2 + $0x52] sm:$0xff]
        %v928 = vld [vmem:[#allocation2 + $0x62] sm:$0xff]
        %v929 = vld [vmem:[#allocation2 + $0x6a] sm:$0xff]
        %v930 = vld [vmem:[#allocation2 + $0x7a] sm:$0xff]
        %v931 = vld [vmem:[#allocation2 + $0x82] sm:$0xff]
        %v932 = vld [vmem:[#allocation2 + $0x92] sm:$0xff]
        %v933 = vld [vmem:[#allocation2 + $0x9a] sm:$0xff]
        %v934 = vld [vmem:[#allocation2 + $0xaa] sm:$0xff]
        %v935 = vld [vmem:[#allocation2 + $0xb2] sm:$0xff]
        %v936 = vld [vmem:[#allocation2 + $0xc2] sm:$0xff]
        %v937 = vld [vmem:[#allocation2 + $0xca] sm:$0xff]
        %v938 = vld [vmem:[#allocation2 + $0xda] sm:$0xff]
        %v939 = vld [vmem:[#allocation2 + $0xe2] sm:$0xff]
        %v940 = vld [vmem:[#allocation2 + $0xf2] sm:$0xff]
        %v941 = vld [vmem:[#allocation2 + $0xfa] sm:$0xff]
        %v942 = vld [vmem:[#allocation2 + $0x10a] sm:$0xff]
        %v943 = vld [vmem:[#allocation2 + $0x112] sm:$0xff]
        %v944 = vld [vmem:[#allocation2 + $0x122] sm:$0xff]
        %v945 = vld [vmem:[#allocation2 + $0x12a] sm:$0xff]
        %v946 = vld [vmem:[#allocation2 + $0x13a] sm:$0xff]
        %v947 = vld [vmem:[#allocation2 + $0x142] sm:$0xff]
        %v948 = vld [vmem:[#allocation2 + $0x152] sm:$0xff]
        %v949 = vld [vmem:[#allocation2 + $0x15a] sm:$0xff]
        %v950 = vld [vmem:[#allocation2 + $0x16a] sm:$0xff]
        %v951 = vld [vmem:[#allocation2 + $0x172] sm:$0xff]
        %v952 = vlaneseq
        %v953 = vshrl.u32 %v952, 7
        %v954 = vsub.s32 2, %v953
        %v955 = vrot.slane %v750, %v954
        %v956 = vmul.f32 %v920, %v955
        %v957 = vmul.f32 %v921, %v955
        %v958 = vmul.f32 %v922, %v955
        %v959 = vmul.f32 %v923, %v955
        %v960 = vmul.f32 %v924, %v955
        %v961 = vmul.f32 %v925, %v955
        %v962 = vmul.f32 %v926, %v955
        %v963 = vmul.f32 %v927, %v955
        %v964 = vmul.f32 %v928, %v955
        %v965 = vmul.f32 %v929, %v955
        %v966 = vmul.f32 %v930, %v955
        %v967 = vmul.f32 %v931, %v955
        %v968 = vmul.f32 %v932, %v955
        %v969 = vmul.f32 %v933, %v955
        %v970 = vmul.f32 %v934, %v955
        %v971 = vmul.f32 %v935, %v955
        %v972 = vmul.f32 %v936, %v955
        %v973 = vmul.f32 %v937, %v955
        %v974 = vmul.f32 %v938, %v955
        %v975 = vmul.f32 %v939, %v955
        %v976 = vmul.f32 %v940, %v955
        %v977 = vmul.f32 %v941, %v955
        %v978 = vmul.f32 %v942, %v955
        %v979 = vmul.f32 %v943, %v955
        %v980 = vmul.f32 %v944, %v955
        %v981 = vmul.f32 %v945, %v955
        %v982 = vmul.f32 %v946, %v955
        %v983 = vmul.f32 %v947, %v955
        %v984 = vmul.f32 %v948, %v955
        %v985 = vmul.f32 %v949, %v955
        %v986 = vmul.f32 %v950, %v955
        %v987 = vmul.f32 %v951, %v955
        %v988 = vadd.f32 %v888, %v956
        %v989 = vadd.f32 %v889, %v957
        %v990 = vadd.f32 %v890, %v958
        %v991 = vadd.f32 %v891, %v959
        %v992 = vadd.f32 %v892, %v960
        %v993 = vadd.f32 %v893, %v961
        %v994 = vadd.f32 %v894, %v962
        %v995 = vadd.f32 %v895, %v963
        %v996 = vadd.f32 %v896, %v964
        %v997 = vadd.f32 %v897, %v965
        %v998 = vadd.f32 %v898, %v966
        %v999 = vadd.f32 %v899, %v967
        %v1000 = vadd.f32 %v900, %v968
        %v1001 = vadd.f32 %v901, %v969
        %v1002 = vadd.f32 %v902, %v970
        %v1003 = vadd.f32 %v903, %v971
        %v1004 = vadd.f32 %v904, %v972
        %v1005 = vadd.f32 %v905, %v973
        %v1006 = vadd.f32 %v906, %v974
        %v1007 = vadd.f32 %v907, %v975
        %v1008 = vadd.f32 %v908, %v976
        %v1009 = vadd.f32 %v909, %v977
        %v1010 = vadd.f32 %v910, %v978
        %v1011 = vadd.f32 %v911, %v979
        %v1012 = vadd.f32 %v912, %v980
        %v1013 = vadd.f32 %v913, %v981
        %v1014 = vadd.f32 %v914, %v982
        %v1015 = vadd.f32 %v915, %v983
        %v1016 = vadd.f32 %v916, %v984
        %v1017 = vadd.f32 %v917, %v985
        %v1018 = vadd.f32 %v918, %v986
        %v1019 = vadd.f32 %v919, %v987
        %v1020 = vld [vmem:[%s717] sm:$0xff]
        %v1021 = vld [vmem:[%s717 + $0x8] sm:$0xff]
        %v1022 = vld [vmem:[%s717 + $0x18] sm:$0xff]
        %v1023 = vld [vmem:[%s717 + $0x20] sm:$0xff]
        %v1024 = vld [vmem:[%s717 + $0x30] sm:$0xff]
        %v1025 = vld [vmem:[%s717 + $0x38] sm:$0xff]
        %v1026 = vld [vmem:[%s717 + $0x48] sm:$0xff]
        %v1027 = vld [vmem:[%s717 + $0x50] sm:$0xff]
        %v1028 = vld [vmem:[%s717 + $0x60] sm:$0xff]
        %v1029 = vld [vmem:[%s717 + $0x68] sm:$0xff]
        %v1030 = vld [vmem:[%s717 + $0x78] sm:$0xff]
        %v1031 = vld [vmem:[%s717 + $0x80] sm:$0xff]
        %v1032 = vld [vmem:[%s717 + $0x90] sm:$0xff]
        %v1033 = vld [vmem:[%s717 + $0x98] sm:$0xff]
        %v1034 = vld [vmem:[%s717 + $0xa8] sm:$0xff]
        %v1035 = vld [vmem:[%s717 + $0xb0] sm:$0xff]
        %v1036 = vld [vmem:[%s717 + $0xc0] sm:$0xff]
        %v1037 = vld [vmem:[%s717 + $0xc8] sm:$0xff]
        %v1038 = vld [vmem:[%s717 + $0xd8] sm:$0xff]
        %v1039 = vld [vmem:[%s717 + $0xe0] sm:$0xff]
        %v1040 = vld [vmem:[%s717 + $0xf0] sm:$0xff]
        %v1041 = vld [vmem:[%s717 + $0xf8] sm:$0xff]
        %v1042 = vld [vmem:[%s717 + $0x108] sm:$0xff]
        %v1043 = vld [vmem:[%s717 + $0x110] sm:$0xff]
        %v1044 = vld [vmem:[%s717 + $0x120] sm:$0xff]
        %v1045 = vld [vmem:[%s717 + $0x128] sm:$0xff]
        %v1046 = vld [vmem:[%s717 + $0x138] sm:$0xff]
        %v1047 = vld [vmem:[%s717 + $0x140] sm:$0xff]
        %v1048 = vld [vmem:[%s717 + $0x150] sm:$0xff]
        %v1049 = vld [vmem:[%s717 + $0x158] sm:$0xff]
        %v1050 = vld [vmem:[%s717 + $0x168] sm:$0xff]
        %v1051 = vld [vmem:[%s717 + $0x170] sm:$0xff]
        %v1052 = vlaneseq
        %v1053 = vshrl.u32 %v1052, 7
        %v1054 = vsub.s32 3, %v1053
        %v1055 = vrot.slane %v750, %v1054
        %v1056 = vmul.f32 %v1020, %v1055
        %v1057 = vmul.f32 %v1021, %v1055
        %v1058 = vmul.f32 %v1022, %v1055
        %v1059 = vmul.f32 %v1023, %v1055
        %v1060 = vmul.f32 %v1024, %v1055
        %v1061 = vmul.f32 %v1025, %v1055
        %v1062 = vmul.f32 %v1026, %v1055
        %v1063 = vmul.f32 %v1027, %v1055
        %v1064 = vmul.f32 %v1028, %v1055
        %v1065 = vmul.f32 %v1029, %v1055
        %v1066 = vmul.f32 %v1030, %v1055
        %v1067 = vmul.f32 %v1031, %v1055
        %v1068 = vmul.f32 %v1032, %v1055
        %v1069 = vmul.f32 %v1033, %v1055
        %v1070 = vmul.f32 %v1034, %v1055
        %v1071 = vmul.f32 %v1035, %v1055
        %v1072 = vmul.f32 %v1036, %v1055
        %v1073 = vmul.f32 %v1037, %v1055
        %v1074 = vmul.f32 %v1038, %v1055
        %v1075 = vmul.f32 %v1039, %v1055
        %v1076 = vmul.f32 %v1040, %v1055
        %v1077 = vmul.f32 %v1041, %v1055
        %v1078 = vmul.f32 %v1042, %v1055
        %v1079 = vmul.f32 %v1043, %v1055
        %v1080 = vmul.f32 %v1044, %v1055
        %v1081 = vmul.f32 %v1045, %v1055
        %v1082 = vmul.f32 %v1046, %v1055
        %v1083 = vmul.f32 %v1047, %v1055
        %v1084 = vmul.f32 %v1048, %v1055
        %v1085 = vmul.f32 %v1049, %v1055
        %v1086 = vmul.f32 %v1050, %v1055
        %v1087 = vmul.f32 %v1051, %v1055
        %v1088 = vadd.f32 %v988, %v1056
        %v1089 = vadd.f32 %v989, %v1057
        %v1090 = vadd.f32 %v990, %v1058
        %v1091 = vadd.f32 %v991, %v1059
        %v1092 = vadd.f32 %v992, %v1060
        %v1093 = vadd.f32 %v993, %v1061
        %v1094 = vadd.f32 %v994, %v1062
        %v1095 = vadd.f32 %v995, %v1063
        %v1096 = vadd.f32 %v996, %v1064
        %v1097 = vadd.f32 %v997, %v1065
        %v1098 = vadd.f32 %v998, %v1066
        %v1099 = vadd.f32 %v999, %v1067
        %v1100 = vadd.f32 %v1000, %v1068
        %v1101 = vadd.f32 %v1001, %v1069
        %v1102 = vadd.f32 %v1002, %v1070
        %v1103 = vadd.f32 %v1003, %v1071
        %v1104 = vadd.f32 %v1004, %v1072
        %v1105 = vadd.f32 %v1005, %v1073
        %v1106 = vadd.f32 %v1006, %v1074
        %v1107 = vadd.f32 %v1007, %v1075
        %v1108 = vadd.f32 %v1008, %v1076
        %v1109 = vadd.f32 %v1009, %v1077
        %v1110 = vadd.f32 %v1010, %v1078
        %v1111 = vadd.f32 %v1011, %v1079
        %v1112 = vadd.f32 %v1012, %v1080
        %v1113 = vadd.f32 %v1013, %v1081
        %v1114 = vadd.f32 %v1014, %v1082
        %v1115 = vadd.f32 %v1015, %v1083
        %v1116 = vadd.f32 %v1016, %v1084
        %v1117 = vadd.f32 %v1017, %v1085
        %v1118 = vadd.f32 %v1018, %v1086
        %v1119 = vadd.f32 %v1019, %v1087
        %v1120 = vld [vmem:[%s717 + $0x1] sm:$0xff]
        %v1121 = vld [vmem:[%s717 + $0x9] sm:$0xff]
        %v1122 = vld [vmem:[%s717 + $0x19] sm:$0xff]
        %v1123 = vld [vmem:[%s717 + $0x21] sm:$0xff]
        %v1124 = vld [vmem:[%s717 + $0x31] sm:$0xff]
        %v1125 = vld [vmem:[%s717 + $0x39] sm:$0xff]
        %v1126 = vld [vmem:[%s717 + $0x49] sm:$0xff]
        %v1127 = vld [vmem:[%s717 + $0x51] sm:$0xff]
        %v1128 = vld [vmem:[%s717 + $0x61] sm:$0xff]
        %v1129 = vld [vmem:[%s717 + $0x69] sm:$0xff]
        %v1130 = vld [vmem:[%s717 + $0x79] sm:$0xff]
        %v1131 = vld [vmem:[%s717 + $0x81] sm:$0xff]
        %v1132 = vld [vmem:[%s717 + $0x91] sm:$0xff]
        %v1133 = vld [vmem:[%s717 + $0x99] sm:$0xff]
        %v1134 = vld [vmem:[%s717 + $0xa9] sm:$0xff]
        %v1135 = vld [vmem:[%s717 + $0xb1] sm:$0xff]
        %v1136 = vld [vmem:[%s717 + $0xc1] sm:$0xff]
        %v1137 = vld [vmem:[%s717 + $0xc9] sm:$0xff]
        %v1138 = vld [vmem:[%s717 + $0xd9] sm:$0xff]
        %v1139 = vld [vmem:[%s717 + $0xe1] sm:$0xff]
        %v1140 = vld [vmem:[%s717 + $0xf1] sm:$0xff]
        %v1141 = vld [vmem:[%s717 + $0xf9] sm:$0xff]
        %v1142 = vld [vmem:[%s717 + $0x109] sm:$0xff]
        %v1143 = vld [vmem:[%s717 + $0x111] sm:$0xff]
        %v1144 = vld [vmem:[%s717 + $0x121] sm:$0xff]
        %v1145 = vld [vmem:[%s717 + $0x129] sm:$0xff]
        %v1146 = vld [vmem:[%s717 + $0x139] sm:$0xff]
        %v1147 = vld [vmem:[%s717 + $0x141] sm:$0xff]
        %v1148 = vld [vmem:[%s717 + $0x151] sm:$0xff]
        %v1149 = vld [vmem:[%s717 + $0x159] sm:$0xff]
        %v1150 = vld [vmem:[%s717 + $0x169] sm:$0xff]
        %v1151 = vld [vmem:[%s717 + $0x171] sm:$0xff]
        %v1152 = vlaneseq
        %v1153 = vshrl.u32 %v1152, 7
        %v1154 = vsub.s32 4, %v1153
        %v1155 = vrot.slane %v750, %v1154
        %v1156 = vmul.f32 %v1120, %v1155
        %v1157 = vmul.f32 %v1121, %v1155
        %v1158 = vmul.f32 %v1122, %v1155
        %v1159 = vmul.f32 %v1123, %v1155
        %v1160 = vmul.f32 %v1124, %v1155
        %v1161 = vmul.f32 %v1125, %v1155
        %v1162 = vmul.f32 %v1126, %v1155
        %v1163 = vmul.f32 %v1127, %v1155
        %v1164 = vmul.f32 %v1128, %v1155
        %v1165 = vmul.f32 %v1129, %v1155
        %v1166 = vmul.f32 %v1130, %v1155
        %v1167 = vmul.f32 %v1131, %v1155
        %v1168 = vmul.f32 %v1132, %v1155
        %v1169 = vmul.f32 %v1133, %v1155
        %v1170 = vmul.f32 %v1134, %v1155
        %v1171 = vmul.f32 %v1135, %v1155
        %v1172 = vmul.f32 %v1136, %v1155
        %v1173 = vmul.f32 %v1137, %v1155
        %v1174 = vmul.f32 %v1138, %v1155
        %v1175 = vmul.f32 %v1139, %v1155
        %v1176 = vmul.f32 %v1140, %v1155
        %v1177 = vmul.f32 %v1141, %v1155
        %v1178 = vmul.f32 %v1142, %v1155
        %v1179 = vmul.f32 %v1143, %v1155
        %v1180 = vmul.f32 %v1144, %v1155
        %v1181 = vmul.f32 %v1145, %v1155
        %v1182 = vmul.f32 %v1146, %v1155
        %v1183 = vmul.f32 %v1147, %v1155
        %v1184 = vmul.f32 %v1148, %v1155
        %v1185 = vmul.f32 %v1149, %v1155
        %v1186 = vmul.f32 %v1150, %v1155
        %v1187 = vmul.f32 %v1151, %v1155
        %v1188 = vadd.f32 %v1088, %v1156
        %v1189 = vadd.f32 %v1089, %v1157
        %v1190 = vadd.f32 %v1090, %v1158
        %v1191 = vadd.f32 %v1091, %v1159
        %v1192 = vadd.f32 %v1092, %v1160
        %v1193 = vadd.f32 %v1093, %v1161
        %v1194 = vadd.f32 %v1094, %v1162
        %v1195 = vadd.f32 %v1095, %v1163
        %v1196 = vadd.f32 %v1096, %v1164
        %v1197 = vadd.f32 %v1097, %v1165
        %v1198 = vadd.f32 %v1098, %v1166
        %v1199 = vadd.f32 %v1099, %v1167
        %v1200 = vadd.f32 %v1100, %v1168
        %v1201 = vadd.f32 %v1101, %v1169
        %v1202 = vadd.f32 %v1102, %v1170
        %v1203 = vadd.f32 %v1103, %v1171
        %v1204 = vadd.f32 %v1104, %v1172
        %v1205 = vadd.f32 %v1105, %v1173
        %v1206 = vadd.f32 %v1106, %v1174
        %v1207 = vadd.f32 %v1107, %v1175
        %v1208 = vadd.f32 %v1108, %v1176
        %v1209 = vadd.f32 %v1109, %v1177
        %v1210 = vadd.f32 %v1110, %v1178
        %v1211 = vadd.f32 %v1111, %v1179
        %v1212 = vadd.f32 %v1112, %v1180
        %v1213 = vadd.f32 %v1113, %v1181
        %v1214 = vadd.f32 %v1114, %v1182
        %v1215 = vadd.f32 %v1115, %v1183
        %v1216 = vadd.f32 %v1116, %v1184
        %v1217 = vadd.f32 %v1117, %v1185
        %v1218 = vadd.f32 %v1118, %v1186
        %v1219 = vadd.f32 %v1119, %v1187
        %v1220 = vld [vmem:[%s717 + $0x2] sm:$0xff]
        %v1221 = vld [vmem:[%s717 + $0xa] sm:$0xff]
        %v1222 = vld [vmem:[%s717 + $0x1a] sm:$0xff]
        %v1223 = vld [vmem:[%s717 + $0x22] sm:$0xff]
        %v1224 = vld [vmem:[%s717 + $0x32] sm:$0xff]
        %v1225 = vld [vmem:[%s717 + $0x3a] sm:$0xff]
        %v1226 = vld [vmem:[%s717 + $0x4a] sm:$0xff]
        %v1227 = vld [vmem:[%s717 + $0x52] sm:$0xff]
        %v1228 = vld [vmem:[%s717 + $0x62] sm:$0xff]
        %v1229 = vld [vmem:[%s717 + $0x6a] sm:$0xff]
        %v1230 = vld [vmem:[%s717 + $0x7a] sm:$0xff]
        %v1231 = vld [vmem:[%s717 + $0x82] sm:$0xff]
        %v1232 = vld [vmem:[%s717 + $0x92] sm:$0xff]
        %v1233 = vld [vmem:[%s717 + $0x9a] sm:$0xff]
        %v1234 = vld [vmem:[%s717 + $0xaa] sm:$0xff]
        %v1235 = vld [vmem:[%s717 + $0xb2] sm:$0xff]
        %v1236 = vld [vmem:[%s717 + $0xc2] sm:$0xff]
        %v1237 = vld [vmem:[%s717 + $0xca] sm:$0xff]
        %v1238 = vld [vmem:[%s717 + $0xda] sm:$0xff]
        %v1239 = vld [vmem:[%s717 + $0xe2] sm:$0xff]
        %v1240 = vld [vmem:[%s717 + $0xf2] sm:$0xff]
        %v1241 = vld [vmem:[%s717 + $0xfa] sm:$0xff]
        %v1242 = vld [vmem:[%s717 + $0x10a] sm:$0xff]
        %v1243 = vld [vmem:[%s717 + $0x112] sm:$0xff]
        %v1244 = vld [vmem:[%s717 + $0x122] sm:$0xff]
        %v1245 = vld [vmem:[%s717 + $0x12a] sm:$0xff]
        %v1246 = vld [vmem:[%s717 + $0x13a] sm:$0xff]
        %v1247 = vld [vmem:[%s717 + $0x142] sm:$0xff]
        %v1248 = vld [vmem:[%s717 + $0x152] sm:$0xff]
        %v1249 = vld [vmem:[%s717 + $0x15a] sm:$0xff]
        %v1250 = vld [vmem:[%s717 + $0x16a] sm:$0xff]
        %v1251 = vld [vmem:[%s717 + $0x172] sm:$0xff]
        %v1252 = vlaneseq
        %v1253 = vshrl.u32 %v1252, 7
        %v1254 = vsub.s32 5, %v1253
        %v1255 = vrot.slane %v750, %v1254
        %v1256 = vmul.f32 %v1220, %v1255
        %v1257 = vmul.f32 %v1221, %v1255
        %v1258 = vmul.f32 %v1222, %v1255
        %v1259 = vmul.f32 %v1223, %v1255
        %v1260 = vmul.f32 %v1224, %v1255
        %v1261 = vmul.f32 %v1225, %v1255
        %v1262 = vmul.f32 %v1226, %v1255
        %v1263 = vmul.f32 %v1227, %v1255
        %v1264 = vmul.f32 %v1228, %v1255
        %v1265 = vmul.f32 %v1229, %v1255
        %v1266 = vmul.f32 %v1230, %v1255
        %v1267 = vmul.f32 %v1231, %v1255
        %v1268 = vmul.f32 %v1232, %v1255
        %v1269 = vmul.f32 %v1233, %v1255
        %v1270 = vmul.f32 %v1234, %v1255
        %v1271 = vmul.f32 %v1235, %v1255
        %v1272 = vmul.f32 %v1236, %v1255
        %v1273 = vmul.f32 %v1237, %v1255
        %v1274 = vmul.f32 %v1238, %v1255
        %v1275 = vmul.f32 %v1239, %v1255
        %v1276 = vmul.f32 %v1240, %v1255
        %v1277 = vmul.f32 %v1241, %v1255
        %v1278 = vmul.f32 %v1242, %v1255
        %v1279 = vmul.f32 %v1243, %v1255
        %v1280 = vmul.f32 %v1244, %v1255
        %v1281 = vmul.f32 %v1245, %v1255
        %v1282 = vmul.f32 %v1246, %v1255
        %v1283 = vmul.f32 %v1247, %v1255
        %v1284 = vmul.f32 %v1248, %v1255
        %v1285 = vmul.f32 %v1249, %v1255
        %v1286 = vmul.f32 %v1250, %v1255
        %v1287 = vmul.f32 %v1251, %v1255
        %v1288 = vadd.f32 %v1188, %v1256
        %v1289 = vadd.f32 %v1189, %v1257
        %v1290 = vadd.f32 %v1190, %v1258
        %v1291 = vadd.f32 %v1191, %v1259
        %v1292 = vadd.f32 %v1192, %v1260
        %v1293 = vadd.f32 %v1193, %v1261
        %v1294 = vadd.f32 %v1194, %v1262
        %v1295 = vadd.f32 %v1195, %v1263
        %v1296 = vadd.f32 %v1196, %v1264
        %v1297 = vadd.f32 %v1197, %v1265
        %v1298 = vadd.f32 %v1198, %v1266
        %v1299 = vadd.f32 %v1199, %v1267
        %v1300 = vadd.f32 %v1200, %v1268
        %v1301 = vadd.f32 %v1201, %v1269
        %v1302 = vadd.f32 %v1202, %v1270
        %v1303 = vadd.f32 %v1203, %v1271
        %v1304 = vadd.f32 %v1204, %v1272
        %v1305 = vadd.f32 %v1205, %v1273
        %v1306 = vadd.f32 %v1206, %v1274
        %v1307 = vadd.f32 %v1207, %v1275
        %v1308 = vadd.f32 %v1208, %v1276
        %v1309 = vadd.f32 %v1209, %v1277
        %v1310 = vadd.f32 %v1210, %v1278
        %v1311 = vadd.f32 %v1211, %v1279
        %v1312 = vadd.f32 %v1212, %v1280
        %v1313 = vadd.f32 %v1213, %v1281
        %v1314 = vadd.f32 %v1214, %v1282
        %v1315 = vadd.f32 %v1215, %v1283
        %v1316 = vadd.f32 %v1216, %v1284
        %v1317 = vadd.f32 %v1217, %v1285
        %v1318 = vadd.f32 %v1218, %v1286
        %v1319 = vadd.f32 %v1219, %v1287
        %s1320 = scalar_lea.vmem [#allocation2], 48
        %v1321 = vld [vmem:[%s1320] sm:$0xff]
        %v1322 = vld [vmem:[%s1320 + $0x8] sm:$0xff]
        %v1323 = vld [vmem:[%s1320 + $0x18] sm:$0xff]
        %v1324 = vld [vmem:[%s1320 + $0x20] sm:$0xff]
        %v1325 = vld [vmem:[%s1320 + $0x30] sm:$0xff]
        %v1326 = vld [vmem:[%s1320 + $0x38] sm:$0xff]
        %v1327 = vld [vmem:[%s1320 + $0x48] sm:$0xff]
        %v1328 = vld [vmem:[%s1320 + $0x50] sm:$0xff]
        %v1329 = vld [vmem:[%s1320 + $0x60] sm:$0xff]
        %v1330 = vld [vmem:[%s1320 + $0x68] sm:$0xff]
        %v1331 = vld [vmem:[%s1320 + $0x78] sm:$0xff]
        %v1332 = vld [vmem:[%s1320 + $0x80] sm:$0xff]
        %v1333 = vld [vmem:[%s1320 + $0x90] sm:$0xff]
        %v1334 = vld [vmem:[%s1320 + $0x98] sm:$0xff]
        %v1335 = vld [vmem:[%s1320 + $0xa8] sm:$0xff]
        %v1336 = vld [vmem:[%s1320 + $0xb0] sm:$0xff]
        %v1337 = vld [vmem:[%s1320 + $0xc0] sm:$0xff]
        %v1338 = vld [vmem:[%s1320 + $0xc8] sm:$0xff]
        %v1339 = vld [vmem:[%s1320 + $0xd8] sm:$0xff]
        %v1340 = vld [vmem:[%s1320 + $0xe0] sm:$0xff]
        %v1341 = vld [vmem:[%s1320 + $0xf0] sm:$0xff]
        %v1342 = vld [vmem:[%s1320 + $0xf8] sm:$0xff]
        %v1343 = vld [vmem:[%s1320 + $0x108] sm:$0xff]
        %v1344 = vld [vmem:[%s1320 + $0x110] sm:$0xff]
        %v1345 = vld [vmem:[%s1320 + $0x120] sm:$0xff]
        %v1346 = vld [vmem:[%s1320 + $0x128] sm:$0xff]
        %v1347 = vld [vmem:[%s1320 + $0x138] sm:$0xff]
        %v1348 = vld [vmem:[%s1320 + $0x140] sm:$0xff]
        %v1349 = vld [vmem:[%s1320 + $0x150] sm:$0xff]
        %v1350 = vld [vmem:[%s1320 + $0x158] sm:$0xff]
        %v1351 = vld [vmem:[%s1320 + $0x168] sm:$0xff]
        %v1352 = vld [vmem:[%s1320 + $0x170] sm:$0xff]
        %v1353 = vlaneseq
        %v1354 = vshrl.u32 %v1353, 7
        %v1355 = vsub.s32 6, %v1354
        %v1356 = vrot.slane %v750, %v1355
        %v1357 = vmul.f32 %v1321, %v1356
        %v1358 = vmul.f32 %v1322, %v1356
        %v1359 = vmul.f32 %v1323, %v1356
        %v1360 = vmul.f32 %v1324, %v1356
        %v1361 = vmul.f32 %v1325, %v1356
        %v1362 = vmul.f32 %v1326, %v1356
        %v1363 = vmul.f32 %v1327, %v1356
        %v1364 = vmul.f32 %v1328, %v1356
        %v1365 = vmul.f32 %v1329, %v1356
        %v1366 = vmul.f32 %v1330, %v1356
        %v1367 = vmul.f32 %v1331, %v1356
        %v1368 = vmul.f32 %v1332, %v1356
        %v1369 = vmul.f32 %v1333, %v1356
        %v1370 = vmul.f32 %v1334, %v1356
        %v1371 = vmul.f32 %v1335, %v1356
        %v1372 = vmul.f32 %v1336, %v1356
        %v1373 = vmul.f32 %v1337, %v1356
        %v1374 = vmul.f32 %v1338, %v1356
        %v1375 = vmul.f32 %v1339, %v1356
        %v1376 = vmul.f32 %v1340, %v1356
        %v1377 = vmul.f32 %v1341, %v1356
        %v1378 = vmul.f32 %v1342, %v1356
        %v1379 = vmul.f32 %v1343, %v1356
        %v1380 = vmul.f32 %v1344, %v1356
        %v1381 = vmul.f32 %v1345, %v1356
        %v1382 = vmul.f32 %v1346, %v1356
        %v1383 = vmul.f32 %v1347, %v1356
        %v1384 = vmul.f32 %v1348, %v1356
        %v1385 = vmul.f32 %v1349, %v1356
        %v1386 = vmul.f32 %v1350, %v1356
        %v1387 = vmul.f32 %v1351, %v1356
        %v1388 = vmul.f32 %v1352, %v1356
        %v1389 = vadd.f32 %v1288, %v1357
        %v1390 = vadd.f32 %v1289, %v1358
        %v1391 = vadd.f32 %v1290, %v1359
        %v1392 = vadd.f32 %v1291, %v1360
        %v1393 = vadd.f32 %v1292, %v1361
        %v1394 = vadd.f32 %v1293, %v1362
        %v1395 = vadd.f32 %v1294, %v1363
        %v1396 = vadd.f32 %v1295, %v1364
        %v1397 = vadd.f32 %v1296, %v1365
        %v1398 = vadd.f32 %v1297, %v1366
        %v1399 = vadd.f32 %v1298, %v1367
        %v1400 = vadd.f32 %v1299, %v1368
        %v1401 = vadd.f32 %v1300, %v1369
        %v1402 = vadd.f32 %v1301, %v1370
        %v1403 = vadd.f32 %v1302, %v1371
        %v1404 = vadd.f32 %v1303, %v1372
        %v1405 = vadd.f32 %v1304, %v1373
        %v1406 = vadd.f32 %v1305, %v1374
        %v1407 = vadd.f32 %v1306, %v1375
        %v1408 = vadd.f32 %v1307, %v1376
        %v1409 = vadd.f32 %v1308, %v1377
        %v1410 = vadd.f32 %v1309, %v1378
        %v1411 = vadd.f32 %v1310, %v1379
        %v1412 = vadd.f32 %v1311, %v1380
        %v1413 = vadd.f32 %v1312, %v1381
        %v1414 = vadd.f32 %v1313, %v1382
        %v1415 = vadd.f32 %v1314, %v1383
        %v1416 = vadd.f32 %v1315, %v1384
        %v1417 = vadd.f32 %v1316, %v1385
        %v1418 = vadd.f32 %v1317, %v1386
        %v1419 = vadd.f32 %v1318, %v1387
        %v1420 = vadd.f32 %v1319, %v1388
        %v1421 = vld [vmem:[%s1320 + $0x1] sm:$0xff]
        %v1422 = vld [vmem:[%s1320 + $0x9] sm:$0xff]
        %v1423 = vld [vmem:[%s1320 + $0x19] sm:$0xff]
        %v1424 = vld [vmem:[%s1320 + $0x21] sm:$0xff]
        %v1425 = vld [vmem:[%s1320 + $0x31] sm:$0xff]
        %v1426 = vld [vmem:[%s1320 + $0x39] sm:$0xff]
        %v1427 = vld [vmem:[%s1320 + $0x49] sm:$0xff]
        %v1428 = vld [vmem:[%s1320 + $0x51] sm:$0xff]
        %v1429 = vld [vmem:[%s1320 + $0x61] sm:$0xff]
        %v1430 = vld [vmem:[%s1320 + $0x69] sm:$0xff]
        %v1431 = vld [vmem:[%s1320 + $0x79] sm:$0xff]
        %v1432 = vld [vmem:[%s1320 + $0x81] sm:$0xff]
        %v1433 = vld [vmem:[%s1320 + $0x91] sm:$0xff]
        %v1434 = vld [vmem:[%s1320 + $0x99] sm:$0xff]
        %v1435 = vld [vmem:[%s1320 + $0xa9] sm:$0xff]
        %v1436 = vld [vmem:[%s1320 + $0xb1] sm:$0xff]
        %v1437 = vld [vmem:[%s1320 + $0xc1] sm:$0xff]
        %v1438 = vld [vmem:[%s1320 + $0xc9] sm:$0xff]
        %v1439 = vld [vmem:[%s1320 + $0xd9] sm:$0xff]
        %v1440 = vld [vmem:[%s1320 + $0xe1] sm:$0xff]
        %v1441 = vld [vmem:[%s1320 + $0xf1] sm:$0xff]
        %v1442 = vld [vmem:[%s1320 + $0xf9] sm:$0xff]
        %v1443 = vld [vmem:[%s1320 + $0x109] sm:$0xff]
        %v1444 = vld [vmem:[%s1320 + $0x111] sm:$0xff]
        %v1445 = vld [vmem:[%s1320 + $0x121] sm:$0xff]
        %v1446 = vld [vmem:[%s1320 + $0x129] sm:$0xff]
        %v1447 = vld [vmem:[%s1320 + $0x139] sm:$0xff]
        %v1448 = vld [vmem:[%s1320 + $0x141] sm:$0xff]
        %v1449 = vld [vmem:[%s1320 + $0x151] sm:$0xff]
        %v1450 = vld [vmem:[%s1320 + $0x159] sm:$0xff]
        %v1451 = vld [vmem:[%s1320 + $0x169] sm:$0xff]
        %v1452 = vld [vmem:[%s1320 + $0x171] sm:$0xff]
        %v1453 = vlaneseq
        %v1454 = vshrl.u32 %v1453, 7
        %v1455 = vsub.s32 7, %v1454
        %v1456 = vrot.slane %v750, %v1455
        %v1457 = vmul.f32 %v1421, %v1456
        %v1458 = vmul.f32 %v1422, %v1456
        %v1459 = vmul.f32 %v1423, %v1456
        %v1460 = vmul.f32 %v1424, %v1456
        %v1461 = vmul.f32 %v1425, %v1456
        %v1462 = vmul.f32 %v1426, %v1456
        %v1463 = vmul.f32 %v1427, %v1456
        %v1464 = vmul.f32 %v1428, %v1456
        %v1465 = vmul.f32 %v1429, %v1456
        %v1466 = vmul.f32 %v1430, %v1456
        %v1467 = vmul.f32 %v1431, %v1456
        %v1468 = vmul.f32 %v1432, %v1456
        %v1469 = vmul.f32 %v1433, %v1456
        %v1470 = vmul.f32 %v1434, %v1456
        %v1471 = vmul.f32 %v1435, %v1456
        %v1472 = vmul.f32 %v1436, %v1456
        %v1473 = vmul.f32 %v1437, %v1456
        %v1474 = vmul.f32 %v1438, %v1456
        %v1475 = vmul.f32 %v1439, %v1456
        %v1476 = vmul.f32 %v1440, %v1456
        %v1477 = vmul.f32 %v1441, %v1456
        %v1478 = vmul.f32 %v1442, %v1456
        %v1479 = vmul.f32 %v1443, %v1456
        %v1480 = vmul.f32 %v1444, %v1456
        %v1481 = vmul.f32 %v1445, %v1456
        %v1482 = vmul.f32 %v1446, %v1456
        %v1483 = vmul.f32 %v1447, %v1456
        %v1484 = vmul.f32 %v1448, %v1456
        %v1485 = vmul.f32 %v1449, %v1456
        %v1486 = vmul.f32 %v1450, %v1456
        %v1487 = vmul.f32 %v1451, %v1456
        %v1488 = vmul.f32 %v1452, %v1456
        %v1489 = vadd.f32 %v1389, %v1457
        %v1490 = vadd.f32 %v1390, %v1458
        %v1491 = vadd.f32 %v1391, %v1459
        %v1492 = vadd.f32 %v1392, %v1460
        %v1493 = vadd.f32 %v1393, %v1461
        %v1494 = vadd.f32 %v1394, %v1462
        %v1495 = vadd.f32 %v1395, %v1463
        %v1496 = vadd.f32 %v1396, %v1464
        %v1497 = vadd.f32 %v1397, %v1465
        %v1498 = vadd.f32 %v1398, %v1466
        %v1499 = vadd.f32 %v1399, %v1467
        %v1500 = vadd.f32 %v1400, %v1468
        %v1501 = vadd.f32 %v1401, %v1469
        %v1502 = vadd.f32 %v1402, %v1470
        %v1503 = vadd.f32 %v1403, %v1471
        %v1504 = vadd.f32 %v1404, %v1472
        %v1505 = vadd.f32 %v1405, %v1473
        %v1506 = vadd.f32 %v1406, %v1474
        %v1507 = vadd.f32 %v1407, %v1475
        %v1508 = vadd.f32 %v1408, %v1476
        %v1509 = vadd.f32 %v1409, %v1477
        %v1510 = vadd.f32 %v1410, %v1478
        %v1511 = vadd.f32 %v1411, %v1479
        %v1512 = vadd.f32 %v1412, %v1480
        %v1513 = vadd.f32 %v1413, %v1481
        %v1514 = vadd.f32 %v1414, %v1482
        %v1515 = vadd.f32 %v1415, %v1483
        %v1516 = vadd.f32 %v1416, %v1484
        %v1517 = vadd.f32 %v1417, %v1485
        %v1518 = vadd.f32 %v1418, %v1486
        %v1519 = vadd.f32 %v1419, %v1487
        %v1520 = vadd.f32 %v1420, %v1488
        %v1521 = vld [vmem:[%s1320 + $0x2] sm:$0xff]
        %v1522 = vld [vmem:[%s1320 + $0xa] sm:$0xff]
        %v1523 = vld [vmem:[%s1320 + $0x1a] sm:$0xff]
        %v1524 = vld [vmem:[%s1320 + $0x22] sm:$0xff]
        %v1525 = vld [vmem:[%s1320 + $0x32] sm:$0xff]
        %v1526 = vld [vmem:[%s1320 + $0x3a] sm:$0xff]
        %v1527 = vld [vmem:[%s1320 + $0x4a] sm:$0xff]
        %v1528 = vld [vmem:[%s1320 + $0x52] sm:$0xff]
        %v1529 = vld [vmem:[%s1320 + $0x62] sm:$0xff]
        %v1530 = vld [vmem:[%s1320 + $0x6a] sm:$0xff]
        %v1531 = vld [vmem:[%s1320 + $0x7a] sm:$0xff]
        %v1532 = vld [vmem:[%s1320 + $0x82] sm:$0xff]
        %v1533 = vld [vmem:[%s1320 + $0x92] sm:$0xff]
        %v1534 = vld [vmem:[%s1320 + $0x9a] sm:$0xff]
        %v1535 = vld [vmem:[%s1320 + $0xaa] sm:$0xff]
        %v1536 = vld [vmem:[%s1320 + $0xb2] sm:$0xff]
        %v1537 = vld [vmem:[%s1320 + $0xc2] sm:$0xff]
        %v1538 = vld [vmem:[%s1320 + $0xca] sm:$0xff]
        %v1539 = vld [vmem:[%s1320 + $0xda] sm:$0xff]
        %v1540 = vld [vmem:[%s1320 + $0xe2] sm:$0xff]
        %v1541 = vld [vmem:[%s1320 + $0xf2] sm:$0xff]
        %v1542 = vld [vmem:[%s1320 + $0xfa] sm:$0xff]
        %v1543 = vld [vmem:[%s1320 + $0x10a] sm:$0xff]
        %v1544 = vld [vmem:[%s1320 + $0x112] sm:$0xff]
        %v1545 = vld [vmem:[%s1320 + $0x122] sm:$0xff]
        %v1546 = vld [vmem:[%s1320 + $0x12a] sm:$0xff]
        %v1547 = vld [vmem:[%s1320 + $0x13a] sm:$0xff]
        %v1548 = vld [vmem:[%s1320 + $0x142] sm:$0xff]
        %v1549 = vld [vmem:[%s1320 + $0x152] sm:$0xff]
        %v1550 = vld [vmem:[%s1320 + $0x15a] sm:$0xff]
        %v1551 = vld [vmem:[%s1320 + $0x16a] sm:$0xff]
        %v1552 = vld [vmem:[%s1320 + $0x172] sm:$0xff]
        %v1553 = vlaneseq
        %v1554 = vshrl.u32 %v1553, 7
        %v1555 = vsub.s32 0, %v1554
        %v1556 = vrot.slane %v751, %v1555
        %v1557 = vmul.f32 %v1521, %v1556
        %v1558 = vmul.f32 %v1522, %v1556
        %v1559 = vmul.f32 %v1523, %v1556
        %v1560 = vmul.f32 %v1524, %v1556
        %v1561 = vmul.f32 %v1525, %v1556
        %v1562 = vmul.f32 %v1526, %v1556
        %v1563 = vmul.f32 %v1527, %v1556
        %v1564 = vmul.f32 %v1528, %v1556
        %v1565 = vmul.f32 %v1529, %v1556
        %v1566 = vmul.f32 %v1530, %v1556
        %v1567 = vmul.f32 %v1531, %v1556
        %v1568 = vmul.f32 %v1532, %v1556
        %v1569 = vmul.f32 %v1533, %v1556
        %v1570 = vmul.f32 %v1534, %v1556
        %v1571 = vmul.f32 %v1535, %v1556
        %v1572 = vmul.f32 %v1536, %v1556
        %v1573 = vmul.f32 %v1537, %v1556
        %v1574 = vmul.f32 %v1538, %v1556
        %v1575 = vmul.f32 %v1539, %v1556
        %v1576 = vmul.f32 %v1540, %v1556
        %v1577 = vmul.f32 %v1541, %v1556
        %v1578 = vmul.f32 %v1542, %v1556
        %v1579 = vmul.f32 %v1543, %v1556
        %v1580 = vmul.f32 %v1544, %v1556
        %v1581 = vmul.f32 %v1545, %v1556
        %v1582 = vmul.f32 %v1546, %v1556
        %v1583 = vmul.f32 %v1547, %v1556
        %v1584 = vmul.f32 %v1548, %v1556
        %v1585 = vmul.f32 %v1549, %v1556
        %v1586 = vmul.f32 %v1550, %v1556
        %v1587 = vmul.f32 %v1551, %v1556
        %v1588 = vmul.f32 %v1552, %v1556
        %v1589 = vadd.f32 %v1489, %v1557
        %v1590 = vadd.f32 %v1490, %v1558
        %v1591 = vadd.f32 %v1491, %v1559
        %v1592 = vadd.f32 %v1492, %v1560
        %v1593 = vadd.f32 %v1493, %v1561
        %v1594 = vadd.f32 %v1494, %v1562
        %v1595 = vadd.f32 %v1495, %v1563
        %v1596 = vadd.f32 %v1496, %v1564
        %v1597 = vadd.f32 %v1497, %v1565
        %v1598 = vadd.f32 %v1498, %v1566
        %v1599 = vadd.f32 %v1499, %v1567
        %v1600 = vadd.f32 %v1500, %v1568
        %v1601 = vadd.f32 %v1501, %v1569
        %v1602 = vadd.f32 %v1502, %v1570
        %v1603 = vadd.f32 %v1503, %v1571
        %v1604 = vadd.f32 %v1504, %v1572
        %v1605 = vadd.f32 %v1505, %v1573
        %v1606 = vadd.f32 %v1506, %v1574
        %v1607 = vadd.f32 %v1507, %v1575
        %v1608 = vadd.f32 %v1508, %v1576
        %v1609 = vadd.f32 %v1509, %v1577
        %v1610 = vadd.f32 %v1510, %v1578
        %v1611 = vadd.f32 %v1511, %v1579
        %v1612 = vadd.f32 %v1512, %v1580
        %v1613 = vadd.f32 %v1513, %v1581
        %v1614 = vadd.f32 %v1514, %v1582
        %v1615 = vadd.f32 %v1515, %v1583
        %v1616 = vadd.f32 %v1516, %v1584
        %v1617 = vadd.f32 %v1517, %v1585
        %v1618 = vadd.f32 %v1518, %v1586
        %v1619 = vadd.f32 %v1519, %v1587
        %v1620 = vadd.f32 %v1520, %v1588
        %v1621 = vld [vmem:[%s2] sm:$0x1]
        %v1623 = vlaneseq
        %v1624 = vshrl.u32 %v1623, 7
        %v1625 = vsub.s32 0, %v1624
        %v1626 = vrot.slane %v1621, %v1625
        %v1628 = vadd.f32 %v1589, %v1626
        %v1629 = vadd.f32 %v1590, %v1626
        %v1630 = vadd.f32 %v1591, %v1626
        %v1631 = vadd.f32 %v1592, %v1626
        %v1632 = vadd.f32 %v1593, %v1626
        %v1633 = vadd.f32 %v1594, %v1626
        %v1634 = vadd.f32 %v1595, %v1626
        %v1635 = vadd.f32 %v1596, %v1626
        %v1636 = vadd.f32 %v1597, %v1626
        %v1637 = vadd.f32 %v1598, %v1626
        %v1638 = vadd.f32 %v1599, %v1626
        %v1639 = vadd.f32 %v1600, %v1626
        %v1640 = vadd.f32 %v1601, %v1626
        %v1641 = vadd.f32 %v1602, %v1626
        %v1642 = vadd.f32 %v1603, %v1626
        %v1643 = vadd.f32 %v1604, %v1626
        %v1644 = vadd.f32 %v1605, %v1626
        %v1645 = vadd.f32 %v1606, %v1626
        %v1646 = vadd.f32 %v1607, %v1626
        %v1647 = vadd.f32 %v1608, %v1626
        %v1648 = vadd.f32 %v1609, %v1626
        %v1649 = vadd.f32 %v1610, %v1626
        %v1650 = vadd.f32 %v1611, %v1626
        %v1651 = vadd.f32 %v1612, %v1626
        %v1652 = vadd.f32 %v1613, %v1626
        %v1653 = vadd.f32 %v1614, %v1626
        %v1654 = vadd.f32 %v1615, %v1626
        %v1655 = vadd.f32 %v1616, %v1626
        %v1656 = vadd.f32 %v1617, %v1626
        %v1657 = vadd.f32 %v1618, %v1626
        %v1658 = vadd.f32 %v1619, %v1626
        %v1659 = vadd.f32 %v1620, %v1626
        %v1660 = vpack.c.bf16 %v1629, %v1628
        %v1661 = vpack.c.bf16 %v1631, %v1630
        %v1662 = vpack.c.bf16 %v1633, %v1632
        %v1663 = vpack.c.bf16 %v1635, %v1634
        %v1664 = vpack.c.bf16 %v1637, %v1636
        %v1665 = vpack.c.bf16 %v1639, %v1638
        %v1666 = vpack.c.bf16 %v1641, %v1640
        %v1667 = vpack.c.bf16 %v1643, %v1642
        %v1668 = vpack.c.bf16 %v1645, %v1644
        %v1669 = vpack.c.bf16 %v1647, %v1646
        %v1670 = vpack.c.bf16 %v1649, %v1648
        %v1671 = vpack.c.bf16 %v1651, %v1650
        %v1672 = vpack.c.bf16 %v1653, %v1652
        %v1673 = vpack.c.bf16 %v1655, %v1654
        %v1674 = vpack.c.bf16 %v1657, %v1656
        %v1675 = vpack.c.bf16 %v1659, %v1658
        %v1676 = vld [vmem:[#allocation8] sm:$0xf]
        %v1677 = vld [vmem:[#allocation8 + $0x4] sm:$0xf]
        %v1678 = vld [vmem:[#allocation8 + $0x8] sm:$0xf]
        %v1679 = vld [vmem:[#allocation8 + $0xc] sm:$0xf]
        %v1680 = vld [vmem:[#allocation8 + $0x10] sm:$0xf]
        %v1681 = vld [vmem:[#allocation8 + $0x14] sm:$0xf]
        %v1682 = vld [vmem:[#allocation8 + $0x18] sm:$0xf]
        %v1683 = vld [vmem:[#allocation8 + $0x1c] sm:$0xf]
        %v1684 = vld [vmem:[#allocation8 + $0x20] sm:$0xf]
        %v1685 = vld [vmem:[#allocation8 + $0x24] sm:$0xf]
        %v1686 = vld [vmem:[#allocation8 + $0x28] sm:$0xf]
        %v1687 = vld [vmem:[#allocation8 + $0x2c] sm:$0xf]
        %v1688 = vld [vmem:[#allocation8 + $0x30] sm:$0xf]
        %v1689 = vld [vmem:[#allocation8 + $0x34] sm:$0xf]
        %v1690 = vld [vmem:[#allocation8 + $0x38] sm:$0xf]
        %v1691 = vld [vmem:[#allocation8 + $0x3c] sm:$0xf]
        %v1692 = vld [vmem:[%s4] sm:$0x1]
        %v1694 = vlaneseq
        %v1695 = vshrl.u32 %v1694, 7
        %v1696 = vsub.s32 0, %v1695
        %v1697 = vrot.slane %v1692, %v1696
        %v1715 = vunpack.c.l.b16 %v1676
        %v1716 = vunpack.c.l.b16 %v1677
        %v1717 = vunpack.c.l.b16 %v1678
        %v1718 = vunpack.c.l.b16 %v1679
        %v1719 = vunpack.c.l.b16 %v1680
        %v1720 = vunpack.c.l.b16 %v1681
        %v1721 = vunpack.c.l.b16 %v1682
        %v1722 = vunpack.c.l.b16 %v1683
        %v1723 = vunpack.c.l.b16 %v1684
        %v1724 = vunpack.c.l.b16 %v1685
        %v1725 = vunpack.c.l.b16 %v1686
        %v1726 = vunpack.c.l.b16 %v1687
        %v1727 = vunpack.c.l.b16 %v1688
        %v1728 = vunpack.c.l.b16 %v1689
        %v1729 = vunpack.c.l.b16 %v1690
        %v1730 = vunpack.c.l.b16 %v1691
        %v1731 = vpack.c.b16 %v1716, %v1715
        %v1732 = vpack.c.b16 %v1718, %v1717
        %v1733 = vpack.c.b16 %v1720, %v1719
        %v1734 = vpack.c.b16 %v1722, %v1721
        %v1735 = vpack.c.b16 %v1724, %v1723
        %v1736 = vpack.c.b16 %v1726, %v1725
        %v1737 = vpack.c.b16 %v1728, %v1727
        %v1738 = vpack.c.b16 %v1730, %v1729
        %1747 = vmatprep.subr.bf16.mxu0 0
        %1748 = vmatpush1.bf16.msra.mxu0 %v1731
        %1749 = vmatprep.subr.bf16.mxu0 0
        %1750 = vmatpush1.bf16.msra.mxu0 %v1732
        %1751 = vmatprep.subr.bf16.mxu0 0
        %1752 = vmatpush1.bf16.msra.mxu0 %v1733
        %1753 = vmatprep.subr.bf16.mxu0 0
        %1754 = vmatpush1.bf16.msra.mxu0 %v1734
        %1755 = vmatprep.subr.bf16.mxu0 0
        %1756 = vmatpush1.bf16.msra.mxu0 %v1735
        %1757 = vmatprep.subr.bf16.mxu0 0
        %1758 = vmatpush1.bf16.msra.mxu0 %v1736
        %1759 = vmatprep.subr.bf16.mxu0 0
        %1760 = vmatpush1.bf16.msra.mxu0 %v1737
        %1761 = vmatprep.subr.bf16.mxu0 0
        %1762 = vmatpush1.bf16.msra.mxu0 %v1738
        %1763 = vmatprep.subr.bf16.mxu0 0
        %1764 = vmatpush1.bf16.msra.mxu0 0
        %1765 = vmatprep.subr.bf16.mxu0 0
        %1766 = vmatpush1.bf16.msra.mxu0 0
        %1767 = vmatprep.subr.bf16.mxu0 0
        %1768 = vmatpush1.bf16.msra.mxu0 0
        %1769 = vmatprep.subr.bf16.mxu0 0
        %1770 = vmatpush1.bf16.msra.mxu0 0
        %1771 = vmatprep.subr.bf16.mxu0 0
        %1772 = vmatpush1.bf16.msra.mxu0 0
        %1773 = vmatprep.subr.bf16.mxu0 0
        %1774 = vmatpush1.bf16.msra.mxu0 0
        %1775 = vmatprep.subr.bf16.mxu0 0
        %1776 = vmatpush1.bf16.msra.mxu0 0
        %1777 = vmatprep.subr.bf16.mxu0 0
        %1778 = vmatpush1.bf16.msra.mxu0 0
        %1779 = vmatprep.mubr.bf16.mxu0 0
        %1780 = vmatmul.mubr.bf16.gmra.mrb[0].mxu0 %v1660
        %v1781 = vpop.f32.mrb[0].mxu0
        %v1782 = vadd.f32 %v1697, %v1781
        %v1783 = vpop.f32.mrb[0].mxu0
        %v1784 = vpop.f32.mrb[0].mxu0
        %v1785 = vadd.f32 %v1697, %v1784
        %v1786 = vpop.f32.mrb[0].mxu0
        %1787 = vmatprep.mubr.bf16.mxu0 0
        %1788 = vmatmul.mubr.bf16.gmra.mrb[0].mxu0 %v1661
        %v1789 = vpop.f32.mrb[0].mxu0
        %v1790 = vadd.f32 %v1697, %v1789
        %v1791 = vpop.f32.mrb[0].mxu0
        %v1792 = vpop.f32.mrb[0].mxu0
        %v1793 = vadd.f32 %v1697, %v1792
        %v1794 = vpop.f32.mrb[0].mxu0
        %1795 = vmatprep.mubr.bf16.mxu0 0
        %1796 = vmatmul.mubr.bf16.gmra.mrb[0].mxu0 %v1662
        %v1797 = vpop.f32.mrb[0].mxu0
        %v1798 = vadd.f32 %v1697, %v1797
        %v1799 = vpop.f32.mrb[0].mxu0
        %v1800 = vpop.f32.mrb[0].mxu0
        %v1801 = vadd.f32 %v1697, %v1800
        %v1802 = vpop.f32.mrb[0].mxu0
        %1803 = vmatprep.mubr.bf16.mxu0 0
        %1804 = vmatmul.mubr.bf16.gmra.mrb[0].mxu0 %v1663
        %v1805 = vpop.f32.mrb[0].mxu0
        %v1806 = vadd.f32 %v1697, %v1805
        %v1807 = vpop.f32.mrb[0].mxu0
        %v1808 = vpop.f32.mrb[0].mxu0
        %v1809 = vadd.f32 %v1697, %v1808
        %v1810 = vpop.f32.mrb[0].mxu0
        %1811 = vmatprep.mubr.bf16.mxu0 0
        %1812 = vmatmul.mubr.bf16.gmra.mrb[0].mxu0 %v1664
        %v1813 = vpop.f32.mrb[0].mxu0
        %v1814 = vadd.f32 %v1697, %v1813
        %v1815 = vpop.f32.mrb[0].mxu0
        %v1816 = vpop.f32.mrb[0].mxu0
        %v1817 = vadd.f32 %v1697, %v1816
        %v1818 = vpop.f32.mrb[0].mxu0
        %1819 = vmatprep.mubr.bf16.mxu0 0
        %1820 = vmatmul.mubr.bf16.gmra.mrb[0].mxu0 %v1665
        %v1821 = vpop.f32.mrb[0].mxu0
        %v1822 = vadd.f32 %v1697, %v1821
        %v1823 = vpop.f32.mrb[0].mxu0
        %v1824 = vpop.f32.mrb[0].mxu0
        %v1825 = vadd.f32 %v1697, %v1824
        %v1826 = vpop.f32.mrb[0].mxu0
        %1827 = vmatprep.mubr.bf16.mxu0 0
        %1828 = vmatmul.mubr.bf16.gmra.mrb[0].mxu0 %v1666
        %v1829 = vpop.f32.mrb[0].mxu0
        %v1830 = vadd.f32 %v1697, %v1829
        %v1831 = vpop.f32.mrb[0].mxu0
        %v1832 = vpop.f32.mrb[0].mxu0
        %v1833 = vadd.f32 %v1697, %v1832
        %v1834 = vpop.f32.mrb[0].mxu0
        %1835 = vmatprep.mubr.bf16.mxu0 0
        %1836 = vmatmul.mubr.bf16.gmra.mrb[0].mxu0 %v1667
        %v1837 = vpop.f32.mrb[0].mxu0
        %v1838 = vadd.f32 %v1697, %v1837
        %v1839 = vpop.f32.mrb[0].mxu0
        %v1840 = vpop.f32.mrb[0].mxu0
        %v1841 = vadd.f32 %v1697, %v1840
        %v1842 = vpop.f32.mrb[0].mxu0
        %1843 = vmatprep.mubr.bf16.mxu0 0
        %1844 = vmatmul.mubr.bf16.gmra.mrb[0].mxu0 %v1668
        %v1845 = vpop.f32.mrb[0].mxu0
        %v1846 = vadd.f32 %v1697, %v1845
        %v1847 = vpop.f32.mrb[0].mxu0
        %v1848 = vpop.f32.mrb[0].mxu0
        %v1849 = vadd.f32 %v1697, %v1848
        %v1850 = vpop.f32.mrb[0].mxu0
        %1851 = vmatprep.mubr.bf16.mxu0 0
        %1852 = vmatmul.mubr.bf16.gmra.mrb[0].mxu0 %v1669
        %v1853 = vpop.f32.mrb[0].mxu0
        %v1854 = vadd.f32 %v1697, %v1853
        %v1855 = vpop.f32.mrb[0].mxu0
        %v1856 = vpop.f32.mrb[0].mxu0
        %v1857 = vadd.f32 %v1697, %v1856
        %v1858 = vpop.f32.mrb[0].mxu0
        %1859 = vmatprep.mubr.bf16.mxu0 0
        %1860 = vmatmul.mubr.bf16.gmra.mrb[0].mxu0 %v1670
        %v1861 = vpop.f32.mrb[0].mxu0
        %v1862 = vadd.f32 %v1697, %v1861
        %v1863 = vpop.f32.mrb[0].mxu0
        %v1864 = vpop.f32.mrb[0].mxu0
        %v1865 = vadd.f32 %v1697, %v1864
        %v1866 = vpop.f32.mrb[0].mxu0
        %1867 = vmatprep.mubr.bf16.mxu0 0
        %1868 = vmatmul.mubr.bf16.gmra.mrb[0].mxu0 %v1671
        %v1869 = vpop.f32.mrb[0].mxu0
        %v1870 = vadd.f32 %v1697, %v1869
        %v1871 = vpop.f32.mrb[0].mxu0
        %v1872 = vpop.f32.mrb[0].mxu0
        %v1873 = vadd.f32 %v1697, %v1872
        %v1874 = vpop.f32.mrb[0].mxu0
        %1875 = vmatprep.mubr.bf16.mxu0 0
        %1876 = vmatmul.mubr.bf16.gmra.mrb[0].mxu0 %v1672
        %v1877 = vpop.f32.mrb[0].mxu0
        %v1878 = vadd.f32 %v1697, %v1877
        %v1879 = vpop.f32.mrb[0].mxu0
        %v1880 = vpop.f32.mrb[0].mxu0
        %v1881 = vadd.f32 %v1697, %v1880
        %v1882 = vpop.f32.mrb[0].mxu0
        %1883 = vmatprep.mubr.bf16.mxu0 0
        %1884 = vmatmul.mubr.bf16.gmra.mrb[0].mxu0 %v1673
        %v1885 = vpop.f32.mrb[0].mxu0
        %v1886 = vadd.f32 %v1697, %v1885
        %v1887 = vpop.f32.mrb[0].mxu0
        %v1888 = vpop.f32.mrb[0].mxu0
        %v1889 = vadd.f32 %v1697, %v1888
        %v1890 = vpop.f32.mrb[0].mxu0
        %1891 = vmatprep.mubr.bf16.mxu0 0
        %1892 = vmatmul.mubr.bf16.gmra.mrb[0].mxu0 %v1674
        %v1893 = vpop.f32.mrb[0].mxu0
        %v1894 = vadd.f32 %v1697, %v1893
        %v1895 = vpop.f32.mrb[0].mxu0
        %v1896 = vpop.f32.mrb[0].mxu0
        %v1897 = vadd.f32 %v1697, %v1896
        %v1898 = vpop.f32.mrb[0].mxu0
        %1899 = vmatprep.mubr.bf16.mxu0 0
        %1900 = vmatmul.mubr.bf16.gmra.mrb[0].mxu0 %v1675
        %v1901 = vpop.f32.mrb[0].mxu0
        %v1902 = vadd.f32 %v1697, %v1901
        %v1903 = vpop.f32.mrb[0].mxu0
        %v1904 = vpop.f32.mrb[0].mxu0
        %v1905 = vadd.f32 %v1697, %v1904
        %v1906 = vpop.f32.mrb[0].mxu0
        %1907 = vdwg.mxu0
        %v1908 = vmax.f32 %v1782, 0.0
        %v1909 = vmax.f32 %v1785, 0.0
        %v1910 = vmax.f32 %v1790, 0.0
        %v1911 = vmax.f32 %v1793, 0.0
        %v1912 = vmax.f32 %v1798, 0.0
        %v1913 = vmax.f32 %v1801, 0.0
        %v1914 = vmax.f32 %v1806, 0.0
        %v1915 = vmax.f32 %v1809, 0.0
        %v1916 = vmax.f32 %v1814, 0.0
        %v1917 = vmax.f32 %v1817, 0.0
        %v1918 = vmax.f32 %v1822, 0.0
        %v1919 = vmax.f32 %v1825, 0.0
        %v1920 = vmax.f32 %v1830, 0.0
        %v1921 = vmax.f32 %v1833, 0.0
        %v1922 = vmax.f32 %v1838, 0.0
        %v1923 = vmax.f32 %v1841, 0.0
        %v1924 = vmax.f32 %v1846, 0.0
        %v1925 = vmax.f32 %v1849, 0.0
        %v1926 = vmax.f32 %v1854, 0.0
        %v1927 = vmax.f32 %v1857, 0.0
        %v1928 = vmax.f32 %v1862, 0.0
        %v1929 = vmax.f32 %v1865, 0.0
        %v1930 = vmax.f32 %v1870, 0.0
        %v1931 = vmax.f32 %v1873, 0.0
        %v1932 = vmax.f32 %v1878, 0.0
        %v1933 = vmax.f32 %v1881, 0.0
        %v1934 = vmax.f32 %v1886, 0.0
        %v1935 = vmax.f32 %v1889, 0.0
        %v1936 = vmax.f32 %v1894, 0.0
        %v1937 = vmax.f32 %v1897, 0.0
        %v1938 = vmax.f32 %v1902, 0.0
        %v1939 = vmax.f32 %v1905, 0.0
        %1940 = vst [vmem:[%s717 + $0x1] sm:$0xff] %v1908
        %1941 = vst [vmem:[%s717 + $0x9] sm:$0xff] %v1909
        %1942 = vst [vmem:[%s717 + $0x19] sm:$0xff] %v1910
        %1943 = vst [vmem:[%s717 + $0x21] sm:$0xff] %v1911
        %1944 = vst [vmem:[%s717 + $0x31] sm:$0xff] %v1912
        %1945 = vst [vmem:[%s717 + $0x39] sm:$0xff] %v1913
        %1946 = vst [vmem:[%s717 + $0x49] sm:$0xff] %v1914
        %1947 = vst [vmem:[%s717 + $0x51] sm:$0xff] %v1915
        %1948 = vst [vmem:[%s717 + $0x61] sm:$0xff] %v1916
        %1949 = vst [vmem:[%s717 + $0x69] sm:$0xff] %v1917
        %1950 = vst [vmem:[%s717 + $0x79] sm:$0xff] %v1918
        %1951 = vst [vmem:[%s717 + $0x81] sm:$0xff] %v1919
        %1952 = vst [vmem:[%s717 + $0x91] sm:$0xff] %v1920
        %1953 = vst [vmem:[%s717 + $0x99] sm:$0xff] %v1921
        %1954 = vst [vmem:[%s717 + $0xa9] sm:$0xff] %v1922
        %1955 = vst [vmem:[%s717 + $0xb1] sm:$0xff] %v1923
        %1956 = vst [vmem:[%s717 + $0xc1] sm:$0xff] %v1924
        %1957 = vst [vmem:[%s717 + $0xc9] sm:$0xff] %v1925
        %1958 = vst [vmem:[%s717 + $0xd9] sm:$0xff] %v1926
        %1959 = vst [vmem:[%s717 + $0xe1] sm:$0xff] %v1927
        %1960 = vst [vmem:[%s717 + $0xf1] sm:$0xff] %v1928
        %1961 = vst [vmem:[%s717 + $0xf9] sm:$0xff] %v1929
        %1962 = vst [vmem:[%s717 + $0x109] sm:$0xff] %v1930
        %1963 = vst [vmem:[%s717 + $0x111] sm:$0xff] %v1931
        %1964 = vst [vmem:[%s717 + $0x121] sm:$0xff] %v1932
        %1965 = vst [vmem:[%s717 + $0x129] sm:$0xff] %v1933
        %1966 = vst [vmem:[%s717 + $0x139] sm:$0xff] %v1934
        %1967 = vst [vmem:[%s717 + $0x141] sm:$0xff] %v1935
        %1968 = vst [vmem:[%s717 + $0x151] sm:$0xff] %v1936
        %1969 = vst [vmem:[%s717 + $0x159] sm:$0xff] %v1937
        %1970 = vst [vmem:[%s717 + $0x169] sm:$0xff] %v1938
        %1971 = vst [vmem:[%s717 + $0x171] sm:$0xff] %v1939
        %v1972 = vld [vmem:[%s5] sm:$0xff]
        %v1973 = vld [vmem:[%s5 + $0x8] sm:$0x1]
        %v1974 = vld [vmem:[#allocation2] sm:$0xff]
        %v1975 = vld [vmem:[#allocation2 + $0x8] sm:$0xff]
        %v1976 = vld [vmem:[#allocation2 + $0x18] sm:$0xff]
        %v1977 = vld [vmem:[#allocation2 + $0x20] sm:$0xff]
        %v1978 = vld [vmem:[#allocation2 + $0x30] sm:$0xff]
        %v1979 = vld [vmem:[#allocation2 + $0x38] sm:$0xff]
        %v1980 = vld [vmem:[#allocation2 + $0x48] sm:$0xff]
        %v1981 = vld [vmem:[#allocation2 + $0x50] sm:$0xff]
        %v1982 = vld [vmem:[#allocation2 + $0x60] sm:$0xff]
        %v1983 = vld [vmem:[#allocation2 + $0x68] sm:$0xff]
        %v1984 = vld [vmem:[#allocation2 + $0x78] sm:$0xff]
        %v1985 = vld [vmem:[#allocation2 + $0x80] sm:$0xff]
        %v1986 = vld [vmem:[#allocation2 + $0x90] sm:$0xff]
        %v1987 = vld [vmem:[#allocation2 + $0x98] sm:$0xff]
        %v1988 = vld [vmem:[#allocation2 + $0xa8] sm:$0xff]
        %v1989 = vld [vmem:[#allocation2 + $0xb0] sm:$0xff]
        %v1990 = vld [vmem:[#allocation2 + $0xc0] sm:$0xff]
        %v1991 = vld [vmem:[#allocation2 + $0xc8] sm:$0xff]
        %v1992 = vld [vmem:[#allocation2 + $0xd8] sm:$0xff]
        %v1993 = vld [vmem:[#allocation2 + $0xe0] sm:$0xff]
        %v1994 = vld [vmem:[#allocation2 + $0xf0] sm:$0xff]
        %v1995 = vld [vmem:[#allocation2 + $0xf8] sm:$0xff]
        %v1996 = vld [vmem:[#allocation2 + $0x108] sm:$0xff]
        %v1997 = vld [vmem:[#allocation2 + $0x110] sm:$0xff]
        %v1998 = vld [vmem:[#allocation2 + $0x120] sm:$0xff]
        %v1999 = vld [vmem:[#allocation2 + $0x128] sm:$0xff]
        %v2000 = vld [vmem:[#allocation2 + $0x138] sm:$0xff]
        %v2001 = vld [vmem:[#allocation2 + $0x140] sm:$0xff]
        %v2002 = vld [vmem:[#allocation2 + $0x150] sm:$0xff]
        %v2003 = vld [vmem:[#allocation2 + $0x158] sm:$0xff]
        %v2004 = vld [vmem:[#allocation2 + $0x168] sm:$0xff]
        %v2005 = vld [vmem:[#allocation2 + $0x170] sm:$0xff]
        %v2006 = vlaneseq
        %v2007 = vshrl.u32 %v2006, 7
        %v2008 = vsub.s32 0, %v2007
        %v2009 = vrot.slane %v1972, %v2008
        %v2010 = vmul.f32 %v1974, %v2009
        %v2011 = vmul.f32 %v1975, %v2009
        %v2012 = vmul.f32 %v1976, %v2009
        %v2013 = vmul.f32 %v1977, %v2009
        %v2014 = vmul.f32 %v1978, %v2009
        %v2015 = vmul.f32 %v1979, %v2009
        %v2016 = vmul.f32 %v1980, %v2009
        %v2017 = vmul.f32 %v1981, %v2009
        %v2018 = vmul.f32 %v1982, %v2009
        %v2019 = vmul.f32 %v1983, %v2009
        %v2020 = vmul.f32 %v1984, %v2009
        %v2021 = vmul.f32 %v1985, %v2009
        %v2022 = vmul.f32 %v1986, %v2009
        %v2023 = vmul.f32 %v1987, %v2009
        %v2024 = vmul.f32 %v1988, %v2009
        %v2025 = vmul.f32 %v1989, %v2009
        %v2026 = vmul.f32 %v1990, %v2009
        %v2027 = vmul.f32 %v1991, %v2009
        %v2028 = vmul.f32 %v1992, %v2009
        %v2029 = vmul.f32 %v1993, %v2009
        %v2030 = vmul.f32 %v1994, %v2009
        %v2031 = vmul.f32 %v1995, %v2009
        %v2032 = vmul.f32 %v1996, %v2009
        %v2033 = vmul.f32 %v1997, %v2009
        %v2034 = vmul.f32 %v1998, %v2009
        %v2035 = vmul.f32 %v1999, %v2009
        %v2036 = vmul.f32 %v2000, %v2009
        %v2037 = vmul.f32 %v2001, %v2009
        %v2038 = vmul.f32 %v2002, %v2009
        %v2039 = vmul.f32 %v2003, %v2009
        %v2040 = vmul.f32 %v2004, %v2009
        %v2041 = vmul.f32 %v2005, %v2009
        %v2042 = vld [vmem:[#allocation2 + $0x1] sm:$0xff]
        %v2043 = vld [vmem:[#allocation2 + $0x9] sm:$0xff]
        %v2044 = vld [vmem:[#allocation2 + $0x19] sm:$0xff]
        %v2045 = vld [vmem:[#allocation2 + $0x21] sm:$0xff]
        %v2046 = vld [vmem:[#allocation2 + $0x31] sm:$0xff]
        %v2047 = vld [vmem:[#allocation2 + $0x39] sm:$0xff]
        %v2048 = vld [vmem:[#allocation2 + $0x49] sm:$0xff]
        %v2049 = vld [vmem:[#allocation2 + $0x51] sm:$0xff]
        %v2050 = vld [vmem:[#allocation2 + $0x61] sm:$0xff]
        %v2051 = vld [vmem:[#allocation2 + $0x69] sm:$0xff]
        %v2052 = vld [vmem:[#allocation2 + $0x79] sm:$0xff]
        %v2053 = vld [vmem:[#allocation2 + $0x81] sm:$0xff]
        %v2054 = vld [vmem:[#allocation2 + $0x91] sm:$0xff]
        %v2055 = vld [vmem:[#allocation2 + $0x99] sm:$0xff]
        %v2056 = vld [vmem:[#allocation2 + $0xa9] sm:$0xff]
        %v2057 = vld [vmem:[#allocation2 + $0xb1] sm:$0xff]
        %v2058 = vld [vmem:[#allocation2 + $0xc1] sm:$0xff]
        %v2059 = vld [vmem:[#allocation2 + $0xc9] sm:$0xff]
        %v2060 = vld [vmem:[#allocation2 + $0xd9] sm:$0xff]
        %v2061 = vld [vmem:[#allocation2 + $0xe1] sm:$0xff]
        %v2062 = vld [vmem:[#allocation2 + $0xf1] sm:$0xff]
        %v2063 = vld [vmem:[#allocation2 + $0xf9] sm:$0xff]
        %v2064 = vld [vmem:[#allocation2 + $0x109] sm:$0xff]
        %v2065 = vld [vmem:[#allocation2 + $0x111] sm:$0xff]
        %v2066 = vld [vmem:[#allocation2 + $0x121] sm:$0xff]
        %v2067 = vld [vmem:[#allocation2 + $0x129] sm:$0xff]
        %v2068 = vld [vmem:[#allocation2 + $0x139] sm:$0xff]
        %v2069 = vld [vmem:[#allocation2 + $0x141] sm:$0xff]
        %v2070 = vld [vmem:[#allocation2 + $0x151] sm:$0xff]
        %v2071 = vld [vmem:[#allocation2 + $0x159] sm:$0xff]
        %v2072 = vld [vmem:[#allocation2 + $0x169] sm:$0xff]
        %v2073 = vld [vmem:[#allocation2 + $0x171] sm:$0xff]
        %v2074 = vlaneseq
        %v2075 = vshrl.u32 %v2074, 7
        %v2076 = vsub.s32 1, %v2075
        %v2077 = vrot.slane %v1972, %v2076
        %v2078 = vmul.f32 %v2042, %v2077
        %v2079 = vmul.f32 %v2043, %v2077
        %v2080 = vmul.f32 %v2044, %v2077
        %v2081 = vmul.f32 %v2045, %v2077
        %v2082 = vmul.f32 %v2046, %v2077
        %v2083 = vmul.f32 %v2047, %v2077
        %v2084 = vmul.f32 %v2048, %v2077
        %v2085 = vmul.f32 %v2049, %v2077
        %v2086 = vmul.f32 %v2050, %v2077
        %v2087 = vmul.f32 %v2051, %v2077
        %v2088 = vmul.f32 %v2052, %v2077
        %v2089 = vmul.f32 %v2053, %v2077
        %v2090 = vmul.f32 %v2054, %v2077
        %v2091 = vmul.f32 %v2055, %v2077
        %v2092 = vmul.f32 %v2056, %v2077
        %v2093 = vmul.f32 %v2057, %v2077
        %v2094 = vmul.f32 %v2058, %v2077
        %v2095 = vmul.f32 %v2059, %v2077
        %v2096 = vmul.f32 %v2060, %v2077
        %v2097 = vmul.f32 %v2061, %v2077
        %v2098 = vmul.f32 %v2062, %v2077
        %v2099 = vmul.f32 %v2063, %v2077
        %v2100 = vmul.f32 %v2064, %v2077
        %v2101 = vmul.f32 %v2065, %v2077
        %v2102 = vmul.f32 %v2066, %v2077
        %v2103 = vmul.f32 %v2067, %v2077
        %v2104 = vmul.f32 %v2068, %v2077
        %v2105 = vmul.f32 %v2069, %v2077
        %v2106 = vmul.f32 %v2070, %v2077
        %v2107 = vmul.f32 %v2071, %v2077
        %v2108 = vmul.f32 %v2072, %v2077
        %v2109 = vmul.f32 %v2073, %v2077
        %v2110 = vadd.f32 %v2010, %v2078
        %v2111 = vadd.f32 %v2011, %v2079
        %v2112 = vadd.f32 %v2012, %v2080
        %v2113 = vadd.f32 %v2013, %v2081
        %v2114 = vadd.f32 %v2014, %v2082
        %v2115 = vadd.f32 %v2015, %v2083
        %v2116 = vadd.f32 %v2016, %v2084
        %v2117 = vadd.f32 %v2017, %v2085
        %v2118 = vadd.f32 %v2018, %v2086
        %v2119 = vadd.f32 %v2019, %v2087
        %v2120 = vadd.f32 %v2020, %v2088
        %v2121 = vadd.f32 %v2021, %v2089
        %v2122 = vadd.f32 %v2022, %v2090
        %v2123 = vadd.f32 %v2023, %v2091
        %v2124 = vadd.f32 %v2024, %v2092
        %v2125 = vadd.f32 %v2025, %v2093
        %v2126 = vadd.f32 %v2026, %v2094
        %v2127 = vadd.f32 %v2027, %v2095
        %v2128 = vadd.f32 %v2028, %v2096
        %v2129 = vadd.f32 %v2029, %v2097
        %v2130 = vadd.f32 %v2030, %v2098
        %v2131 = vadd.f32 %v2031, %v2099
        %v2132 = vadd.f32 %v2032, %v2100
        %v2133 = vadd.f32 %v2033, %v2101
        %v2134 = vadd.f32 %v2034, %v2102
        %v2135 = vadd.f32 %v2035, %v2103
        %v2136 = vadd.f32 %v2036, %v2104
        %v2137 = vadd.f32 %v2037, %v2105
        %v2138 = vadd.f32 %v2038, %v2106
        %v2139 = vadd.f32 %v2039, %v2107
        %v2140 = vadd.f32 %v2040, %v2108
        %v2141 = vadd.f32 %v2041, %v2109
        %v2142 = vld [vmem:[#allocation2 + $0x2] sm:$0xff]
        %v2143 = vld [vmem:[#allocation2 + $0xa] sm:$0xff]
        %v2144 = vld [vmem:[#allocation2 + $0x1a] sm:$0xff]
        %v2145 = vld [vmem:[#allocation2 + $0x22] sm:$0xff]
        %v2146 = vld [vmem:[#allocation2 + $0x32] sm:$0xff]
        %v2147 = vld [vmem:[#allocation2 + $0x3a] sm:$0xff]
        %v2148 = vld [vmem:[#allocation2 + $0x4a] sm:$0xff]
        %v2149 = vld [vmem:[#allocation2 + $0x52] sm:$0xff]
        %v2150 = vld [vmem:[#allocation2 + $0x62] sm:$0xff]
        %v2151 = vld [vmem:[#allocation2 + $0x6a] sm:$0xff]
        %v2152 = vld [vmem:[#allocation2 + $0x7a] sm:$0xff]
        %v2153 = vld [vmem:[#allocation2 + $0x82] sm:$0xff]
        %v2154 = vld [vmem:[#allocation2 + $0x92] sm:$0xff]
        %v2155 = vld [vmem:[#allocation2 + $0x9a] sm:$0xff]
        %v2156 = vld [vmem:[#allocation2 + $0xaa] sm:$0xff]
        %v2157 = vld [vmem:[#allocation2 + $0xb2] sm:$0xff]
        %v2158 = vld [vmem:[#allocation2 + $0xc2] sm:$0xff]
        %v2159 = vld [vmem:[#allocation2 + $0xca] sm:$0xff]
        %v2160 = vld [vmem:[#allocation2 + $0xda] sm:$0xff]
        %v2161 = vld [vmem:[#allocation2 + $0xe2] sm:$0xff]
        %v2162 = vld [vmem:[#allocation2 + $0xf2] sm:$0xff]
        %v2163 = vld [vmem:[#allocation2 + $0xfa] sm:$0xff]
        %v2164 = vld [vmem:[#allocation2 + $0x10a] sm:$0xff]
        %v2165 = vld [vmem:[#allocation2 + $0x112] sm:$0xff]
        %v2166 = vld [vmem:[#allocation2 + $0x122] sm:$0xff]
        %v2167 = vld [vmem:[#allocation2 + $0x12a] sm:$0xff]
        %v2168 = vld [vmem:[#allocation2 + $0x13a] sm:$0xff]
        %v2169 = vld [vmem:[#allocation2 + $0x142] sm:$0xff]
        %v2170 = vld [vmem:[#allocation2 + $0x152] sm:$0xff]
        %v2171 = vld [vmem:[#allocation2 + $0x15a] sm:$0xff]
        %v2172 = vld [vmem:[#allocation2 + $0x16a] sm:$0xff]
        %v2173 = vld [vmem:[#allocation2 + $0x172] sm:$0xff]
        %v2174 = vlaneseq
        %v2175 = vshrl.u32 %v2174, 7
        %v2176 = vsub.s32 2, %v2175
        %v2177 = vrot.slane %v1972, %v2176
        %v2178 = vmul.f32 %v2142, %v2177
        %v2179 = vmul.f32 %v2143, %v2177
        %v2180 = vmul.f32 %v2144, %v2177
        %v2181 = vmul.f32 %v2145, %v2177
        %v2182 = vmul.f32 %v2146, %v2177
        %v2183 = vmul.f32 %v2147, %v2177
        %v2184 = vmul.f32 %v2148, %v2177
        %v2185 = vmul.f32 %v2149, %v2177
        %v2186 = vmul.f32 %v2150, %v2177
        %v2187 = vmul.f32 %v2151, %v2177
        %v2188 = vmul.f32 %v2152, %v2177
        %v2189 = vmul.f32 %v2153, %v2177
        %v2190 = vmul.f32 %v2154, %v2177
        %v2191 = vmul.f32 %v2155, %v2177
        %v2192 = vmul.f32 %v2156, %v2177
        %v2193 = vmul.f32 %v2157, %v2177
        %v2194 = vmul.f32 %v2158, %v2177
        %v2195 = vmul.f32 %v2159, %v2177
        %v2196 = vmul.f32 %v2160, %v2177
        %v2197 = vmul.f32 %v2161, %v2177
        %v2198 = vmul.f32 %v2162, %v2177
        %v2199 = vmul.f32 %v2163, %v2177
        %v2200 = vmul.f32 %v2164, %v2177
        %v2201 = vmul.f32 %v2165, %v2177
        %v2202 = vmul.f32 %v2166, %v2177
        %v2203 = vmul.f32 %v2167, %v2177
        %v2204 = vmul.f32 %v2168, %v2177
        %v2205 = vmul.f32 %v2169, %v2177
        %v2206 = vmul.f32 %v2170, %v2177
        %v2207 = vmul.f32 %v2171, %v2177
        %v2208 = vmul.f32 %v2172, %v2177
        %v2209 = vmul.f32 %v2173, %v2177
        %v2210 = vadd.f32 %v2110, %v2178
        %v2211 = vadd.f32 %v2111, %v2179
        %v2212 = vadd.f32 %v2112, %v2180
        %v2213 = vadd.f32 %v2113, %v2181
        %v2214 = vadd.f32 %v2114, %v2182
        %v2215 = vadd.f32 %v2115, %v2183
        %v2216 = vadd.f32 %v2116, %v2184
        %v2217 = vadd.f32 %v2117, %v2185
        %v2218 = vadd.f32 %v2118, %v2186
        %v2219 = vadd.f32 %v2119, %v2187
        %v2220 = vadd.f32 %v2120, %v2188
        %v2221 = vadd.f32 %v2121, %v2189
        %v2222 = vadd.f32 %v2122, %v2190
        %v2223 = vadd.f32 %v2123, %v2191
        %v2224 = vadd.f32 %v2124, %v2192
        %v2225 = vadd.f32 %v2125, %v2193
        %v2226 = vadd.f32 %v2126, %v2194
        %v2227 = vadd.f32 %v2127, %v2195
        %v2228 = vadd.f32 %v2128, %v2196
        %v2229 = vadd.f32 %v2129, %v2197
        %v2230 = vadd.f32 %v2130, %v2198
        %v2231 = vadd.f32 %v2131, %v2199
        %v2232 = vadd.f32 %v2132, %v2200
        %v2233 = vadd.f32 %v2133, %v2201
        %v2234 = vadd.f32 %v2134, %v2202
        %v2235 = vadd.f32 %v2135, %v2203
        %v2236 = vadd.f32 %v2136, %v2204
        %v2237 = vadd.f32 %v2137, %v2205
        %v2238 = vadd.f32 %v2138, %v2206
        %v2239 = vadd.f32 %v2139, %v2207
        %v2240 = vadd.f32 %v2140, %v2208
        %v2241 = vadd.f32 %v2141, %v2209
        %v2242 = vld [vmem:[%s717] sm:$0xff]
        %v2243 = vld [vmem:[%s717 + $0x8] sm:$0xff]
        %v2244 = vld [vmem:[%s717 + $0x18] sm:$0xff]
        %v2245 = vld [vmem:[%s717 + $0x20] sm:$0xff]
        %v2246 = vld [vmem:[%s717 + $0x30] sm:$0xff]
        %v2247 = vld [vmem:[%s717 + $0x38] sm:$0xff]
        %v2248 = vld [vmem:[%s717 + $0x48] sm:$0xff]
        %v2249 = vld [vmem:[%s717 + $0x50] sm:$0xff]
        %v2250 = vld [vmem:[%s717 + $0x60] sm:$0xff]
        %v2251 = vld [vmem:[%s717 + $0x68] sm:$0xff]
        %v2252 = vld [vmem:[%s717 + $0x78] sm:$0xff]
        %v2253 = vld [vmem:[%s717 + $0x80] sm:$0xff]
        %v2254 = vld [vmem:[%s717 + $0x90] sm:$0xff]
        %v2255 = vld [vmem:[%s717 + $0x98] sm:$0xff]
        %v2256 = vld [vmem:[%s717 + $0xa8] sm:$0xff]
        %v2257 = vld [vmem:[%s717 + $0xb0] sm:$0xff]
        %v2258 = vld [vmem:[%s717 + $0xc0] sm:$0xff]
        %v2259 = vld [vmem:[%s717 + $0xc8] sm:$0xff]
        %v2260 = vld [vmem:[%s717 + $0xd8] sm:$0xff]
        %v2261 = vld [vmem:[%s717 + $0xe0] sm:$0xff]
        %v2262 = vld [vmem:[%s717 + $0xf0] sm:$0xff]
        %v2263 = vld [vmem:[%s717 + $0xf8] sm:$0xff]
        %v2264 = vld [vmem:[%s717 + $0x108] sm:$0xff]
        %v2265 = vld [vmem:[%s717 + $0x110] sm:$0xff]
        %v2266 = vld [vmem:[%s717 + $0x120] sm:$0xff]
        %v2267 = vld [vmem:[%s717 + $0x128] sm:$0xff]
        %v2268 = vld [vmem:[%s717 + $0x138] sm:$0xff]
        %v2269 = vld [vmem:[%s717 + $0x140] sm:$0xff]
        %v2270 = vld [vmem:[%s717 + $0x150] sm:$0xff]
        %v2271 = vld [vmem:[%s717 + $0x158] sm:$0xff]
        %v2272 = vld [vmem:[%s717 + $0x168] sm:$0xff]
        %v2273 = vld [vmem:[%s717 + $0x170] sm:$0xff]
        %v2274 = vlaneseq
        %v2275 = vshrl.u32 %v2274, 7
        %v2276 = vsub.s32 3, %v2275
        %v2277 = vrot.slane %v1972, %v2276
        %v2278 = vmul.f32 %v2242, %v2277
        %v2279 = vmul.f32 %v2243, %v2277
        %v2280 = vmul.f32 %v2244, %v2277
        %v2281 = vmul.f32 %v2245, %v2277
        %v2282 = vmul.f32 %v2246, %v2277
        %v2283 = vmul.f32 %v2247, %v2277
        %v2284 = vmul.f32 %v2248, %v2277
        %v2285 = vmul.f32 %v2249, %v2277
        %v2286 = vmul.f32 %v2250, %v2277
        %v2287 = vmul.f32 %v2251, %v2277
        %v2288 = vmul.f32 %v2252, %v2277
        %v2289 = vmul.f32 %v2253, %v2277
        %v2290 = vmul.f32 %v2254, %v2277
        %v2291 = vmul.f32 %v2255, %v2277
        %v2292 = vmul.f32 %v2256, %v2277
        %v2293 = vmul.f32 %v2257, %v2277
        %v2294 = vmul.f32 %v2258, %v2277
        %v2295 = vmul.f32 %v2259, %v2277
        %v2296 = vmul.f32 %v2260, %v2277
        %v2297 = vmul.f32 %v2261, %v2277
        %v2298 = vmul.f32 %v2262, %v2277
        %v2299 = vmul.f32 %v2263, %v2277
        %v2300 = vmul.f32 %v2264, %v2277
        %v2301 = vmul.f32 %v2265, %v2277
        %v2302 = vmul.f32 %v2266, %v2277
        %v2303 = vmul.f32 %v2267, %v2277
        %v2304 = vmul.f32 %v2268, %v2277
        %v2305 = vmul.f32 %v2269, %v2277
        %v2306 = vmul.f32 %v2270, %v2277
        %v2307 = vmul.f32 %v2271, %v2277
        %v2308 = vmul.f32 %v2272, %v2277
        %v2309 = vmul.f32 %v2273, %v2277
        %v2310 = vadd.f32 %v2210, %v2278
        %v2311 = vadd.f32 %v2211, %v2279
        %v2312 = vadd.f32 %v2212, %v2280
        %v2313 = vadd.f32 %v2213, %v2281
        %v2314 = vadd.f32 %v2214, %v2282
        %v2315 = vadd.f32 %v2215, %v2283
        %v2316 = vadd.f32 %v2216, %v2284
        %v2317 = vadd.f32 %v2217, %v2285
        %v2318 = vadd.f32 %v2218, %v2286
        %v2319 = vadd.f32 %v2219, %v2287
        %v2320 = vadd.f32 %v2220, %v2288
        %v2321 = vadd.f32 %v2221, %v2289
        %v2322 = vadd.f32 %v2222, %v2290
        %v2323 = vadd.f32 %v2223, %v2291
        %v2324 = vadd.f32 %v2224, %v2292
        %v2325 = vadd.f32 %v2225, %v2293
        %v2326 = vadd.f32 %v2226, %v2294
        %v2327 = vadd.f32 %v2227, %v2295
        %v2328 = vadd.f32 %v2228, %v2296
        %v2329 = vadd.f32 %v2229, %v2297
        %v2330 = vadd.f32 %v2230, %v2298
        %v2331 = vadd.f32 %v2231, %v2299
        %v2332 = vadd.f32 %v2232, %v2300
        %v2333 = vadd.f32 %v2233, %v2301
        %v2334 = vadd.f32 %v2234, %v2302
        %v2335 = vadd.f32 %v2235, %v2303
        %v2336 = vadd.f32 %v2236, %v2304
        %v2337 = vadd.f32 %v2237, %v2305
        %v2338 = vadd.f32 %v2238, %v2306
        %v2339 = vadd.f32 %v2239, %v2307
        %v2340 = vadd.f32 %v2240, %v2308
        %v2341 = vadd.f32 %v2241, %v2309
        %v2342 = vld [vmem:[%s717 + $0x1] sm:$0xff]
        %v2343 = vld [vmem:[%s717 + $0x9] sm:$0xff]
        %v2344 = vld [vmem:[%s717 + $0x19] sm:$0xff]
        %v2345 = vld [vmem:[%s717 + $0x21] sm:$0xff]
        %v2346 = vld [vmem:[%s717 + $0x31] sm:$0xff]
        %v2347 = vld [vmem:[%s717 + $0x39] sm:$0xff]
        %v2348 = vld [vmem:[%s717 + $0x49] sm:$0xff]
        %v2349 = vld [vmem:[%s717 + $0x51] sm:$0xff]
        %v2350 = vld [vmem:[%s717 + $0x61] sm:$0xff]
        %v2351 = vld [vmem:[%s717 + $0x69] sm:$0xff]
        %v2352 = vld [vmem:[%s717 + $0x79] sm:$0xff]
        %v2353 = vld [vmem:[%s717 + $0x81] sm:$0xff]
        %v2354 = vld [vmem:[%s717 + $0x91] sm:$0xff]
        %v2355 = vld [vmem:[%s717 + $0x99] sm:$0xff]
        %v2356 = vld [vmem:[%s717 + $0xa9] sm:$0xff]
        %v2357 = vld [vmem:[%s717 + $0xb1] sm:$0xff]
        %v2358 = vld [vmem:[%s717 + $0xc1] sm:$0xff]
        %v2359 = vld [vmem:[%s717 + $0xc9] sm:$0xff]
        %v2360 = vld [vmem:[%s717 + $0xd9] sm:$0xff]
        %v2361 = vld [vmem:[%s717 + $0xe1] sm:$0xff]
        %v2362 = vld [vmem:[%s717 + $0xf1] sm:$0xff]
        %v2363 = vld [vmem:[%s717 + $0xf9] sm:$0xff]
        %v2364 = vld [vmem:[%s717 + $0x109] sm:$0xff]
        %v2365 = vld [vmem:[%s717 + $0x111] sm:$0xff]
        %v2366 = vld [vmem:[%s717 + $0x121] sm:$0xff]
        %v2367 = vld [vmem:[%s717 + $0x129] sm:$0xff]
        %v2368 = vld [vmem:[%s717 + $0x139] sm:$0xff]
        %v2369 = vld [vmem:[%s717 + $0x141] sm:$0xff]
        %v2370 = vld [vmem:[%s717 + $0x151] sm:$0xff]
        %v2371 = vld [vmem:[%s717 + $0x159] sm:$0xff]
        %v2372 = vld [vmem:[%s717 + $0x169] sm:$0xff]
        %v2373 = vld [vmem:[%s717 + $0x171] sm:$0xff]
        %v2374 = vlaneseq
        %v2375 = vshrl.u32 %v2374, 7
        %v2376 = vsub.s32 4, %v2375
        %v2377 = vrot.slane %v1972, %v2376
        %v2378 = vmul.f32 %v2342, %v2377
        %v2379 = vmul.f32 %v2343, %v2377
        %v2380 = vmul.f32 %v2344, %v2377
        %v2381 = vmul.f32 %v2345, %v2377
        %v2382 = vmul.f32 %v2346, %v2377
        %v2383 = vmul.f32 %v2347, %v2377
        %v2384 = vmul.f32 %v2348, %v2377
        %v2385 = vmul.f32 %v2349, %v2377
        %v2386 = vmul.f32 %v2350, %v2377
        %v2387 = vmul.f32 %v2351, %v2377
        %v2388 = vmul.f32 %v2352, %v2377
        %v2389 = vmul.f32 %v2353, %v2377
        %v2390 = vmul.f32 %v2354, %v2377
        %v2391 = vmul.f32 %v2355, %v2377
        %v2392 = vmul.f32 %v2356, %v2377
        %v2393 = vmul.f32 %v2357, %v2377
        %v2394 = vmul.f32 %v2358, %v2377
        %v2395 = vmul.f32 %v2359, %v2377
        %v2396 = vmul.f32 %v2360, %v2377
        %v2397 = vmul.f32 %v2361, %v2377
        %v2398 = vmul.f32 %v2362, %v2377
        %v2399 = vmul.f32 %v2363, %v2377
        %v2400 = vmul.f32 %v2364, %v2377
        %v2401 = vmul.f32 %v2365, %v2377
        %v2402 = vmul.f32 %v2366, %v2377
        %v2403 = vmul.f32 %v2367, %v2377
        %v2404 = vmul.f32 %v2368, %v2377
        %v2405 = vmul.f32 %v2369, %v2377
        %v2406 = vmul.f32 %v2370, %v2377
        %v2407 = vmul.f32 %v2371, %v2377
        %v2408 = vmul.f32 %v2372, %v2377
        %v2409 = vmul.f32 %v2373, %v2377
        %v2410 = vadd.f32 %v2310, %v2378
        %v2411 = vadd.f32 %v2311, %v2379
        %v2412 = vadd.f32 %v2312, %v2380
        %v2413 = vadd.f32 %v2313, %v2381
        %v2414 = vadd.f32 %v2314, %v2382
        %v2415 = vadd.f32 %v2315, %v2383
        %v2416 = vadd.f32 %v2316, %v2384
        %v2417 = vadd.f32 %v2317, %v2385
        %v2418 = vadd.f32 %v2318, %v2386
        %v2419 = vadd.f32 %v2319, %v2387
        %v2420 = vadd.f32 %v2320, %v2388
        %v2421 = vadd.f32 %v2321, %v2389
        %v2422 = vadd.f32 %v2322, %v2390
        %v2423 = vadd.f32 %v2323, %v2391
        %v2424 = vadd.f32 %v2324, %v2392
        %v2425 = vadd.f32 %v2325, %v2393
        %v2426 = vadd.f32 %v2326, %v2394
        %v2427 = vadd.f32 %v2327, %v2395
        %v2428 = vadd.f32 %v2328, %v2396
        %v2429 = vadd.f32 %v2329, %v2397
        %v2430 = vadd.f32 %v2330, %v2398
        %v2431 = vadd.f32 %v2331, %v2399
        %v2432 = vadd.f32 %v2332, %v2400
        %v2433 = vadd.f32 %v2333, %v2401
        %v2434 = vadd.f32 %v2334, %v2402
        %v2435 = vadd.f32 %v2335, %v2403
        %v2436 = vadd.f32 %v2336, %v2404
        %v2437 = vadd.f32 %v2337, %v2405
        %v2438 = vadd.f32 %v2338, %v2406
        %v2439 = vadd.f32 %v2339, %v2407
        %v2440 = vadd.f32 %v2340, %v2408
        %v2441 = vadd.f32 %v2341, %v2409
        %v2442 = vld [vmem:[%s717 + $0x2] sm:$0xff]
        %v2443 = vld [vmem:[%s717 + $0xa] sm:$0xff]
        %v2444 = vld [vmem:[%s717 + $0x1a] sm:$0xff]
        %v2445 = vld [vmem:[%s717 + $0x22] sm:$0xff]
        %v2446 = vld [vmem:[%s717 + $0x32] sm:$0xff]
        %v2447 = vld [vmem:[%s717 + $0x3a] sm:$0xff]
        %v2448 = vld [vmem:[%s717 + $0x4a] sm:$0xff]
        %v2449 = vld [vmem:[%s717 + $0x52] sm:$0xff]
        %v2450 = vld [vmem:[%s717 + $0x62] sm:$0xff]
        %v2451 = vld [vmem:[%s717 + $0x6a] sm:$0xff]
        %v2452 = vld [vmem:[%s717 + $0x7a] sm:$0xff]
        %v2453 = vld [vmem:[%s717 + $0x82] sm:$0xff]
        %v2454 = vld [vmem:[%s717 + $0x92] sm:$0xff]
        %v2455 = vld [vmem:[%s717 + $0x9a] sm:$0xff]
        %v2456 = vld [vmem:[%s717 + $0xaa] sm:$0xff]
        %v2457 = vld [vmem:[%s717 + $0xb2] sm:$0xff]
        %v2458 = vld [vmem:[%s717 + $0xc2] sm:$0xff]
        %v2459 = vld [vmem:[%s717 + $0xca] sm:$0xff]
        %v2460 = vld [vmem:[%s717 + $0xda] sm:$0xff]
        %v2461 = vld [vmem:[%s717 + $0xe2] sm:$0xff]
        %v2462 = vld [vmem:[%s717 + $0xf2] sm:$0xff]
        %v2463 = vld [vmem:[%s717 + $0xfa] sm:$0xff]
        %v2464 = vld [vmem:[%s717 + $0x10a] sm:$0xff]
        %v2465 = vld [vmem:[%s717 + $0x112] sm:$0xff]
        %v2466 = vld [vmem:[%s717 + $0x122] sm:$0xff]
        %v2467 = vld [vmem:[%s717 + $0x12a] sm:$0xff]
        %v2468 = vld [vmem:[%s717 + $0x13a] sm:$0xff]
        %v2469 = vld [vmem:[%s717 + $0x142] sm:$0xff]
        %v2470 = vld [vmem:[%s717 + $0x152] sm:$0xff]
        %v2471 = vld [vmem:[%s717 + $0x15a] sm:$0xff]
        %v2472 = vld [vmem:[%s717 + $0x16a] sm:$0xff]
        %v2473 = vld [vmem:[%s717 + $0x172] sm:$0xff]
        %v2474 = vlaneseq
        %v2475 = vshrl.u32 %v2474, 7
        %v2476 = vsub.s32 5, %v2475
        %v2477 = vrot.slane %v1972, %v2476
        %v2478 = vmul.f32 %v2442, %v2477
        %v2479 = vmul.f32 %v2443, %v2477
        %v2480 = vmul.f32 %v2444, %v2477
        %v2481 = vmul.f32 %v2445, %v2477
        %v2482 = vmul.f32 %v2446, %v2477
        %v2483 = vmul.f32 %v2447, %v2477
        %v2484 = vmul.f32 %v2448, %v2477
        %v2485 = vmul.f32 %v2449, %v2477
        %v2486 = vmul.f32 %v2450, %v2477
        %v2487 = vmul.f32 %v2451, %v2477
        %v2488 = vmul.f32 %v2452, %v2477
        %v2489 = vmul.f32 %v2453, %v2477
        %v2490 = vmul.f32 %v2454, %v2477
        %v2491 = vmul.f32 %v2455, %v2477
        %v2492 = vmul.f32 %v2456, %v2477
        %v2493 = vmul.f32 %v2457, %v2477
        %v2494 = vmul.f32 %v2458, %v2477
        %v2495 = vmul.f32 %v2459, %v2477
        %v2496 = vmul.f32 %v2460, %v2477
        %v2497 = vmul.f32 %v2461, %v2477
        %v2498 = vmul.f32 %v2462, %v2477
        %v2499 = vmul.f32 %v2463, %v2477
        %v2500 = vmul.f32 %v2464, %v2477
        %v2501 = vmul.f32 %v2465, %v2477
        %v2502 = vmul.f32 %v2466, %v2477
        %v2503 = vmul.f32 %v2467, %v2477
        %v2504 = vmul.f32 %v2468, %v2477
        %v2505 = vmul.f32 %v2469, %v2477
        %v2506 = vmul.f32 %v2470, %v2477
        %v2507 = vmul.f32 %v2471, %v2477
        %v2508 = vmul.f32 %v2472, %v2477
        %v2509 = vmul.f32 %v2473, %v2477
        %v2510 = vadd.f32 %v2410, %v2478
        %v2511 = vadd.f32 %v2411, %v2479
        %v2512 = vadd.f32 %v2412, %v2480
        %v2513 = vadd.f32 %v2413, %v2481
        %v2514 = vadd.f32 %v2414, %v2482
        %v2515 = vadd.f32 %v2415, %v2483
        %v2516 = vadd.f32 %v2416, %v2484
        %v2517 = vadd.f32 %v2417, %v2485
        %v2518 = vadd.f32 %v2418, %v2486
        %v2519 = vadd.f32 %v2419, %v2487
        %v2520 = vadd.f32 %v2420, %v2488
        %v2521 = vadd.f32 %v2421, %v2489
        %v2522 = vadd.f32 %v2422, %v2490
        %v2523 = vadd.f32 %v2423, %v2491
        %v2524 = vadd.f32 %v2424, %v2492
        %v2525 = vadd.f32 %v2425, %v2493
        %v2526 = vadd.f32 %v2426, %v2494
        %v2527 = vadd.f32 %v2427, %v2495
        %v2528 = vadd.f32 %v2428, %v2496
        %v2529 = vadd.f32 %v2429, %v2497
        %v2530 = vadd.f32 %v2430, %v2498
        %v2531 = vadd.f32 %v2431, %v2499
        %v2532 = vadd.f32 %v2432, %v2500
        %v2533 = vadd.f32 %v2433, %v2501
        %v2534 = vadd.f32 %v2434, %v2502
        %v2535 = vadd.f32 %v2435, %v2503
        %v2536 = vadd.f32 %v2436, %v2504
        %v2537 = vadd.f32 %v2437, %v2505
        %v2538 = vadd.f32 %v2438, %v2506
        %v2539 = vadd.f32 %v2439, %v2507
        %v2540 = vadd.f32 %v2440, %v2508
        %v2541 = vadd.f32 %v2441, %v2509
        %v2542 = vld [vmem:[%s1320] sm:$0xff]
        %v2543 = vld [vmem:[%s1320 + $0x8] sm:$0xff]
        %v2544 = vld [vmem:[%s1320 + $0x18] sm:$0xff]
        %v2545 = vld [vmem:[%s1320 + $0x20] sm:$0xff]
        %v2546 = vld [vmem:[%s1320 + $0x30] sm:$0xff]
        %v2547 = vld [vmem:[%s1320 + $0x38] sm:$0xff]
        %v2548 = vld [vmem:[%s1320 + $0x48] sm:$0xff]
        %v2549 = vld [vmem:[%s1320 + $0x50] sm:$0xff]
        %v2550 = vld [vmem:[%s1320 + $0x60] sm:$0xff]
        %v2551 = vld [vmem:[%s1320 + $0x68] sm:$0xff]
        %v2552 = vld [vmem:[%s1320 + $0x78] sm:$0xff]
        %v2553 = vld [vmem:[%s1320 + $0x80] sm:$0xff]
        %v2554 = vld [vmem:[%s1320 + $0x90] sm:$0xff]
        %v2555 = vld [vmem:[%s1320 + $0x98] sm:$0xff]
        %v2556 = vld [vmem:[%s1320 + $0xa8] sm:$0xff]
        %v2557 = vld [vmem:[%s1320 + $0xb0] sm:$0xff]
        %v2558 = vld [vmem:[%s1320 + $0xc0] sm:$0xff]
        %v2559 = vld [vmem:[%s1320 + $0xc8] sm:$0xff]
        %v2560 = vld [vmem:[%s1320 + $0xd8] sm:$0xff]
        %v2561 = vld [vmem:[%s1320 + $0xe0] sm:$0xff]
        %v2562 = vld [vmem:[%s1320 + $0xf0] sm:$0xff]
        %v2563 = vld [vmem:[%s1320 + $0xf8] sm:$0xff]
        %v2564 = vld [vmem:[%s1320 + $0x108] sm:$0xff]
        %v2565 = vld [vmem:[%s1320 + $0x110] sm:$0xff]
        %v2566 = vld [vmem:[%s1320 + $0x120] sm:$0xff]
        %v2567 = vld [vmem:[%s1320 + $0x128] sm:$0xff]
        %v2568 = vld [vmem:[%s1320 + $0x138] sm:$0xff]
        %v2569 = vld [vmem:[%s1320 + $0x140] sm:$0xff]
        %v2570 = vld [vmem:[%s1320 + $0x150] sm:$0xff]
        %v2571 = vld [vmem:[%s1320 + $0x158] sm:$0xff]
        %v2572 = vld [vmem:[%s1320 + $0x168] sm:$0xff]
        %v2573 = vld [vmem:[%s1320 + $0x170] sm:$0xff]
        %v2574 = vlaneseq
        %v2575 = vshrl.u32 %v2574, 7
        %v2576 = vsub.s32 6, %v2575
        %v2577 = vrot.slane %v1972, %v2576
        %v2578 = vmul.f32 %v2542, %v2577
        %v2579 = vmul.f32 %v2543, %v2577
        %v2580 = vmul.f32 %v2544, %v2577
        %v2581 = vmul.f32 %v2545, %v2577
        %v2582 = vmul.f32 %v2546, %v2577
        %v2583 = vmul.f32 %v2547, %v2577
        %v2584 = vmul.f32 %v2548, %v2577
        %v2585 = vmul.f32 %v2549, %v2577
        %v2586 = vmul.f32 %v2550, %v2577
        %v2587 = vmul.f32 %v2551, %v2577
        %v2588 = vmul.f32 %v2552, %v2577
        %v2589 = vmul.f32 %v2553, %v2577
        %v2590 = vmul.f32 %v2554, %v2577
        %v2591 = vmul.f32 %v2555, %v2577
        %v2592 = vmul.f32 %v2556, %v2577
        %v2593 = vmul.f32 %v2557, %v2577
        %v2594 = vmul.f32 %v2558, %v2577
        %v2595 = vmul.f32 %v2559, %v2577
        %v2596 = vmul.f32 %v2560, %v2577
        %v2597 = vmul.f32 %v2561, %v2577
        %v2598 = vmul.f32 %v2562, %v2577
        %v2599 = vmul.f32 %v2563, %v2577
        %v2600 = vmul.f32 %v2564, %v2577
        %v2601 = vmul.f32 %v2565, %v2577
        %v2602 = vmul.f32 %v2566, %v2577
        %v2603 = vmul.f32 %v2567, %v2577
        %v2604 = vmul.f32 %v2568, %v2577
        %v2605 = vmul.f32 %v2569, %v2577
        %v2606 = vmul.f32 %v2570, %v2577
        %v2607 = vmul.f32 %v2571, %v2577
        %v2608 = vmul.f32 %v2572, %v2577
        %v2609 = vmul.f32 %v2573, %v2577
        %v2610 = vadd.f32 %v2510, %v2578
        %v2611 = vadd.f32 %v2511, %v2579
        %v2612 = vadd.f32 %v2512, %v2580
        %v2613 = vadd.f32 %v2513, %v2581
        %v2614 = vadd.f32 %v2514, %v2582
        %v2615 = vadd.f32 %v2515, %v2583
        %v2616 = vadd.f32 %v2516, %v2584
        %v2617 = vadd.f32 %v2517, %v2585
        %v2618 = vadd.f32 %v2518, %v2586
        %v2619 = vadd.f32 %v2519, %v2587
        %v2620 = vadd.f32 %v2520, %v2588
        %v2621 = vadd.f32 %v2521, %v2589
        %v2622 = vadd.f32 %v2522, %v2590
        %v2623 = vadd.f32 %v2523, %v2591
        %v2624 = vadd.f32 %v2524, %v2592
        %v2625 = vadd.f32 %v2525, %v2593
        %v2626 = vadd.f32 %v2526, %v2594
        %v2627 = vadd.f32 %v2527, %v2595
        %v2628 = vadd.f32 %v2528, %v2596
        %v2629 = vadd.f32 %v2529, %v2597
        %v2630 = vadd.f32 %v2530, %v2598
        %v2631 = vadd.f32 %v2531, %v2599
        %v2632 = vadd.f32 %v2532, %v2600
        %v2633 = vadd.f32 %v2533, %v2601
        %v2634 = vadd.f32 %v2534, %v2602
        %v2635 = vadd.f32 %v2535, %v2603
        %v2636 = vadd.f32 %v2536, %v2604
        %v2637 = vadd.f32 %v2537, %v2605
        %v2638 = vadd.f32 %v2538, %v2606
        %v2639 = vadd.f32 %v2539, %v2607
        %v2640 = vadd.f32 %v2540, %v2608
        %v2641 = vadd.f32 %v2541, %v2609
        %v2642 = vld [vmem:[%s1320 + $0x1] sm:$0xff]
        %v2643 = vld [vmem:[%s1320 + $0x9] sm:$0xff]
        %v2644 = vld [vmem:[%s1320 + $0x19] sm:$0xff]
        %v2645 = vld [vmem:[%s1320 + $0x21] sm:$0xff]
        %v2646 = vld [vmem:[%s1320 + $0x31] sm:$0xff]
        %v2647 = vld [vmem:[%s1320 + $0x39] sm:$0xff]
        %v2648 = vld [vmem:[%s1320 + $0x49] sm:$0xff]
        %v2649 = vld [vmem:[%s1320 + $0x51] sm:$0xff]
        %v2650 = vld [vmem:[%s1320 + $0x61] sm:$0xff]
        %v2651 = vld [vmem:[%s1320 + $0x69] sm:$0xff]
        %v2652 = vld [vmem:[%s1320 + $0x79] sm:$0xff]
        %v2653 = vld [vmem:[%s1320 + $0x81] sm:$0xff]
        %v2654 = vld [vmem:[%s1320 + $0x91] sm:$0xff]
        %v2655 = vld [vmem:[%s1320 + $0x99] sm:$0xff]
        %v2656 = vld [vmem:[%s1320 + $0xa9] sm:$0xff]
        %v2657 = vld [vmem:[%s1320 + $0xb1] sm:$0xff]
        %v2658 = vld [vmem:[%s1320 + $0xc1] sm:$0xff]
        %v2659 = vld [vmem:[%s1320 + $0xc9] sm:$0xff]
        %v2660 = vld [vmem:[%s1320 + $0xd9] sm:$0xff]
        %v2661 = vld [vmem:[%s1320 + $0xe1] sm:$0xff]
        %v2662 = vld [vmem:[%s1320 + $0xf1] sm:$0xff]
        %v2663 = vld [vmem:[%s1320 + $0xf9] sm:$0xff]
        %v2664 = vld [vmem:[%s1320 + $0x109] sm:$0xff]
        %v2665 = vld [vmem:[%s1320 + $0x111] sm:$0xff]
        %v2666 = vld [vmem:[%s1320 + $0x121] sm:$0xff]
        %v2667 = vld [vmem:[%s1320 + $0x129] sm:$0xff]
        %v2668 = vld [vmem:[%s1320 + $0x139] sm:$0xff]
        %v2669 = vld [vmem:[%s1320 + $0x141] sm:$0xff]
        %v2670 = vld [vmem:[%s1320 + $0x151] sm:$0xff]
        %v2671 = vld [vmem:[%s1320 + $0x159] sm:$0xff]
        %v2672 = vld [vmem:[%s1320 + $0x169] sm:$0xff]
        %v2673 = vld [vmem:[%s1320 + $0x171] sm:$0xff]
        %v2674 = vlaneseq
        %v2675 = vshrl.u32 %v2674, 7
        %v2676 = vsub.s32 7, %v2675
        %v2677 = vrot.slane %v1972, %v2676
        %v2678 = vmul.f32 %v2642, %v2677
        %v2679 = vmul.f32 %v2643, %v2677
        %v2680 = vmul.f32 %v2644, %v2677
        %v2681 = vmul.f32 %v2645, %v2677
        %v2682 = vmul.f32 %v2646, %v2677
        %v2683 = vmul.f32 %v2647, %v2677
        %v2684 = vmul.f32 %v2648, %v2677
        %v2685 = vmul.f32 %v2649, %v2677
        %v2686 = vmul.f32 %v2650, %v2677
        %v2687 = vmul.f32 %v2651, %v2677
        %v2688 = vmul.f32 %v2652, %v2677
        %v2689 = vmul.f32 %v2653, %v2677
        %v2690 = vmul.f32 %v2654, %v2677
        %v2691 = vmul.f32 %v2655, %v2677
        %v2692 = vmul.f32 %v2656, %v2677
        %v2693 = vmul.f32 %v2657, %v2677
        %v2694 = vmul.f32 %v2658, %v2677
        %v2695 = vmul.f32 %v2659, %v2677
        %v2696 = vmul.f32 %v2660, %v2677
        %v2697 = vmul.f32 %v2661, %v2677
        %v2698 = vmul.f32 %v2662, %v2677
        %v2699 = vmul.f32 %v2663, %v2677
        %v2700 = vmul.f32 %v2664, %v2677
        %v2701 = vmul.f32 %v2665, %v2677
        %v2702 = vmul.f32 %v2666, %v2677
        %v2703 = vmul.f32 %v2667, %v2677
        %v2704 = vmul.f32 %v2668, %v2677
        %v2705 = vmul.f32 %v2669, %v2677
        %v2706 = vmul.f32 %v2670, %v2677
        %v2707 = vmul.f32 %v2671, %v2677
        %v2708 = vmul.f32 %v2672, %v2677
        %v2709 = vmul.f32 %v2673, %v2677
        %v2710 = vadd.f32 %v2610, %v2678
        %v2711 = vadd.f32 %v2611, %v2679
        %v2712 = vadd.f32 %v2612, %v2680
        %v2713 = vadd.f32 %v2613, %v2681
        %v2714 = vadd.f32 %v2614, %v2682
        %v2715 = vadd.f32 %v2615, %v2683
        %v2716 = vadd.f32 %v2616, %v2684
        %v2717 = vadd.f32 %v2617, %v2685
        %v2718 = vadd.f32 %v2618, %v2686
        %v2719 = vadd.f32 %v2619, %v2687
        %v2720 = vadd.f32 %v2620, %v2688
        %v2721 = vadd.f32 %v2621, %v2689
        %v2722 = vadd.f32 %v2622, %v2690
        %v2723 = vadd.f32 %v2623, %v2691
        %v2724 = vadd.f32 %v2624, %v2692
        %v2725 = vadd.f32 %v2625, %v2693
        %v2726 = vadd.f32 %v2626, %v2694
        %v2727 = vadd.f32 %v2627, %v2695
        %v2728 = vadd.f32 %v2628, %v2696
        %v2729 = vadd.f32 %v2629, %v2697
        %v2730 = vadd.f32 %v2630, %v2698
        %v2731 = vadd.f32 %v2631, %v2699
        %v2732 = vadd.f32 %v2632, %v2700
        %v2733 = vadd.f32 %v2633, %v2701
        %v2734 = vadd.f32 %v2634, %v2702
        %v2735 = vadd.f32 %v2635, %v2703
        %v2736 = vadd.f32 %v2636, %v2704
        %v2737 = vadd.f32 %v2637, %v2705
        %v2738 = vadd.f32 %v2638, %v2706
        %v2739 = vadd.f32 %v2639, %v2707
        %v2740 = vadd.f32 %v2640, %v2708
        %v2741 = vadd.f32 %v2641, %v2709
        %v2742 = vld [vmem:[%s1320 + $0x2] sm:$0xff]
        %v2743 = vld [vmem:[%s1320 + $0xa] sm:$0xff]
        %v2744 = vld [vmem:[%s1320 + $0x1a] sm:$0xff]
        %v2745 = vld [vmem:[%s1320 + $0x22] sm:$0xff]
        %v2746 = vld [vmem:[%s1320 + $0x32] sm:$0xff]
        %v2747 = vld [vmem:[%s1320 + $0x3a] sm:$0xff]
        %v2748 = vld [vmem:[%s1320 + $0x4a] sm:$0xff]
        %v2749 = vld [vmem:[%s1320 + $0x52] sm:$0xff]
        %v2750 = vld [vmem:[%s1320 + $0x62] sm:$0xff]
        %v2751 = vld [vmem:[%s1320 + $0x6a] sm:$0xff]
        %v2752 = vld [vmem:[%s1320 + $0x7a] sm:$0xff]
        %v2753 = vld [vmem:[%s1320 + $0x82] sm:$0xff]
        %v2754 = vld [vmem:[%s1320 + $0x92] sm:$0xff]
        %v2755 = vld [vmem:[%s1320 + $0x9a] sm:$0xff]
        %v2756 = vld [vmem:[%s1320 + $0xaa] sm:$0xff]
        %v2757 = vld [vmem:[%s1320 + $0xb2] sm:$0xff]
        %v2758 = vld [vmem:[%s1320 + $0xc2] sm:$0xff]
        %v2759 = vld [vmem:[%s1320 + $0xca] sm:$0xff]
        %v2760 = vld [vmem:[%s1320 + $0xda] sm:$0xff]
        %v2761 = vld [vmem:[%s1320 + $0xe2] sm:$0xff]
        %v2762 = vld [vmem:[%s1320 + $0xf2] sm:$0xff]
        %v2763 = vld [vmem:[%s1320 + $0xfa] sm:$0xff]
        %v2764 = vld [vmem:[%s1320 + $0x10a] sm:$0xff]
        %v2765 = vld [vmem:[%s1320 + $0x112] sm:$0xff]
        %v2766 = vld [vmem:[%s1320 + $0x122] sm:$0xff]
        %v2767 = vld [vmem:[%s1320 + $0x12a] sm:$0xff]
        %v2768 = vld [vmem:[%s1320 + $0x13a] sm:$0xff]
        %v2769 = vld [vmem:[%s1320 + $0x142] sm:$0xff]
        %v2770 = vld [vmem:[%s1320 + $0x152] sm:$0xff]
        %v2771 = vld [vmem:[%s1320 + $0x15a] sm:$0xff]
        %v2772 = vld [vmem:[%s1320 + $0x16a] sm:$0xff]
        %v2773 = vld [vmem:[%s1320 + $0x172] sm:$0xff]
        %v2774 = vlaneseq
        %v2775 = vshrl.u32 %v2774, 7
        %v2776 = vsub.s32 0, %v2775
        %v2777 = vrot.slane %v1973, %v2776
        %v2778 = vmul.f32 %v2742, %v2777
        %v2779 = vmul.f32 %v2743, %v2777
        %v2780 = vmul.f32 %v2744, %v2777
        %v2781 = vmul.f32 %v2745, %v2777
        %v2782 = vmul.f32 %v2746, %v2777
        %v2783 = vmul.f32 %v2747, %v2777
        %v2784 = vmul.f32 %v2748, %v2777
        %v2785 = vmul.f32 %v2749, %v2777
        %v2786 = vmul.f32 %v2750, %v2777
        %v2787 = vmul.f32 %v2751, %v2777
        %v2788 = vmul.f32 %v2752, %v2777
        %v2789 = vmul.f32 %v2753, %v2777
        %v2790 = vmul.f32 %v2754, %v2777
        %v2791 = vmul.f32 %v2755, %v2777
        %v2792 = vmul.f32 %v2756, %v2777
        %v2793 = vmul.f32 %v2757, %v2777
        %v2794 = vmul.f32 %v2758, %v2777
        %v2795 = vmul.f32 %v2759, %v2777
        %v2796 = vmul.f32 %v2760, %v2777
        %v2797 = vmul.f32 %v2761, %v2777
        %v2798 = vmul.f32 %v2762, %v2777
        %v2799 = vmul.f32 %v2763, %v2777
        %v2800 = vmul.f32 %v2764, %v2777
        %v2801 = vmul.f32 %v2765, %v2777
        %v2802 = vmul.f32 %v2766, %v2777
        %v2803 = vmul.f32 %v2767, %v2777
        %v2804 = vmul.f32 %v2768, %v2777
        %v2805 = vmul.f32 %v2769, %v2777
        %v2806 = vmul.f32 %v2770, %v2777
        %v2807 = vmul.f32 %v2771, %v2777
        %v2808 = vmul.f32 %v2772, %v2777
        %v2809 = vmul.f32 %v2773, %v2777
        %v2810 = vadd.f32 %v2710, %v2778
        %v2811 = vadd.f32 %v2711, %v2779
        %v2812 = vadd.f32 %v2712, %v2780
        %v2813 = vadd.f32 %v2713, %v2781
        %v2814 = vadd.f32 %v2714, %v2782
        %v2815 = vadd.f32 %v2715, %v2783
        %v2816 = vadd.f32 %v2716, %v2784
        %v2817 = vadd.f32 %v2717, %v2785
        %v2818 = vadd.f32 %v2718, %v2786
        %v2819 = vadd.f32 %v2719, %v2787
        %v2820 = vadd.f32 %v2720, %v2788
        %v2821 = vadd.f32 %v2721, %v2789
        %v2822 = vadd.f32 %v2722, %v2790
        %v2823 = vadd.f32 %v2723, %v2791
        %v2824 = vadd.f32 %v2724, %v2792
        %v2825 = vadd.f32 %v2725, %v2793
        %v2826 = vadd.f32 %v2726, %v2794
        %v2827 = vadd.f32 %v2727, %v2795
        %v2828 = vadd.f32 %v2728, %v2796
        %v2829 = vadd.f32 %v2729, %v2797
        %v2830 = vadd.f32 %v2730, %v2798
        %v2831 = vadd.f32 %v2731, %v2799
        %v2832 = vadd.f32 %v2732, %v2800
        %v2833 = vadd.f32 %v2733, %v2801
        %v2834 = vadd.f32 %v2734, %v2802
        %v2835 = vadd.f32 %v2735, %v2803
        %v2836 = vadd.f32 %v2736, %v2804
        %v2837 = vadd.f32 %v2737, %v2805
        %v2838 = vadd.f32 %v2738, %v2806
        %v2839 = vadd.f32 %v2739, %v2807
        %v2840 = vadd.f32 %v2740, %v2808
        %v2841 = vadd.f32 %v2741, %v2809
        %v2842 = vld [vmem:[#allocation9] sm:$0x1]
        %v2844 = vlaneseq
        %v2845 = vshrl.u32 %v2844, 7
        %v2846 = vsub.s32 0, %v2845
        %v2847 = vrot.slane %v2842, %v2846
        %v2849 = vadd.f32 %v2810, %v2847
        %v2850 = vadd.f32 %v2811, %v2847
        %v2851 = vadd.f32 %v2812, %v2847
        %v2852 = vadd.f32 %v2813, %v2847
        %v2853 = vadd.f32 %v2814, %v2847
        %v2854 = vadd.f32 %v2815, %v2847
        %v2855 = vadd.f32 %v2816, %v2847
        %v2856 = vadd.f32 %v2817, %v2847
        %v2857 = vadd.f32 %v2818, %v2847
        %v2858 = vadd.f32 %v2819, %v2847
        %v2859 = vadd.f32 %v2820, %v2847
        %v2860 = vadd.f32 %v2821, %v2847
        %v2861 = vadd.f32 %v2822, %v2847
        %v2862 = vadd.f32 %v2823, %v2847
        %v2863 = vadd.f32 %v2824, %v2847
        %v2864 = vadd.f32 %v2825, %v2847
        %v2865 = vadd.f32 %v2826, %v2847
        %v2866 = vadd.f32 %v2827, %v2847
        %v2867 = vadd.f32 %v2828, %v2847
        %v2868 = vadd.f32 %v2829, %v2847
        %v2869 = vadd.f32 %v2830, %v2847
        %v2870 = vadd.f32 %v2831, %v2847
        %v2871 = vadd.f32 %v2832, %v2847
        %v2872 = vadd.f32 %v2833, %v2847
        %v2873 = vadd.f32 %v2834, %v2847
        %v2874 = vadd.f32 %v2835, %v2847
        %v2875 = vadd.f32 %v2836, %v2847
        %v2876 = vadd.f32 %v2837, %v2847
        %v2877 = vadd.f32 %v2838, %v2847
        %v2878 = vadd.f32 %v2839, %v2847
        %v2879 = vadd.f32 %v2840, %v2847
        %v2880 = vadd.f32 %v2841, %v2847
        %v2881 = vpack.c.bf16 %v2850, %v2849
        %v2882 = vpack.c.bf16 %v2852, %v2851
        %v2883 = vpack.c.bf16 %v2854, %v2853
        %v2884 = vpack.c.bf16 %v2856, %v2855
        %v2885 = vpack.c.bf16 %v2858, %v2857
        %v2886 = vpack.c.bf16 %v2860, %v2859
        %v2887 = vpack.c.bf16 %v2862, %v2861
        %v2888 = vpack.c.bf16 %v2864, %v2863
        %v2889 = vpack.c.bf16 %v2866, %v2865
        %v2890 = vpack.c.bf16 %v2868, %v2867
        %v2891 = vpack.c.bf16 %v2870, %v2869
        %v2892 = vpack.c.bf16 %v2872, %v2871
        %v2893 = vpack.c.bf16 %v2874, %v2873
        %v2894 = vpack.c.bf16 %v2876, %v2875
        %v2895 = vpack.c.bf16 %v2878, %v2877
        %v2896 = vpack.c.bf16 %v2880, %v2879
        %v2897 = vld [vmem:[#allocation11] sm:$0xf]
        %v2898 = vld [vmem:[#allocation11 + $0x4] sm:$0xf]
        %v2899 = vld [vmem:[#allocation11 + $0x8] sm:$0xf]
        %v2900 = vld [vmem:[#allocation11 + $0xc] sm:$0xf]
        %v2901 = vld [vmem:[#allocation11 + $0x10] sm:$0xf]
        %v2902 = vld [vmem:[#allocation11 + $0x14] sm:$0xf]
        %v2903 = vld [vmem:[#allocation11 + $0x18] sm:$0xf]
        %v2904 = vld [vmem:[#allocation11 + $0x1c] sm:$0xf]
        %v2905 = vld [vmem:[#allocation11 + $0x20] sm:$0xf]
        %v2906 = vld [vmem:[#allocation11 + $0x24] sm:$0xf]
        %v2907 = vld [vmem:[#allocation11 + $0x28] sm:$0xf]
        %v2908 = vld [vmem:[#allocation11 + $0x2c] sm:$0xf]
        %v2909 = vld [vmem:[#allocation11 + $0x30] sm:$0xf]
        %v2910 = vld [vmem:[#allocation11 + $0x34] sm:$0xf]
        %v2911 = vld [vmem:[#allocation11 + $0x38] sm:$0xf]
        %v2912 = vld [vmem:[#allocation11 + $0x3c] sm:$0xf]
        %v2913 = vld [vmem:[#allocation12] sm:$0x1]
        %v2915 = vlaneseq
        %v2916 = vshrl.u32 %v2915, 7
        %v2917 = vsub.s32 0, %v2916
        %v2918 = vrot.slane %v2913, %v2917
        %v2936 = vunpack.c.l.b16 %v2897
        %v2937 = vunpack.c.l.b16 %v2898
        %v2938 = vunpack.c.l.b16 %v2899
        %v2939 = vunpack.c.l.b16 %v2900
        %v2940 = vunpack.c.l.b16 %v2901
        %v2941 = vunpack.c.l.b16 %v2902
        %v2942 = vunpack.c.l.b16 %v2903
        %v2943 = vunpack.c.l.b16 %v2904
        %v2944 = vunpack.c.l.b16 %v2905
        %v2945 = vunpack.c.l.b16 %v2906
        %v2946 = vunpack.c.l.b16 %v2907
        %v2947 = vunpack.c.l.b16 %v2908
        %v2948 = vunpack.c.l.b16 %v2909
        %v2949 = vunpack.c.l.b16 %v2910
        %v2950 = vunpack.c.l.b16 %v2911
        %v2951 = vunpack.c.l.b16 %v2912
        %v2952 = vpack.c.b16 %v2937, %v2936
        %v2953 = vpack.c.b16 %v2939, %v2938
        %v2954 = vpack.c.b16 %v2941, %v2940
        %v2955 = vpack.c.b16 %v2943, %v2942
        %v2956 = vpack.c.b16 %v2945, %v2944
        %v2957 = vpack.c.b16 %v2947, %v2946
        %v2958 = vpack.c.b16 %v2949, %v2948
        %v2959 = vpack.c.b16 %v2951, %v2950
        %2968 = vmatprep.subr.bf16.mxu0 0
        %2969 = vmatpush1.bf16.msra.mxu0 %v2952
        %2970 = vmatprep.subr.bf16.mxu0 0
        %2971 = vmatpush1.bf16.msra.mxu0 %v2953
        %2972 = vmatprep.subr.bf16.mxu0 0
        %2973 = vmatpush1.bf16.msra.mxu0 %v2954
        %2974 = vmatprep.subr.bf16.mxu0 0
        %2975 = vmatpush1.bf16.msra.mxu0 %v2955
        %2976 = vmatprep.subr.bf16.mxu0 0
        %2977 = vmatpush1.bf16.msra.mxu0 %v2956
        %2978 = vmatprep.subr.bf16.mxu0 0
        %2979 = vmatpush1.bf16.msra.mxu0 %v2957
        %2980 = vmatprep.subr.bf16.mxu0 0
        %2981 = vmatpush1.bf16.msra.mxu0 %v2958
        %2982 = vmatprep.subr.bf16.mxu0 0
        %2983 = vmatpush1.bf16.msra.mxu0 %v2959
        %2984 = vmatprep.subr.bf16.mxu0 0
        %2985 = vmatpush1.bf16.msra.mxu0 0
        %2986 = vmatprep.subr.bf16.mxu0 0
        %2987 = vmatpush1.bf16.msra.mxu0 0
        %2988 = vmatprep.subr.bf16.mxu0 0
        %2989 = vmatpush1.bf16.msra.mxu0 0
        %2990 = vmatprep.subr.bf16.mxu0 0
        %2991 = vmatpush1.bf16.msra.mxu0 0
        %2992 = vmatprep.subr.bf16.mxu0 0
        %2993 = vmatpush1.bf16.msra.mxu0 0
        %2994 = vmatprep.subr.bf16.mxu0 0
        %2995 = vmatpush1.bf16.msra.mxu0 0
        %2996 = vmatprep.subr.bf16.mxu0 0
        %2997 = vmatpush1.bf16.msra.mxu0 0
        %2998 = vmatprep.subr.bf16.mxu0 0
        %2999 = vmatpush1.bf16.msra.mxu0 0
        %3000 = vmatprep.mubr.bf16.mxu0 0
        %3001 = vmatmul.mubr.bf16.gmra.mrb[0].mxu0 %v2881
        %v3002 = vpop.f32.mrb[0].mxu0
        %v3003 = vadd.f32 %v2918, %v3002
        %v3004 = vpop.f32.mrb[0].mxu0
        %v3005 = vpop.f32.mrb[0].mxu0
        %v3006 = vadd.f32 %v2918, %v3005
        %v3007 = vpop.f32.mrb[0].mxu0
        %3008 = vmatprep.mubr.bf16.mxu0 0
        %3009 = vmatmul.mubr.bf16.gmra.mrb[0].mxu0 %v2882
        %v3010 = vpop.f32.mrb[0].mxu0
        %v3011 = vadd.f32 %v2918, %v3010
        %v3012 = vpop.f32.mrb[0].mxu0
        %v3013 = vpop.f32.mrb[0].mxu0
        %v3014 = vadd.f32 %v2918, %v3013
        %v3015 = vpop.f32.mrb[0].mxu0
        %3016 = vmatprep.mubr.bf16.mxu0 0
        %3017 = vmatmul.mubr.bf16.gmra.mrb[0].mxu0 %v2883
        %v3018 = vpop.f32.mrb[0].mxu0
        %v3019 = vadd.f32 %v2918, %v3018
        %v3020 = vpop.f32.mrb[0].mxu0
        %v3021 = vpop.f32.mrb[0].mxu0
        %v3022 = vadd.f32 %v2918, %v3021
        %v3023 = vpop.f32.mrb[0].mxu0
        %3024 = vmatprep.mubr.bf16.mxu0 0
        %3025 = vmatmul.mubr.bf16.gmra.mrb[0].mxu0 %v2884
        %v3026 = vpop.f32.mrb[0].mxu0
        %v3027 = vadd.f32 %v2918, %v3026
        %v3028 = vpop.f32.mrb[0].mxu0
        %v3029 = vpop.f32.mrb[0].mxu0
        %v3030 = vadd.f32 %v2918, %v3029
        %v3031 = vpop.f32.mrb[0].mxu0
        %3032 = vmatprep.mubr.bf16.mxu0 0
        %3033 = vmatmul.mubr.bf16.gmra.mrb[0].mxu0 %v2885
        %v3034 = vpop.f32.mrb[0].mxu0
        %v3035 = vadd.f32 %v2918, %v3034
        %v3036 = vpop.f32.mrb[0].mxu0
        %v3037 = vpop.f32.mrb[0].mxu0
        %v3038 = vadd.f32 %v2918, %v3037
        %v3039 = vpop.f32.mrb[0].mxu0
        %3040 = vmatprep.mubr.bf16.mxu0 0
        %3041 = vmatmul.mubr.bf16.gmra.mrb[0].mxu0 %v2886
        %v3042 = vpop.f32.mrb[0].mxu0
        %v3043 = vadd.f32 %v2918, %v3042
        %v3044 = vpop.f32.mrb[0].mxu0
        %v3045 = vpop.f32.mrb[0].mxu0
        %v3046 = vadd.f32 %v2918, %v3045
        %v3047 = vpop.f32.mrb[0].mxu0
        %3048 = vmatprep.mubr.bf16.mxu0 0
        %3049 = vmatmul.mubr.bf16.gmra.mrb[0].mxu0 %v2887
        %v3050 = vpop.f32.mrb[0].mxu0
        %v3051 = vadd.f32 %v2918, %v3050
        %v3052 = vpop.f32.mrb[0].mxu0
        %v3053 = vpop.f32.mrb[0].mxu0
        %v3054 = vadd.f32 %v2918, %v3053
        %v3055 = vpop.f32.mrb[0].mxu0
        %3056 = vmatprep.mubr.bf16.mxu0 0
        %3057 = vmatmul.mubr.bf16.gmra.mrb[0].mxu0 %v2888
        %v3058 = vpop.f32.mrb[0].mxu0
        %v3059 = vadd.f32 %v2918, %v3058
        %v3060 = vpop.f32.mrb[0].mxu0
        %v3061 = vpop.f32.mrb[0].mxu0
        %v3062 = vadd.f32 %v2918, %v3061
        %v3063 = vpop.f32.mrb[0].mxu0
        %3064 = vmatprep.mubr.bf16.mxu0 0
        %3065 = vmatmul.mubr.bf16.gmra.mrb[0].mxu0 %v2889
        %v3066 = vpop.f32.mrb[0].mxu0
        %v3067 = vadd.f32 %v2918, %v3066
        %v3068 = vpop.f32.mrb[0].mxu0
        %v3069 = vpop.f32.mrb[0].mxu0
        %v3070 = vadd.f32 %v2918, %v3069
        %v3071 = vpop.f32.mrb[0].mxu0
        %3072 = vmatprep.mubr.bf16.mxu0 0
        %3073 = vmatmul.mubr.bf16.gmra.mrb[0].mxu0 %v2890
        %v3074 = vpop.f32.mrb[0].mxu0
        %v3075 = vadd.f32 %v2918, %v3074
        %v3076 = vpop.f32.mrb[0].mxu0
        %v3077 = vpop.f32.mrb[0].mxu0
        %v3078 = vadd.f32 %v2918, %v3077
        %v3079 = vpop.f32.mrb[0].mxu0
        %3080 = vmatprep.mubr.bf16.mxu0 0
        %3081 = vmatmul.mubr.bf16.gmra.mrb[0].mxu0 %v2891
        %v3082 = vpop.f32.mrb[0].mxu0
        %v3083 = vadd.f32 %v2918, %v3082
        %v3084 = vpop.f32.mrb[0].mxu0
        %v3085 = vpop.f32.mrb[0].mxu0
        %v3086 = vadd.f32 %v2918, %v3085
        %v3087 = vpop.f32.mrb[0].mxu0
        %3088 = vmatprep.mubr.bf16.mxu0 0
        %3089 = vmatmul.mubr.bf16.gmra.mrb[0].mxu0 %v2892
        %v3090 = vpop.f32.mrb[0].mxu0
        %v3091 = vadd.f32 %v2918, %v3090
        %v3092 = vpop.f32.mrb[0].mxu0
        %v3093 = vpop.f32.mrb[0].mxu0
        %v3094 = vadd.f32 %v2918, %v3093
        %v3095 = vpop.f32.mrb[0].mxu0
        %3096 = vmatprep.mubr.bf16.mxu0 0
        %3097 = vmatmul.mubr.bf16.gmra.mrb[0].mxu0 %v2893
        %v3098 = vpop.f32.mrb[0].mxu0
        %v3099 = vadd.f32 %v2918, %v3098
        %v3100 = vpop.f32.mrb[0].mxu0
        %v3101 = vpop.f32.mrb[0].mxu0
        %v3102 = vadd.f32 %v2918, %v3101
        %v3103 = vpop.f32.mrb[0].mxu0
        %3104 = vmatprep.mubr.bf16.mxu0 0
        %3105 = vmatmul.mubr.bf16.gmra.mrb[0].mxu0 %v2894
        %v3106 = vpop.f32.mrb[0].mxu0
        %v3107 = vadd.f32 %v2918, %v3106
        %v3108 = vpop.f32.mrb[0].mxu0
        %v3109 = vpop.f32.mrb[0].mxu0
        %v3110 = vadd.f32 %v2918, %v3109
        %v3111 = vpop.f32.mrb[0].mxu0
        %3112 = vmatprep.mubr.bf16.mxu0 0
        %3113 = vmatmul.mubr.bf16.gmra.mrb[0].mxu0 %v2895
        %v3114 = vpop.f32.mrb[0].mxu0
        %v3115 = vadd.f32 %v2918, %v3114
        %v3116 = vpop.f32.mrb[0].mxu0
        %v3117 = vpop.f32.mrb[0].mxu0
        %v3118 = vadd.f32 %v2918, %v3117
        %v3119 = vpop.f32.mrb[0].mxu0
        %3120 = vmatprep.mubr.bf16.mxu0 0
        %3121 = vmatmul.mubr.bf16.gmra.mrb[0].mxu0 %v2896
        %v3122 = vpop.f32.mrb[0].mxu0
        %v3123 = vadd.f32 %v2918, %v3122
        %v3124 = vpop.f32.mrb[0].mxu0
        %v3125 = vpop.f32.mrb[0].mxu0
        %v3126 = vadd.f32 %v2918, %v3125
        %v3127 = vpop.f32.mrb[0].mxu0
        %3128 = vdwg.mxu0
        %v3129 = vmax.f32 %v3003, 0.0
        %v3130 = vmax.f32 %v3006, 0.0
        %v3131 = vmax.f32 %v3011, 0.0
        %v3132 = vmax.f32 %v3014, 0.0
        %v3133 = vmax.f32 %v3019, 0.0
        %v3134 = vmax.f32 %v3022, 0.0
        %v3135 = vmax.f32 %v3027, 0.0
        %v3136 = vmax.f32 %v3030, 0.0
        %v3137 = vmax.f32 %v3035, 0.0
        %v3138 = vmax.f32 %v3038, 0.0
        %v3139 = vmax.f32 %v3043, 0.0
        %v3140 = vmax.f32 %v3046, 0.0
        %v3141 = vmax.f32 %v3051, 0.0
        %v3142 = vmax.f32 %v3054, 0.0
        %v3143 = vmax.f32 %v3059, 0.0
        %v3144 = vmax.f32 %v3062, 0.0
        %v3145 = vmax.f32 %v3067, 0.0
        %v3146 = vmax.f32 %v3070, 0.0
        %v3147 = vmax.f32 %v3075, 0.0
        %v3148 = vmax.f32 %v3078, 0.0
        %v3149 = vmax.f32 %v3083, 0.0
        %v3150 = vmax.f32 %v3086, 0.0
        %v3151 = vmax.f32 %v3091, 0.0
        %v3152 = vmax.f32 %v3094, 0.0
        %v3153 = vmax.f32 %v3099, 0.0
        %v3154 = vmax.f32 %v3102, 0.0
        %v3155 = vmax.f32 %v3107, 0.0
        %v3156 = vmax.f32 %v3110, 0.0
        %v3157 = vmax.f32 %v3115, 0.0
        %v3158 = vmax.f32 %v3118, 0.0
        %v3159 = vmax.f32 %v3123, 0.0
        %v3160 = vmax.f32 %v3126, 0.0
        %3161 = vst [vmem:[%s717 + $0x1] sm:$0xff] %v3129
        %3162 = vst [vmem:[%s717 + $0x9] sm:$0xff] %v3130
        %3163 = vst [vmem:[%s717 + $0x19] sm:$0xff] %v3131
        %3164 = vst [vmem:[%s717 + $0x21] sm:$0xff] %v3132
        %3165 = vst [vmem:[%s717 + $0x31] sm:$0xff] %v3133
        %3166 = vst [vmem:[%s717 + $0x39] sm:$0xff] %v3134
        %3167 = vst [vmem:[%s717 + $0x49] sm:$0xff] %v3135
        %3168 = vst [vmem:[%s717 + $0x51] sm:$0xff] %v3136
        %3169 = vst [vmem:[%s717 + $0x61] sm:$0xff] %v3137
        %3170 = vst [vmem:[%s717 + $0x69] sm:$0xff] %v3138
        %3171 = vst [vmem:[%s717 + $0x79] sm:$0xff] %v3139
        %3172 = vst [vmem:[%s717 + $0x81] sm:$0xff] %v3140
        %3173 = vst [vmem:[%s717 + $0x91] sm:$0xff] %v3141
        %3174 = vst [vmem:[%s717 + $0x99] sm:$0xff] %v3142
        %3175 = vst [vmem:[%s717 + $0xa9] sm:$0xff] %v3143
        %3176 = vst [vmem:[%s717 + $0xb1] sm:$0xff] %v3144
        %3177 = vst [vmem:[%s717 + $0xc1] sm:$0xff] %v3145
        %3178 = vst [vmem:[%s717 + $0xc9] sm:$0xff] %v3146
        %3179 = vst [vmem:[%s717 + $0xd9] sm:$0xff] %v3147
        %3180 = vst [vmem:[%s717 + $0xe1] sm:$0xff] %v3148
        %3181 = vst [vmem:[%s717 + $0xf1] sm:$0xff] %v3149
        %3182 = vst [vmem:[%s717 + $0xf9] sm:$0xff] %v3150
        %3183 = vst [vmem:[%s717 + $0x109] sm:$0xff] %v3151
        %3184 = vst [vmem:[%s717 + $0x111] sm:$0xff] %v3152
        %3185 = vst [vmem:[%s717 + $0x121] sm:$0xff] %v3153
        %3186 = vst [vmem:[%s717 + $0x129] sm:$0xff] %v3154
        %3187 = vst [vmem:[%s717 + $0x139] sm:$0xff] %v3155
        %3188 = vst [vmem:[%s717 + $0x141] sm:$0xff] %v3156
        %3189 = vst [vmem:[%s717 + $0x151] sm:$0xff] %v3157
        %3190 = vst [vmem:[%s717 + $0x159] sm:$0xff] %v3158
        %3191 = vst [vmem:[%s717 + $0x169] sm:$0xff] %v3159
        %3192 = vst [vmem:[%s717 + $0x171] sm:$0xff] %v3160
        %v3193 = vld [vmem:[%s9] sm:$0xff]
        %v3194 = vld [vmem:[%s9 + $0x8] sm:$0x1]
        %v3195 = vld [vmem:[#allocation2] ss:$2 sm:$0xff]
        %s3196 = scalar_lea.vmem [#allocation2], 48
        %v3197 = vld [vmem:[%s3196] ss:$2 sm:$0xff]
        %s3198 = scalar_lea.vmem [#allocation2], 96
        %v3199 = vld [vmem:[%s3198] ss:$2 sm:$0xff]
        %s3200 = scalar_lea.vmem [#allocation2], 144
        %v3201 = vld [vmem:[%s3200] ss:$2 sm:$0xff]
        %s3202 = scalar_lea.vmem [#allocation2], 192
        %v3203 = vld [vmem:[%s3202] ss:$2 sm:$0xff]
        %s3204 = scalar_lea.vmem [#allocation2], 240
        %v3205 = vld [vmem:[%s3204] ss:$2 sm:$0xff]
        %s3206 = scalar_lea.vmem [#allocation2], 288
        %v3207 = vld [vmem:[%s3206] ss:$2 sm:$0xff]
        %s3208 = scalar_lea.vmem [#allocation2], 336
        %v3209 = vld [vmem:[%s3208] ss:$2 sm:$0xff]
        %v3210 = vlaneseq
        %v3211 = vshrl.u32 %v3210, 7
        %v3212 = vsub.s32 0, %v3211
        %v3213 = vrot.slane %v3193, %v3212
        %v3214 = vmul.f32 %v3195, %v3213
        %v3215 = vmul.f32 %v3197, %v3213
        %v3216 = vmul.f32 %v3199, %v3213
        %v3217 = vmul.f32 %v3201, %v3213
        %v3218 = vmul.f32 %v3203, %v3213
        %v3219 = vmul.f32 %v3205, %v3213
        %v3220 = vmul.f32 %v3207, %v3213
        %v3221 = vmul.f32 %v3209, %v3213
        %s3222 = scalar_lea.vmem [#allocation2], 1
        %v3223 = vld [vmem:[%s3222] ss:$2 sm:$0xff]
        %s3224 = scalar_lea.vmem [#allocation2], 49
        %v3225 = vld [vmem:[%s3224] ss:$2 sm:$0xff]
        %s3226 = scalar_lea.vmem [#allocation2], 97
        %v3227 = vld [vmem:[%s3226] ss:$2 sm:$0xff]
        %s3228 = scalar_lea.vmem [#allocation2], 145
        %v3229 = vld [vmem:[%s3228] ss:$2 sm:$0xff]
        %s3230 = scalar_lea.vmem [#allocation2], 193
        %v3231 = vld [vmem:[%s3230] ss:$2 sm:$0xff]
        %s3232 = scalar_lea.vmem [#allocation2], 241
        %v3233 = vld [vmem:[%s3232] ss:$2 sm:$0xff]
        %s3234 = scalar_lea.vmem [#allocation2], 289
        %v3235 = vld [vmem:[%s3234] ss:$2 sm:$0xff]
        %s3236 = scalar_lea.vmem [#allocation2], 337
        %v3237 = vld [vmem:[%s3236] ss:$2 sm:$0xff]
        %v3238 = vlaneseq
        %v3239 = vshrl.u32 %v3238, 7
        %v3240 = vsub.s32 1, %v3239
        %v3241 = vrot.slane %v3193, %v3240
        %v3242 = vmul.f32 %v3223, %v3241
        %v3243 = vmul.f32 %v3225, %v3241
        %v3244 = vmul.f32 %v3227, %v3241
        %v3245 = vmul.f32 %v3229, %v3241
        %v3246 = vmul.f32 %v3231, %v3241
        %v3247 = vmul.f32 %v3233, %v3241
        %v3248 = vmul.f32 %v3235, %v3241
        %v3249 = vmul.f32 %v3237, %v3241
        %v3250 = vadd.f32 %v3214, %v3242
        %v3251 = vadd.f32 %v3215, %v3243
        %v3252 = vadd.f32 %v3216, %v3244
        %v3253 = vadd.f32 %v3217, %v3245
        %v3254 = vadd.f32 %v3218, %v3246
        %v3255 = vadd.f32 %v3219, %v3247
        %v3256 = vadd.f32 %v3220, %v3248
        %v3257 = vadd.f32 %v3221, %v3249
        %s3258 = scalar_lea.vmem [#allocation2], 2
        %v3259 = vld [vmem:[%s3258] ss:$2 sm:$0xff]
        %s3260 = scalar_lea.vmem [#allocation2], 50
        %v3261 = vld [vmem:[%s3260] ss:$2 sm:$0xff]
        %s3262 = scalar_lea.vmem [#allocation2], 98
        %v3263 = vld [vmem:[%s3262] ss:$2 sm:$0xff]
        %s3264 = scalar_lea.vmem [#allocation2], 146
        %v3265 = vld [vmem:[%s3264] ss:$2 sm:$0xff]
        %s3266 = scalar_lea.vmem [#allocation2], 194
        %v3267 = vld [vmem:[%s3266] ss:$2 sm:$0xff]
        %s3268 = scalar_lea.vmem [#allocation2], 242
        %v3269 = vld [vmem:[%s3268] ss:$2 sm:$0xff]
        %s3270 = scalar_lea.vmem [#allocation2], 290
        %v3271 = vld [vmem:[%s3270] ss:$2 sm:$0xff]
        %s3272 = scalar_lea.vmem [#allocation2], 338
        %v3273 = vld [vmem:[%s3272] ss:$2 sm:$0xff]
        %v3274 = vlaneseq
        %v3275 = vshrl.u32 %v3274, 7
        %v3276 = vsub.s32 2, %v3275
        %v3277 = vrot.slane %v3193, %v3276
        %v3278 = vmul.f32 %v3259, %v3277
        %v3279 = vmul.f32 %v3261, %v3277
        %v3280 = vmul.f32 %v3263, %v3277
        %v3281 = vmul.f32 %v3265, %v3277
        %v3282 = vmul.f32 %v3267, %v3277
        %v3283 = vmul.f32 %v3269, %v3277
        %v3284 = vmul.f32 %v3271, %v3277
        %v3285 = vmul.f32 %v3273, %v3277
        %v3286 = vadd.f32 %v3250, %v3278
        %v3287 = vadd.f32 %v3251, %v3279
        %v3288 = vadd.f32 %v3252, %v3280
        %v3289 = vadd.f32 %v3253, %v3281
        %v3290 = vadd.f32 %v3254, %v3282
        %v3291 = vadd.f32 %v3255, %v3283
        %v3292 = vadd.f32 %v3256, %v3284
        %v3293 = vadd.f32 %v3257, %v3285
        %v3294 = vld [vmem:[%s717] ss:$2 sm:$0xff]
        %s3295 = scalar_lea.vmem %s717, 48 [#allocation2]
        %v3296 = vld [vmem:[%s3295] ss:$2 sm:$0xff]
        %s3297 = scalar_lea.vmem %s717, 96 [#allocation2]
        %v3298 = vld [vmem:[%s3297] ss:$2 sm:$0xff]
        %s3299 = scalar_lea.vmem %s717, 144 [#allocation2]
        %v3300 = vld [vmem:[%s3299] ss:$2 sm:$0xff]
        %s3301 = scalar_lea.vmem %s717, 192 [#allocation2]
        %v3302 = vld [vmem:[%s3301] ss:$2 sm:$0xff]
        %s3303 = scalar_lea.vmem %s717, 240 [#allocation2]
        %v3304 = vld [vmem:[%s3303] ss:$2 sm:$0xff]
        %s3305 = scalar_lea.vmem %s717, 288 [#allocation2]
        %v3306 = vld [vmem:[%s3305] ss:$2 sm:$0xff]
        %s3307 = scalar_lea.vmem %s717, 336 [#allocation2]
        %v3308 = vld [vmem:[%s3307] ss:$2 sm:$0xff]
        %v3309 = vlaneseq
        %v3310 = vshrl.u32 %v3309, 7
        %v3311 = vsub.s32 3, %v3310
        %v3312 = vrot.slane %v3193, %v3311
        %v3313 = vmul.f32 %v3294, %v3312
        %v3314 = vmul.f32 %v3296, %v3312
        %v3315 = vmul.f32 %v3298, %v3312
        %v3316 = vmul.f32 %v3300, %v3312
        %v3317 = vmul.f32 %v3302, %v3312
        %v3318 = vmul.f32 %v3304, %v3312
        %v3319 = vmul.f32 %v3306, %v3312
        %v3320 = vmul.f32 %v3308, %v3312
        %v3321 = vadd.f32 %v3286, %v3313
        %v3322 = vadd.f32 %v3287, %v3314
        %v3323 = vadd.f32 %v3288, %v3315
        %v3324 = vadd.f32 %v3289, %v3316
        %v3325 = vadd.f32 %v3290, %v3317
        %v3326 = vadd.f32 %v3291, %v3318
        %v3327 = vadd.f32 %v3292, %v3319
        %v3328 = vadd.f32 %v3293, %v3320
        %s3329 = scalar_lea.vmem %s717, 1 [#allocation2]
        %v3330 = vld [vmem:[%s3329] ss:$2 sm:$0xff]
        %s3331 = scalar_lea.vmem %s717, 49 [#allocation2]
        %v3332 = vld [vmem:[%s3331] ss:$2 sm:$0xff]
        %s3333 = scalar_lea.vmem %s717, 97 [#allocation2]
        %v3334 = vld [vmem:[%s3333] ss:$2 sm:$0xff]
        %s3335 = scalar_lea.vmem %s717, 145 [#allocation2]
        %v3336 = vld [vmem:[%s3335] ss:$2 sm:$0xff]
        %s3337 = scalar_lea.vmem %s717, 193 [#allocation2]
        %v3338 = vld [vmem:[%s3337] ss:$2 sm:$0xff]
        %s3339 = scalar_lea.vmem %s717, 241 [#allocation2]
        %v3340 = vld [vmem:[%s3339] ss:$2 sm:$0xff]
        %s3341 = scalar_lea.vmem %s717, 289 [#allocation2]
        %v3342 = vld [vmem:[%s3341] ss:$2 sm:$0xff]
        %s3343 = scalar_lea.vmem %s717, 337 [#allocation2]
        %v3344 = vld [vmem:[%s3343] ss:$2 sm:$0xff]
        %v3345 = vlaneseq
        %v3346 = vshrl.u32 %v3345, 7
        %v3347 = vsub.s32 4, %v3346
        %v3348 = vrot.slane %v3193, %v3347
        %v3349 = vmul.f32 %v3330, %v3348
        %v3350 = vmul.f32 %v3332, %v3348
        %v3351 = vmul.f32 %v3334, %v3348
        %v3352 = vmul.f32 %v3336, %v3348
        %v3353 = vmul.f32 %v3338, %v3348
        %v3354 = vmul.f32 %v3340, %v3348
        %v3355 = vmul.f32 %v3342, %v3348
        %v3356 = vmul.f32 %v3344, %v3348
        %v3357 = vadd.f32 %v3321, %v3349
        %v3358 = vadd.f32 %v3322, %v3350
        %v3359 = vadd.f32 %v3323, %v3351
        %v3360 = vadd.f32 %v3324, %v3352
        %v3361 = vadd.f32 %v3325, %v3353
        %v3362 = vadd.f32 %v3326, %v3354
        %v3363 = vadd.f32 %v3327, %v3355
        %v3364 = vadd.f32 %v3328, %v3356
        %s3365 = scalar_lea.vmem %s717, 2 [#allocation2]
        %v3366 = vld [vmem:[%s3365] ss:$2 sm:$0xff]
        %s3367 = scalar_lea.vmem %s717, 50 [#allocation2]
        %v3368 = vld [vmem:[%s3367] ss:$2 sm:$0xff]
        %s3369 = scalar_lea.vmem %s717, 98 [#allocation2]
        %v3370 = vld [vmem:[%s3369] ss:$2 sm:$0xff]
        %s3371 = scalar_lea.vmem %s717, 146 [#allocation2]
        %v3372 = vld [vmem:[%s3371] ss:$2 sm:$0xff]
        %s3373 = scalar_lea.vmem %s717, 194 [#allocation2]
        %v3374 = vld [vmem:[%s3373] ss:$2 sm:$0xff]
        %s3375 = scalar_lea.vmem %s717, 242 [#allocation2]
        %v3376 = vld [vmem:[%s3375] ss:$2 sm:$0xff]
        %s3377 = scalar_lea.vmem %s717, 290 [#allocation2]
        %v3378 = vld [vmem:[%s3377] ss:$2 sm:$0xff]
        %s3379 = scalar_lea.vmem %s717, 338 [#allocation2]
        %v3380 = vld [vmem:[%s3379] ss:$2 sm:$0xff]
        %v3381 = vlaneseq
        %v3382 = vshrl.u32 %v3381, 7
        %v3383 = vsub.s32 5, %v3382
        %v3384 = vrot.slane %v3193, %v3383
        %v3385 = vmul.f32 %v3366, %v3384
        %v3386 = vmul.f32 %v3368, %v3384
        %v3387 = vmul.f32 %v3370, %v3384
        %v3388 = vmul.f32 %v3372, %v3384
        %v3389 = vmul.f32 %v3374, %v3384
        %v3390 = vmul.f32 %v3376, %v3384
        %v3391 = vmul.f32 %v3378, %v3384
        %v3392 = vmul.f32 %v3380, %v3384
        %v3393 = vadd.f32 %v3357, %v3385
        %v3394 = vadd.f32 %v3358, %v3386
        %v3395 = vadd.f32 %v3359, %v3387
        %v3396 = vadd.f32 %v3360, %v3388
        %v3397 = vadd.f32 %v3361, %v3389
        %v3398 = vadd.f32 %v3362, %v3390
        %v3399 = vadd.f32 %v3363, %v3391
        %v3400 = vadd.f32 %v3364, %v3392
        %v3401 = vld [vmem:[%s1320] ss:$2 sm:$0xff]
        %s3402 = scalar_lea.vmem %s1320, 48 [#allocation2]
        %v3403 = vld [vmem:[%s3402] ss:$2 sm:$0xff]
        %s3404 = scalar_lea.vmem %s1320, 96 [#allocation2]
        %v3405 = vld [vmem:[%s3404] ss:$2 sm:$0xff]
        %s3406 = scalar_lea.vmem %s1320, 144 [#allocation2]
        %v3407 = vld [vmem:[%s3406] ss:$2 sm:$0xff]
        %s3408 = scalar_lea.vmem %s1320, 192 [#allocation2]
        %v3409 = vld [vmem:[%s3408] ss:$2 sm:$0xff]
        %s3410 = scalar_lea.vmem %s1320, 240 [#allocation2]
        %v3411 = vld [vmem:[%s3410] ss:$2 sm:$0xff]
        %s3412 = scalar_lea.vmem %s1320, 288 [#allocation2]
        %v3413 = vld [vmem:[%s3412] ss:$2 sm:$0xff]
        %s3414 = scalar_lea.vmem %s1320, 336 [#allocation2]
        %v3415 = vld [vmem:[%s3414] ss:$2 sm:$0xff]
        %v3416 = vlaneseq
        %v3417 = vshrl.u32 %v3416, 7
        %v3418 = vsub.s32 6, %v3417
        %v3419 = vrot.slane %v3193, %v3418
        %v3420 = vmul.f32 %v3401, %v3419
        %v3421 = vmul.f32 %v3403, %v3419
        %v3422 = vmul.f32 %v3405, %v3419
        %v3423 = vmul.f32 %v3407, %v3419
        %v3424 = vmul.f32 %v3409, %v3419
        %v3425 = vmul.f32 %v3411, %v3419
        %v3426 = vmul.f32 %v3413, %v3419
        %v3427 = vmul.f32 %v3415, %v3419
        %v3428 = vadd.f32 %v3393, %v3420
        %v3429 = vadd.f32 %v3394, %v3421
        %v3430 = vadd.f32 %v3395, %v3422
        %v3431 = vadd.f32 %v3396, %v3423
        %v3432 = vadd.f32 %v3397, %v3424
        %v3433 = vadd.f32 %v3398, %v3425
        %v3434 = vadd.f32 %v3399, %v3426
        %v3435 = vadd.f32 %v3400, %v3427
        %s3436 = scalar_lea.vmem %s1320, 1 [#allocation2]
        %v3437 = vld [vmem:[%s3436] ss:$2 sm:$0xff]
        %s3438 = scalar_lea.vmem %s1320, 49 [#allocation2]
        %v3439 = vld [vmem:[%s3438] ss:$2 sm:$0xff]
        %s3440 = scalar_lea.vmem %s1320, 97 [#allocation2]
        %v3441 = vld [vmem:[%s3440] ss:$2 sm:$0xff]
        %s3442 = scalar_lea.vmem %s1320, 145 [#allocation2]
        %v3443 = vld [vmem:[%s3442] ss:$2 sm:$0xff]
        %s3444 = scalar_lea.vmem %s1320, 193 [#allocation2]
        %v3445 = vld [vmem:[%s3444] ss:$2 sm:$0xff]
        %s3446 = scalar_lea.vmem %s1320, 241 [#allocation2]
        %v3447 = vld [vmem:[%s3446] ss:$2 sm:$0xff]
        %s3448 = scalar_lea.vmem %s1320, 289 [#allocation2]
        %v3449 = vld [vmem:[%s3448] ss:$2 sm:$0xff]
        %s3450 = scalar_lea.vmem %s1320, 337 [#allocation2]
        %v3451 = vld [vmem:[%s3450] ss:$2 sm:$0xff]
        %v3452 = vlaneseq
        %v3453 = vshrl.u32 %v3452, 7
        %v3454 = vsub.s32 7, %v3453
        %v3455 = vrot.slane %v3193, %v3454
        %v3456 = vmul.f32 %v3437, %v3455
        %v3457 = vmul.f32 %v3439, %v3455
        %v3458 = vmul.f32 %v3441, %v3455
        %v3459 = vmul.f32 %v3443, %v3455
        %v3460 = vmul.f32 %v3445, %v3455
        %v3461 = vmul.f32 %v3447, %v3455
        %v3462 = vmul.f32 %v3449, %v3455
        %v3463 = vmul.f32 %v3451, %v3455
        %v3464 = vadd.f32 %v3428, %v3456
        %v3465 = vadd.f32 %v3429, %v3457
        %v3466 = vadd.f32 %v3430, %v3458
        %v3467 = vadd.f32 %v3431, %v3459
        %v3468 = vadd.f32 %v3432, %v3460
        %v3469 = vadd.f32 %v3433, %v3461
        %v3470 = vadd.f32 %v3434, %v3462
        %v3471 = vadd.f32 %v3435, %v3463
        %s3472 = scalar_lea.vmem %s1320, 2 [#allocation2]
        %v3473 = vld [vmem:[%s3472] ss:$2 sm:$0xff]
        %s3474 = scalar_lea.vmem %s1320, 50 [#allocation2]
        %v3475 = vld [vmem:[%s3474] ss:$2 sm:$0xff]
        %s3476 = scalar_lea.vmem %s1320, 98 [#allocation2]
        %v3477 = vld [vmem:[%s3476] ss:$2 sm:$0xff]
        %s3478 = scalar_lea.vmem %s1320, 146 [#allocation2]
        %v3479 = vld [vmem:[%s3478] ss:$2 sm:$0xff]
        %s3480 = scalar_lea.vmem %s1320, 194 [#allocation2]
        %v3481 = vld [vmem:[%s3480] ss:$2 sm:$0xff]
        %s3482 = scalar_lea.vmem %s1320, 242 [#allocation2]
        %v3483 = vld [vmem:[%s3482] ss:$2 sm:$0xff]
        %s3484 = scalar_lea.vmem %s1320, 290 [#allocation2]
        %v3485 = vld [vmem:[%s3484] ss:$2 sm:$0xff]
        %s3486 = scalar_lea.vmem %s1320, 338 [#allocation2]
        %v3487 = vld [vmem:[%s3486] ss:$2 sm:$0xff]
        %v3488 = vlaneseq
        %v3489 = vshrl.u32 %v3488, 7
        %v3490 = vsub.s32 0, %v3489
        %v3491 = vrot.slane %v3194, %v3490
        %v3492 = vmul.f32 %v3473, %v3491
        %v3493 = vmul.f32 %v3475, %v3491
        %v3494 = vmul.f32 %v3477, %v3491
        %v3495 = vmul.f32 %v3479, %v3491
        %v3496 = vmul.f32 %v3481, %v3491
        %v3497 = vmul.f32 %v3483, %v3491
        %v3498 = vmul.f32 %v3485, %v3491
        %v3499 = vmul.f32 %v3487, %v3491
        %v3500 = vadd.f32 %v3464, %v3492
        %v3501 = vadd.f32 %v3465, %v3493
        %v3502 = vadd.f32 %v3466, %v3494
        %v3503 = vadd.f32 %v3467, %v3495
        %v3504 = vadd.f32 %v3468, %v3496
        %v3505 = vadd.f32 %v3469, %v3497
        %v3506 = vadd.f32 %v3470, %v3498
        %v3507 = vadd.f32 %v3471, %v3499
        %v3508 = vld [vmem:[%s10] sm:$0x1]
        %v3510 = vlaneseq
        %v3511 = vshrl.u32 %v3510, 7
        %v3512 = vsub.s32 0, %v3511
        %v3513 = vrot.slane %v3508, %v3512
        %v3515 = vadd.f32 %v3500, %v3513
        %v3516 = vadd.f32 %v3501, %v3513
        %v3517 = vadd.f32 %v3502, %v3513
        %v3518 = vadd.f32 %v3503, %v3513
        %v3519 = vadd.f32 %v3504, %v3513
        %v3520 = vadd.f32 %v3505, %v3513
        %v3521 = vadd.f32 %v3506, %v3513
        %v3522 = vadd.f32 %v3507, %v3513
        %v3523 = vpack.c.bf16 %v3516, %v3515
        %v3524 = vpack.c.bf16 %v3518, %v3517
        %v3525 = vpack.c.bf16 %v3520, %v3519
        %v3526 = vpack.c.bf16 %v3522, %v3521
        %v3527 = vld [vmem:[%s559] sm:$0xff]
        %v3528 = vld [vmem:[%s559 + $0x8] sm:$0xff]
        %v3529 = vld [vmem:[%s559 + $0x10] sm:$0xff]
        %v3530 = vld [vmem:[%s559 + $0x18] sm:$0xff]
        %v3531 = vld [vmem:[%s559 + $0x20] sm:$0xff]
        %v3532 = vld [vmem:[%s559 + $0x28] sm:$0xff]
        %v3533 = vld [vmem:[%s559 + $0x30] sm:$0xff]
        %v3534 = vld [vmem:[%s559 + $0x38] sm:$0xff]
        %v3535 = vpack.c.bf16 %v3528, %v3527
        %v3536 = vpack.c.bf16 %v3530, %v3529
        %v3537 = vpack.c.bf16 %v3532, %v3531
        %v3538 = vpack.c.bf16 %v3534, %v3533
        %v3539 = vld [vmem:[#allocation14] sm:$0xf]
        %v3540 = vld [vmem:[#allocation14 + $0x4] sm:$0xf]
        %v3541 = vld [vmem:[#allocation14 + $0x8] sm:$0xf]
        %v3542 = vld [vmem:[#allocation14 + $0xc] sm:$0xf]
        %v3543 = vld [vmem:[#allocation14 + $0x10] sm:$0xf]
        %v3544 = vld [vmem:[#allocation14 + $0x14] sm:$0xf]
        %v3545 = vld [vmem:[#allocation14 + $0x18] sm:$0xf]
        %v3546 = vld [vmem:[#allocation14 + $0x1c] sm:$0xf]
        %v3547 = vld [vmem:[#allocation14 + $0x20] sm:$0xf]
        %v3548 = vld [vmem:[#allocation14 + $0x24] sm:$0xf]
        %v3549 = vld [vmem:[#allocation14 + $0x28] sm:$0xf]
        %v3550 = vld [vmem:[#allocation14 + $0x2c] sm:$0xf]
        %v3551 = vld [vmem:[#allocation14 + $0x30] sm:$0xf]
        %v3552 = vld [vmem:[#allocation14 + $0x34] sm:$0xf]
        %v3553 = vld [vmem:[#allocation14 + $0x38] sm:$0xf]
        %v3554 = vld [vmem:[#allocation14 + $0x3c] sm:$0xf]
        %v3555 = vld [vmem:[#allocation14 + $0x40] sm:$0xf]
        %v3556 = vld [vmem:[#allocation14 + $0x44] sm:$0xf]
        %v3557 = vld [vmem:[#allocation14 + $0x48] sm:$0xf]
        %v3558 = vld [vmem:[#allocation14 + $0x4c] sm:$0xf]
        %v3559 = vld [vmem:[#allocation14 + $0x50] sm:$0xf]
        %v3560 = vld [vmem:[#allocation14 + $0x54] sm:$0xf]
        %v3561 = vld [vmem:[#allocation14 + $0x58] sm:$0xf]
        %v3562 = vld [vmem:[#allocation14 + $0x5c] sm:$0xf]
        %v3563 = vld [vmem:[#allocation14 + $0x60] sm:$0xf]
        %v3564 = vld [vmem:[#allocation14 + $0x64] sm:$0xf]
        %v3565 = vld [vmem:[#allocation14 + $0x68] sm:$0xf]
        %v3566 = vld [vmem:[#allocation14 + $0x6c] sm:$0xf]
        %v3567 = vld [vmem:[#allocation14 + $0x70] sm:$0xf]
        %v3568 = vld [vmem:[#allocation14 + $0x74] sm:$0xf]
        %v3569 = vld [vmem:[#allocation14 + $0x78] sm:$0xf]
        %v3570 = vld [vmem:[#allocation14 + $0x7c] sm:$0xf]
        %v3571 = vld [vmem:[%s12] sm:$0x1]
        %v3573 = vlaneseq
        %v3574 = vshrl.u32 %v3573, 7
        %v3575 = vsub.s32 0, %v3574
        %v3576 = vrot.slane %v3571, %v3575
        %v3610 = vunpack.c.l.b16 %v3539
        %v3611 = vunpack.c.l.b16 %v3540
        %v3612 = vunpack.c.l.b16 %v3541
        %v3613 = vunpack.c.l.b16 %v3542
        %v3614 = vunpack.c.l.b16 %v3543
        %v3615 = vunpack.c.l.b16 %v3544
        %v3616 = vunpack.c.l.b16 %v3545
        %v3617 = vunpack.c.l.b16 %v3546
        %v3618 = vunpack.c.l.b16 %v3547
        %v3619 = vunpack.c.l.b16 %v3548
        %v3620 = vunpack.c.l.b16 %v3549
        %v3621 = vunpack.c.l.b16 %v3550
        %v3622 = vunpack.c.l.b16 %v3551
        %v3623 = vunpack.c.l.b16 %v3552
        %v3624 = vunpack.c.l.b16 %v3553
        %v3625 = vunpack.c.l.b16 %v3554
        %v3626 = vunpack.c.l.b16 %v3555
        %v3627 = vunpack.c.l.b16 %v3556
        %v3628 = vunpack.c.l.b16 %v3557
        %v3629 = vunpack.c.l.b16 %v3558
        %v3630 = vunpack.c.l.b16 %v3559
        %v3631 = vunpack.c.l.b16 %v3560
        %v3632 = vunpack.c.l.b16 %v3561
        %v3633 = vunpack.c.l.b16 %v3562
        %v3634 = vunpack.c.l.b16 %v3563
        %v3635 = vunpack.c.l.b16 %v3564
        %v3636 = vunpack.c.l.b16 %v3565
        %v3637 = vunpack.c.l.b16 %v3566
        %v3638 = vunpack.c.l.b16 %v3567
        %v3639 = vunpack.c.l.b16 %v3568
        %v3640 = vunpack.c.l.b16 %v3569
        %v3641 = vunpack.c.l.b16 %v3570
        %v3642 = vpack.c.b16 %v3611, %v3610
        %v3643 = vpack.c.b16 %v3613, %v3612
        %v3644 = vpack.c.b16 %v3615, %v3614
        %v3645 = vpack.c.b16 %v3617, %v3616
        %v3646 = vpack.c.b16 %v3619, %v3618
        %v3647 = vpack.c.b16 %v3621, %v3620
        %v3648 = vpack.c.b16 %v3623, %v3622
        %v3649 = vpack.c.b16 %v3625, %v3624
        %v3650 = vpack.c.b16 %v3627, %v3626
        %v3651 = vpack.c.b16 %v3629, %v3628
        %v3652 = vpack.c.b16 %v3631, %v3630
        %v3653 = vpack.c.b16 %v3633, %v3632
        %v3654 = vpack.c.b16 %v3635, %v3634
        %v3655 = vpack.c.b16 %v3637, %v3636
        %v3656 = vpack.c.b16 %v3639, %v3638
        %v3657 = vpack.c.b16 %v3641, %v3640
        %3674 = vmatprep.subr.bf16.mxu0 0
        %3675 = vmatpush1.bf16.msra.mxu0 %v3642
        %3676 = vmatprep.subr.bf16.mxu0 0
        %3677 = vmatpush1.bf16.msra.mxu0 %v3643
        %3678 = vmatprep.subr.bf16.mxu0 0
        %3679 = vmatpush1.bf16.msra.mxu0 %v3644
        %3680 = vmatprep.subr.bf16.mxu0 0
        %3681 = vmatpush1.bf16.msra.mxu0 %v3645
        %3682 = vmatprep.subr.bf16.mxu0 0
        %3683 = vmatpush1.bf16.msra.mxu0 %v3646
        %3684 = vmatprep.subr.bf16.mxu0 0
        %3685 = vmatpush1.bf16.msra.mxu0 %v3647
        %3686 = vmatprep.subr.bf16.mxu0 0
        %3687 = vmatpush1.bf16.msra.mxu0 %v3648
        %3688 = vmatprep.subr.bf16.mxu0 0
        %3689 = vmatpush1.bf16.msra.mxu0 %v3649
        %3690 = vmatprep.subr.bf16.mxu0 0
        %3691 = vmatpush1.bf16.msra.mxu0 %v3650
        %3692 = vmatprep.subr.bf16.mxu0 0
        %3693 = vmatpush1.bf16.msra.mxu0 %v3651
        %3694 = vmatprep.subr.bf16.mxu0 0
        %3695 = vmatpush1.bf16.msra.mxu0 %v3652
        %3696 = vmatprep.subr.bf16.mxu0 0
        %3697 = vmatpush1.bf16.msra.mxu0 %v3653
        %3698 = vmatprep.subr.bf16.mxu0 0
        %3699 = vmatpush1.bf16.msra.mxu0 %v3654
        %3700 = vmatprep.subr.bf16.mxu0 0
        %3701 = vmatpush1.bf16.msra.mxu0 %v3655
        %3702 = vmatprep.subr.bf16.mxu0 0
        %3703 = vmatpush1.bf16.msra.mxu0 %v3656
        %3704 = vmatprep.subr.bf16.mxu0 0
        %3705 = vmatpush1.bf16.msra.mxu0 %v3657
        %3706 = vmatprep.mubr.bf16.mxu0 %v3535
        %3707 = vmatmul.mubr.bf16.gmra.mrb[0].mxu0 %v3523
        %v3708 = vpop.f32.mrb[0].mxu0
        %v3709 = vadd.f32 %v3576, %v3708
        %v3710 = vpop.f32.mrb[0].mxu0
        %v3711 = vpop.f32.mrb[0].mxu0
        %v3712 = vadd.f32 %v3576, %v3711
        %v3713 = vpop.f32.mrb[0].mxu0
        %3714 = vmatprep.mubr.bf16.mxu0 %v3536
        %3715 = vmatmul.mubr.bf16.gmra.mrb[0].mxu0 %v3524
        %v3716 = vpop.f32.mrb[0].mxu0
        %v3717 = vadd.f32 %v3576, %v3716
        %v3718 = vpop.f32.mrb[0].mxu0
        %v3719 = vpop.f32.mrb[0].mxu0
        %v3720 = vadd.f32 %v3576, %v3719
        %v3721 = vpop.f32.mrb[0].mxu0
        %3722 = vmatprep.mubr.bf16.mxu0 %v3537
        %3723 = vmatmul.mubr.bf16.gmra.mrb[0].mxu0 %v3525
        %v3724 = vpop.f32.mrb[0].mxu0
        %v3725 = vadd.f32 %v3576, %v3724
        %v3726 = vpop.f32.mrb[0].mxu0
        %v3727 = vpop.f32.mrb[0].mxu0
        %v3728 = vadd.f32 %v3576, %v3727
        %v3729 = vpop.f32.mrb[0].mxu0
        %3730 = vmatprep.mubr.bf16.mxu0 %v3538
        %3731 = vmatmul.mubr.bf16.gmra.mrb[0].mxu0 %v3526
        %v3732 = vpop.f32.mrb[0].mxu0
        %v3733 = vadd.f32 %v3576, %v3732
        %v3734 = vpop.f32.mrb[0].mxu0
        %v3735 = vpop.f32.mrb[0].mxu0
        %v3736 = vadd.f32 %v3576, %v3735
        %v3737 = vpop.f32.mrb[0].mxu0
        %3738 = vdwg.mxu0
        %3739 = vst [vmem:[%s608] sm:$0xff] %v3709
        %3740 = vst [vmem:[%s608 + $0x8] sm:$0xff] %v3712
        %3741 = vst [vmem:[%s608 + $0x10] sm:$0xff] %v3717
        %3742 = vst [vmem:[%s608 + $0x18] sm:$0xff] %v3720
        %3743 = vst [vmem:[%s608 + $0x20] sm:$0xff] %v3725
        %3744 = vst [vmem:[%s608 + $0x28] sm:$0xff] %v3728
        %3745 = vst [vmem:[%s608 + $0x30] sm:$0xff] %v3733
        %3746 = vst [vmem:[%s608 + $0x38] sm:$0xff] %v3736
        %s3747 = sand.u32 %s349, 1
        %s3748 = scalar_lea.sflag [#allocation5], %s3747
        %s3749 = sand.u32 %s349, 1
        %s3750 = smul.addr %s3749, 64
        %s3751 = scalar_lea.vmem [#allocation17], %s3750
        // Predicated region
        $region109: #{tpu_custom_call.1} parent=75 // pred_check
          %p3752 = pneg %p359
        $region110: #{tpu_custom_call.1} parent=75 // pred_check_branch
          %3754 = sbr.rel (%p3752) target = $region112
        $region111: #{tpu_custom_call.1} parent=75 // pred_region
          %s3756 = ssub.s32 1024, 1024
          %3757 = vsyncadd %s3748, %s3756
          %s3758 = smul.addr %s37, 8
          %s3759 = smul.addr %s3758, 128
          %s3760 = scalar_lea.hbm %s14, %s3759
          %s3761 = sshll.u32 %s3751, 4
          %s3762 = int_to_ptr.vmem [resolvable:$true] %s3761
          %3767 = dma.vmem_to_hbm [thread:$0]  %s3762, 1024, %s3760, %s3748, 128, 128, 8
        $region112: #{tpu_custom_call.1} parent=75 // pred_fallthru
          _
      $region76: #{tpu_custom_call.1} parent=5 // pred_fallthru
        _
      %p3768 = scmp.le.s32.totalorder 2, %s32
      // Predicated region
      $region113: #{tpu_custom_call.1} parent=5 // pred_check
        %p3769 = pneg %p3768
      $region114: #{tpu_custom_call.1} parent=5 // pred_check_branch
        %3771 = sbr.rel (%p3769) target = $region116
      $region115: #{tpu_custom_call.1} parent=5 // pred_region
        %s3772 = ssub.s32 %s32, 2
        // Predicated region
        $region117: #{tpu_custom_call.1} parent=115 // pred_check
          %p3773 = pneg %p365
        $region118: #{tpu_custom_call.1} parent=115 // pred_check_branch
          %3775 = sbr.rel (%p3773) target = $region120
        $region119: #{tpu_custom_call.1} parent=115 // pred_region
          %s3776 = sand.u32 %s350, 1
          %s3777 = scalar_lea.sflag [#allocation5], %s3776
          %s3778 = sand.u32 %s350, 1
          %s3779 = smul.addr %s3778, 64
          %s3780 = scalar_lea.vmem [#allocation17], %s3779
          %3781 = dma.done %s3777, 1024
        $region120: #{tpu_custom_call.1} parent=115 // pred_fallthru
          _
      $region116: #{tpu_custom_call.1} parent=5 // pred_fallthru
        _
    $region6: #{tpu_custom_call.1} parent=1 // loop_footer
      %s36 = sadd.s32 1, %s32
    $region7: #{tpu_custom_call.1} parent=1 // loop_footer_branch
      %31 = sbr.rel target = $region3
    $region8: #{tpu_custom_call.1} parent=1 // loop_exit
      _
    %3782 = vsyncpa [#allocation4], 1
    %s3783 = scalar_lea.sflag [#allocation4], 1
    %3784 = vsyncpa %s3783, 1
    %3785 = vsyncpa [#allocation7], 1
    %3786 = vsyncpa [#allocation10], 1
    %3787 = vsyncpa [#allocation13], 1
    %3788 = vsyncpa [#allocation16], 1
    %s3789 = scalar_lea.sflag [#allocation16], 1
    %3790 = vsyncpa %s3789, 1
    %3791 = vsyncpa [#allocation5], 1
    %s3792 = scalar_lea.sflag [#allocation5], 1
    %3793 = vsyncpa %s3792, 1

</llo_original>
